<compile_context>
chip_gen: v7x
topology: tpu7x:2x2x1
jax: 0.10.0
libtpu: 0.0.40
codegen_flags: <defaults>
</compile_context>

<pallas_src>
import math
import functools

import jax
import jax.numpy as jnp
from jax.experimental import pallas as pl
from jax.experimental.pallas import tpu as pltpu


_INV_SQRT2 = 1.0 / math.sqrt(2.0)
_LN_EPS = 1e-5
_NEG_INF = -1e9


def _compute_vmem_limit():
    """Generation-aware scoped-VMEM cap: headroom on v7x (64 MiB physical),
    more room on v5e/v6e (128 MiB physical)."""
    try:
        cap = int(pltpu.get_tpu_info().vmem_capacity_bytes)
    except Exception:
        return 48 * 1024 * 1024
    if cap <= 64 * 1024 * 1024:          # v7x
        return 36 * 1024 * 1024
    return 64 * 1024 * 1024              # v5e / v6e


_VMEM_LIMIT = _compute_vmem_limit()


# -----------------------------------------------------------------------------
# Tile-size / padding helpers
# -----------------------------------------------------------------------------
def _round_up(x, m):
    return ((x + m - 1) // m) * m


def _row_tile(dim, cap):
    """(tile, padded_dim) for the row (sublane) axis; 8-aligned."""
    if dim <= cap:
        return dim, dim
    t = (cap // 8) * 8
    while t >= 8:
        if dim % t == 0:
            return t, dim
        t -= 8
    t = (cap // 8) * 8
    return t, _round_up(dim, t)


def _lane_tile(dim, cap):
    """(tile, padded_dim) for a lane-major (N / K) axis.

    Prefers 256-aligned tiles (v6e/v7x MXU is 256 wide), falls back to 128.
    If no aligned divisor exists the dim is zero-padded to a tile multiple —
    never falls back to a huge unaligned full-dim tile (fixes the vocab case).
    """
    if dim <= cap:
        return dim, dim
    best = 0
    for align in (256, 128):
        t = (cap // align) * align
        while t >= align:
            if dim % t == 0:
                best = max(best, t)
                break
            t -= align
    if best:
        return best, dim
    t = (cap // 256) * 256 if cap >= 256 else 128
    return t, _round_up(dim, t)


def _seq_tile(S, cap):
    """Sequence tile: largest 8-aligned divisor of S that is <= cap."""
    if S <= cap:
        return S
    t = (cap // 8) * 8
    while t >= 8:
        if S % t == 0:
            return t
        t -= 8
    return S


# -----------------------------------------------------------------------------
# Tiled matmul (+bias, +GELU epilogue) kernel
# -----------------------------------------------------------------------------
def _make_linear_kernel(activation, has_bias):
    def kernel(x_ref, w_ref, *rest):
        if has_bias:
            b_ref, o_ref, acc_ref = rest
        else:
            o_ref, acc_ref = rest
            b_ref = None

        @pl.when(pl.program_id(2) == 0)
        def _init():
            acc_ref[...] = jnp.zeros_like(acc_ref)

        acc_ref[...] += jnp.dot(x_ref[...], w_ref[...],
                                preferred_element_type=jnp.float32)

        @pl.when(pl.program_id(2) == pl.num_programs(2) - 1)
        def _finalize():
            y = acc_ref[...]
            if b_ref is not None:
                y = y + b_ref[...].astype(jnp.float32)
            if activation == "gelu":
                # exact (erf-based) GELU, matches F.gelu default; f32 epilogue.
                y = 0.5 * y * (1.0 + jax.lax.erf(y * _INV_SQRT2))
            o_ref[...] = y.astype(o_ref.dtype)

    return kernel


def pallas_linear(x2d, w, b=None, activation=None, out_dtype=jnp.bfloat16,
                  tm_cap=256, tn_cap=512, tk_cap=1024):
    """y = act(x @ w + b).  x2d:(M,K) bf16, w:(K,N) bf16, b:(1,N) f32."""
    M, K = x2d.shape
    Kw, N = w.shape
    assert K == Kw
    tm, Mp = _row_tile(M, tm_cap)
    tn, Np = _lane_tile(N, tn_cap)
    tk, Kp = _lane_tile(K, tk_cap)

    if (Mp, Kp) != (M, K):
        x2d = jnp.pad(x2d, ((0, Mp - M), (0, Kp - K)))
    if (Kp, Np) != (K, N):
        w = jnp.pad(w, ((0, Kp - K), (0, Np - N)))
    if b is not None and Np != N:
        b = jnp.pad(b, ((0, 0), (0, Np - N)))

    grid = (Mp // tm, Np // tn, Kp // tk)
    in_specs = [
        pl.BlockSpec((tm, tk), lambda i, j, k: (i, k)),
        pl.BlockSpec((tk, tn), lambda i, j, k: (k, j)),
    ]
    args = [x2d, w]
    if b is not None:
        in_specs.append(pl.BlockSpec((1, tn), lambda i, j, k: (0, j)))
        args.append(b)

    out = pl.pallas_call(
        _make_linear_kernel(activation, b is not None),
        grid=grid,
        in_specs=in_specs,
        out_specs=pl.BlockSpec((tm, tn), lambda i, j, k: (i, j)),
        out_shape=jax.ShapeDtypeStruct((Mp, Np), out_dtype),
        scratch_shapes=[pltpu.VMEM((tm, tn), jnp.float32)],
        compiler_params=pltpu.CompilerParams(
            dimension_semantics=("parallel", "parallel", "arbitrary"),
            vmem_limit_bytes=_VMEM_LIMIT),
    )(*args)
    if (Mp, Np) != (M, N):
        out = out[:M, :N]
    return out


# -----------------------------------------------------------------------------
# Matmul with fused residual-add + LayerNorm epilogue (for w_o and FFN w2)
# -----------------------------------------------------------------------------
def _linear_add_ln_kernel(x_ref, w_ref, b_ref, res_ref, g_ref, beta_ref,
                          o_ref, acc_ref):
    @pl.when(pl.program_id(1) == 0)
    def _init():
        acc_ref[...] = jnp.zeros_like(acc_ref)

    acc_ref[...] += jnp.dot(x_ref[...], w_ref[...],
                            preferred_element_type=jnp.float32)

    @pl.when(pl.program_id(1) == pl.num_programs(1) - 1)
    def _finalize():
        y = acc_ref[...] + b_ref[...].astype(jnp.float32)
        r = res_ref[...].astype(jnp.float32) + y         # residual add
        mu = jnp.mean(r, axis=-1, keepdims=True)
        var = jnp.mean((r - mu) ** 2, axis=-1, keepdims=True)
        inv = jax.lax.rsqrt(var + _LN_EPS)
        o_ref[...] = ((r - mu) * inv * g_ref[...]
                      + beta_ref[...]).astype(o_ref.dtype)


def pallas_linear_add_layernorm(x2d, w, b, res2d, gamma, beta,
                                out_dtype=jnp.bfloat16, tm_cap=256,
                                tk_cap=1024):
    """LayerNorm(res + (x @ w + b)).  N (= d_model) is one full output tile,
    so the add + LN run inside the matmul finalize epilogue (removes one HBM
    round trip of the (B*S, d_model) activation per LayerNorm)."""
    M, K = x2d.shape
    Kw, N = w.shape
    assert K == Kw and res2d.shape == (M, N)
    tm, Mp = _row_tile(M, tm_cap)
    tk, Kp = _lane_tile(K, tk_cap)

    if (Mp, Kp) != (M, K):
        x2d = jnp.pad(x2d, ((0, Mp - M), (0, Kp - K)))
    if Kp != K:
        w = jnp.pad(w, ((0, Kp - K), (0, 0)))
    if Mp != M:
        res2d = jnp.pad(res2d, ((0, Mp - M), (0, 0)))

    grid = (Mp // tm, Kp // tk)
    out = pl.pallas_call(
        _linear_add_ln_kernel,
        grid=grid,
        in_specs=[
            pl.BlockSpec((tm, tk), lambda i, k: (i, k)),
            pl.BlockSpec((tk, N), lambda i, k: (k, 0)),
            pl.BlockSpec((1, N), lambda i, k: (0, 0)),
            pl.BlockSpec((tm, N), lambda i, k: (i, 0)),
            pl.BlockSpec((1, N), lambda i, k: (0, 0)),
            pl.BlockSpec((1, N), lambda i, k: (0, 0)),
        ],
        out_specs=pl.BlockSpec((tm, N), lambda i, k: (i, 0)),
        out_shape=jax.ShapeDtypeStruct((Mp, N), out_dtype),
        scratch_shapes=[pltpu.VMEM((tm, N), jnp.float32)],
        compiler_params=pltpu.CompilerParams(
            dimension_semantics=("parallel", "arbitrary"),
            vmem_limit_bytes=_VMEM_LIMIT),
    )(x2d, w, b, res2d, gamma, beta)
    return out[:M] if Mp != M else out


# -----------------------------------------------------------------------------
# Standalone LayerNorm (final ln_f only), large row tiles (HBM-bound)
# -----------------------------------------------------------------------------
def _layernorm_kernel(x_ref, g_ref, b_ref, o_ref):
    x = x_ref[...].astype(jnp.float32)
    mu = jnp.mean(x, axis=-1, keepdims=True)
    var = jnp.mean((x - mu) ** 2, axis=-1, keepdims=True)
    inv = jax.lax.rsqrt(var + _LN_EPS)
    o_ref[...] = ((x - mu) * inv * g_ref[...] + b_ref[...]).astype(o_ref.dtype)


def pallas_layernorm(x2d, gamma, beta, out_dtype=jnp.bfloat16, tm_cap=1024):
    M, D = x2d.shape
    tm, Mp = _row_tile(M, tm_cap)
    if Mp != M:
        x2d = jnp.pad(x2d, ((0, Mp - M), (0, 0)))
    row_spec = pl.BlockSpec((tm, D), lambda i: (i, 0))
    vec_spec = pl.BlockSpec((1, D), lambda i: (0, 0))
    out = pl.pallas_call(
        _layernorm_kernel,
        grid=(Mp // tm,),
        in_specs=[row_spec, vec_spec, vec_spec],
        out_specs=row_spec,
        out_shape=jax.ShapeDtypeStruct((Mp, D), out_dtype),
        compiler_params=pltpu.CompilerParams(
            dimension_semantics=("parallel",),
            vmem_limit_bytes=_VMEM_LIMIT),
    )(x2d, gamma, beta)
    return out[:M] if Mp != M else out


# -----------------------------------------------------------------------------
# Flash-blocked causal multi-head attention from the fused QKV slab
# -----------------------------------------------------------------------------
def _flash_attn_kernel(q_ref, k_ref, v_ref, o_ref, m_sc, l_sc, acc_sc, *,
                       num_heads, d_k, scale, tq, tkv):
    qi = pl.program_id(1)
    ki = pl.program_id(2)
    q_start = qi * tq
    k_start = ki * tkv

    @pl.when(ki == 0)
    def _init():
        m_sc[...] = jnp.full_like(m_sc, -jnp.inf)
        l_sc[...] = jnp.zeros_like(l_sc)
        acc_sc[...] = jnp.zeros_like(acc_sc)

    # Skip KV blocks entirely above the causal diagonal.
    @pl.when(k_start <= q_start + (tq - 1))
    def _compute():
        q = q_ref[0]                                    # (tq, D)  bf16
        k = k_ref[0]                                    # (tkv, D) bf16
        v = v_ref[0]                                    # (tkv, D) bf16
        row = q_start + jax.lax.broadcasted_iota(jnp.int32, (tq, tkv), 0)
        col = k_start + jax.lax.broadcasted_iota(jnp.int32, (tq, tkv), 1)
        causal = col <= row                             # shared across heads

        # Per-head online softmax; each head's temporaries are written straight
        # into its own scratch slice, so only one (tq, tkv) score tile is live.
        for h in range(num_heads):
            hsl = slice(h * d_k, (h + 1) * d_k)
            s = jax.lax.dot_general(
                q[:, hsl], k[:, hsl], (((1,), (1,)), ((), ())),
                preferred_element_type=jnp.float32) * scale
            s = jnp.where(causal, s, _NEG_INF)
            m_prev = m_sc[h]                            # (tq, 1)
            m_new = jnp.maximum(m_prev, jnp.max(s, axis=-1, keepdims=True))
            alpha = jnp.exp(m_prev - m_new)
            p = jnp.exp(s - m_new)
            l_sc[h] = alpha * l_sc[h] + jnp.sum(p, axis=-1, keepdims=True)
            acc_sc[h] = alpha * acc_sc[h] + jnp.dot(
                p.astype(v.dtype), v[:, hsl],
                preferred_element_type=jnp.float32)
            m_sc[h] = m_new

    @pl.when(ki == pl.num_programs(2) - 1)
    def _finalize():
        for h in range(num_heads):                      # per-head direct store
            inv = pl.reciprocal(l_sc[h], approx=True)
            o_ref[0, :, h * d_k:(h + 1) * d_k] = (
                acc_sc[h] * inv).astype(o_ref.dtype)


def pallas_causal_attention(qkv, num_heads, seq_tile_cap=256):
    """qkv: (B, S, 3*D) bf16 (fused [Q|K|V] columns) -> (B, S, D) bf16."""
    B, S, threeD = qkv.shape
    D = threeD // 3
    d_k = D // num_heads
    tq = _seq_tile(S, seq_tile_cap)
    tkv = _seq_tile(S, seq_tile_cap)
    n_q, n_kv = S // tq, S // tkv

    kernel = functools.partial(
        _flash_attn_kernel, num_heads=num_heads, d_k=d_k,
        scale=1.0 / math.sqrt(d_k), tq=tq, tkv=tkv)

    if D % 128 == 0:
        # Read Q/K/V as D-wide column blocks (block index 0/1/2 on the last
        # axis) directly out of the fused slab: no HBM split / transposes.
        in_specs = [
            pl.BlockSpec((1, tq, D), lambda b, qi, ki: (b, qi, 0)),
            pl.BlockSpec((1, tkv, D), lambda b, qi, ki: (b, ki, 1)),
            pl.BlockSpec((1, tkv, D), lambda b, qi, ki: (b, ki, 2)),
        ]
        args = (qkv, qkv, qkv)
    else:
        # Fallback for lane-unaligned d_model: split once in XLA.
        q = qkv[:, :, :D]
        k = qkv[:, :, D:2 * D]
        v = qkv[:, :, 2 * D:]
        in_specs = [
            pl.BlockSpec((1, tq, D), lambda b, qi, ki: (b, qi, 0)),
            pl.BlockSpec((1, tkv, D), lambda b, qi, ki: (b, ki, 0)),
            pl.BlockSpec((1, tkv, D), lambda b, qi, ki: (b, ki, 0)),
        ]
        args = (q, k, v)

    return pl.pallas_call(
        kernel,
        grid=(B, n_q, n_kv),
        in_specs=in_specs,
        out_specs=pl.BlockSpec((1, tq, D), lambda b, qi, ki: (b, qi, 0)),
        out_shape=jax.ShapeDtypeStruct((B, S, D), jnp.bfloat16),
        scratch_shapes=[
            pltpu.VMEM((num_heads, tq, 1), jnp.float32),    # running max
            pltpu.VMEM((num_heads, tq, 1), jnp.float32),    # running sum
            pltpu.VMEM((num_heads, tq, d_k), jnp.float32),  # output accum
        ],
        compiler_params=pltpu.CompilerParams(
            dimension_semantics=("parallel", "parallel", "arbitrary"),
            vmem_limit_bytes=_VMEM_LIMIT),
    )(*args)


# -----------------------------------------------------------------------------
# Parameter initialization (matches the module's _init_weights semantics)
# -----------------------------------------------------------------------------
def _normal(key, shape, std=0.02):
    return (std * jax.random.normal(key, shape)).astype(jnp.float32)


def init_params(key, vocab_size, d_model, num_heads, num_layers,
                max_seq_length, d_ff):
    wdt = jnp.bfloat16
    keys = jax.random.split(key, 3 + num_layers)
    params = {
        # Embedding tables in bf16: halves gather HBM traffic.
        "tok_emb": _normal(keys[0], (vocab_size, d_model)).astype(jnp.bfloat16),
        "pos_emb": _normal(keys[1], (max_seq_length, d_model)).astype(jnp.bfloat16),
        "ln_f_g": jnp.ones((1, d_model), jnp.float32),
        "ln_f_b": jnp.zeros((1, d_model), jnp.float32),
        # nn.Linear(d_model, vocab, bias=False): weight (vocab, d_model),
        # stored transposed as (d_model, vocab) for y = x @ W^T.
        "w_out": _normal(keys[2], (vocab_size, d_model)).T.astype(wdt),
        "blocks": [],
    }
    for l in range(num_layers):
        bk = jax.random.split(keys[3 + l], 6)
        wq = _normal(bk[0], (d_model, d_model)).T
        wk = _normal(bk[1], (d_model, d_model)).T
        wv = _normal(bk[2], (d_model, d_model)).T
        blk = {
            "wqkv": jnp.concatenate([wq, wk, wv], axis=1).astype(wdt),
            "bqkv": jnp.zeros((1, 3 * d_model), jnp.float32),
            "wo": _normal(bk[3], (d_model, d_model)).T.astype(wdt),
            "bo": jnp.zeros((1, d_model), jnp.float32),
            "w1": _normal(bk[4], (d_ff, d_model)).T.astype(wdt),   # d_model->d_ff
            "b1": jnp.zeros((1, d_ff), jnp.float32),
            "w2": _normal(bk[5], (d_model, d_ff)).T.astype(wdt),   # d_ff->d_model
            "b2": jnp.zeros((1, d_model), jnp.float32),
            "ln1_g": jnp.ones((1, d_model), jnp.float32),
            "ln1_b": jnp.zeros((1, d_model), jnp.float32),
            "ln2_g": jnp.ones((1, d_model), jnp.float32),
            "ln2_b": jnp.zeros((1, d_model), jnp.float32),
        }
        params["blocks"].append(blk)
    return params


# -----------------------------------------------------------------------------
# Model forward (post-LN blocks, matching the reference PyTorch module)
# -----------------------------------------------------------------------------
def transformer_block(p, x, num_heads):
    B, S, D = x.shape
    x2 = x.reshape(B * S, D)                               # bf16 residual

    # Fused QKV projection.
    qkv = pallas_linear(x2, p["wqkv"], p["bqkv"])          # (B*S, 3D) bf16

    # Flash-blocked causal attention straight from the fused slab.
    attn = pallas_causal_attention(qkv.reshape(B, S, 3 * D), num_heads)

    # w_o projection with residual add + LayerNorm fused into its epilogue.
    x2 = pallas_linear_add_layernorm(attn.reshape(B * S, D), p["wo"], p["bo"],
                                     x2, p["ln1_g"], p["ln1_b"])

    # Feed-forward: GELU fused into the first matmul; add+LN fused into w2.
    h = pallas_linear(x2, p["w1"], p["b1"], activation="gelu")
    x2 = pallas_linear_add_layernorm(h, p["w2"], p["b2"],
                                     x2, p["ln2_g"], p["ln2_b"])
    return x2.reshape(B, S, D)


def gpt2_forward(params, input_ids, num_heads):
    B, S = input_ids.shape
    D = params["tok_emb"].shape[1]
    vocab = params["w_out"].shape[1]

    # Embedding lookups (gathers) in plain JAX, bf16 end to end.
    tok = jnp.take(params["tok_emb"], input_ids, axis=0)    # (B, S, D) bf16
    pos = params["pos_emb"][:S][None, :, :]                 # (1, S, D) bf16
    x = (tok + pos).astype(jnp.bfloat16)

    for blk in params["blocks"]:
        x = transformer_block(blk, x, num_heads)

    x2 = pallas_layernorm(x.reshape(B * S, D),
                          params["ln_f_g"], params["ln_f_b"])
    # Bias-free vocab projection; logits in f32.
    logits = pallas_linear(x2, params["w_out"], b=None, out_dtype=jnp.float32)
    return logits.reshape(B, S, vocab)


# -----------------------------------------------------------------------------
if __name__ == "__main__":
    # Small, forward-consistent config (d_model kept 128-lane aligned).
    vocab_size = 256
    d_model = 128
    num_heads = 4
    num_layers = 2
    max_seq_length = 64
    d_ff = 256
    batch, seq = 2, 16

    key = jax.random.PRNGKey(0)
    pkey, ikey = jax.random.split(key)
    params = init_params(pkey, vocab_size, d_model, num_heads, num_layers,
                         max_seq_length, d_ff)
    input_ids = jax.random.randint(ikey, (batch, seq), 0, vocab_size,
                                   dtype=jnp.int32)

    fwd = jax.jit(functools.partial(gpt2_forward, num_heads=num_heads))
    logits = fwd(params, input_ids)
    jax.block_until_ready(logits)

    assert logits.shape == (batch, seq, vocab_size)
    assert bool(jnp.all(jnp.isfinite(logits)))
    print("KERNEL_OK")
</pallas_src>

<mosaic_0001>
module attributes {stable_mosaic.version = 11 : i64} {
  func.func @kernel(%arg0: i32, %arg1: i32, %arg2: i32, %arg3: memref<32x128xbf16, #tpu.memory_space<vmem>>, %arg4: memref<128x384xbf16, #tpu.memory_space<vmem>>, %arg5: memref<1x384xf32, #tpu.memory_space<vmem>>, %arg6: memref<32x384xbf16, #tpu.memory_space<vmem>>, %arg7: memref<32x384xf32, #tpu.memory_space<vmem>>) attributes {dimension_semantics = [#tpu.dimension_semantics<parallel>, #tpu.dimension_semantics<parallel>, #tpu.dimension_semantics<arbitrary>], iteration_bounds = array<i64: 1, 1, 1>, scalar_prefetch = 0 : i64, scratch_operands = 1 : i64, tpu.core_type = #tpu.core_type<tc>, window_params = [{transform_indices = @transform_0, window_bounds = array<i64: 32, 128>}, {transform_indices = @transform_1, window_bounds = array<i64: 128, 384>}, {transform_indices = @transform_2, window_bounds = array<i64: 1, 384>}, {transform_indices = @transform_3, window_bounds = array<i64: 32, 384>}]} {
    %c0_i32 = arith.constant 0 : i32
    %0 = arith.cmpi eq, %arg2, %c0_i32 : i32
    %1 = arith.extui %0 : i1 to i32
    %c0_i32_0 = arith.constant 0 : i32
    %2 = arith.cmpi ne, %1, %c0_i32_0 : i32
    scf.if %2 {
      %cst_10 = arith.constant 0.000000e+00 : f32
      %12 = vector.broadcast %cst_10 : f32 to vector<32x384xf32>
      %c0_11 = arith.constant 0 : index
      %c0_12 = arith.constant 0 : index
      %13 = vector.load %arg7[%c0_11, %c0_12] : memref<32x384xf32, #tpu.memory_space<vmem>>, vector<32x384xf32>
      tpu.vector_store %arg7[%c0_11, %c0_12], %12 {strides = array<i32>} : memref<32x384xf32, #tpu.memory_space<vmem>>, vector<32x384xf32>,
    } else {
    }
    %c0 = arith.constant 0 : index
    %c0_1 = arith.constant 0 : index
    %3 = vector.load %arg7[%c0, %c0_1] : memref<32x384xf32, #tpu.memory_space<vmem>>, vector<32x384xf32>
    %c0_2 = arith.constant 0 : index
    %c0_3 = arith.constant 0 : index
    %4 = vector.load %arg3[%c0_2, %c0_3] : memref<32x128xbf16, #tpu.memory_space<vmem>>, vector<32x128xbf16>
    %c0_4 = arith.constant 0 : index
    %c0_5 = arith.constant 0 : index
    %5 = vector.load %arg4[%c0_4, %c0_5] : memref<128x384xbf16, #tpu.memory_space<vmem>>, vector<128x384xbf16>
    %cst = arith.constant dense<0.000000e+00> : vector<32x384xf32>
    %6 = tpu.matmul %4, %5, %cst {dimension_numbers = #tpu.dot_dimension_numbers<[1], [0], [0], [1], [0, 0, 1, 1], [], []>} : vector<32x128xbf16>, vector<128x384xbf16>, vector<32x384xf32> -> vector<32x384xf32>
    %7 = arith.addf %3, %6 : vector<32x384xf32>
    %c0_6 = arith.constant 0 : index
    %c0_7 = arith.constant 0 : index
    %8 = vector.load %arg7[%c0_6, %c0_7] : memref<32x384xf32, #tpu.memory_space<vmem>>, vector<32x384xf32>
    tpu.vector_store %arg7[%c0_6, %c0_7], %7 {strides = array<i32>} : memref<32x384xf32, #tpu.memory_space<vmem>>, vector<32x384xf32>,
    %c0_i32_8 = arith.constant 0 : i32
    %9 = arith.cmpi eq, %arg2, %c0_i32_8 : i32
    %10 = arith.extui %9 : i1 to i32
    %c0_i32_9 = arith.constant 0 : i32
    %11 = arith.cmpi ne, %10, %c0_i32_9 : i32
    scf.if %11 {
      %c0_10 = arith.constant 0 : index
      %c0_11 = arith.constant 0 : index
      %12 = vector.load %arg7[%c0_10, %c0_11] : memref<32x384xf32, #tpu.memory_space<vmem>>, vector<32x384xf32>
      %c0_12 = arith.constant 0 : index
      %c0_13 = arith.constant 0 : index
      %13 = vector.load %arg5[%c0_12, %c0_13] : memref<1x384xf32, #tpu.memory_space<vmem>>, vector<1x384xf32>
      %14 = vector.broadcast %13 : vector<1x384xf32> to vector<32x384xf32>
      %15 = arith.addf %12, %14 : vector<32x384xf32>
      %16 = arith.truncf %15 : vector<32x384xf32> to vector<32x384xbf16>
      %c0_14 = arith.constant 0 : index
      %c0_15 = arith.constant 0 : index
      %17 = vector.load %arg6[%c0_14, %c0_15] : memref<32x384xbf16, #tpu.memory_space<vmem>>, vector<32x384xbf16>
      tpu.vector_store %arg6[%c0_14, %c0_15], %16 {strides = array<i32>} : memref<32x384xbf16, #tpu.memory_space<vmem>>, vector<32x384xbf16>,
    } else {
    }
    return
  }
  func.func @transform_0(%arg0: i32, %arg1: i32, %arg2: i32) -> (i32, i32) {
    %c0_i32 = arith.constant 0 : i32
    return %arg0, %arg2 : i32, i32
  }
  func.func @transform_1(%arg0: i32, %arg1: i32, %arg2: i32) -> (i32, i32) {
    %c0_i32 = arith.constant 0 : i32
    return %arg2, %arg1 : i32, i32
  }
  func.func @transform_2(%arg0: i32, %arg1: i32, %arg2: i32) -> (i32, i32) {
    %c0_i32 = arith.constant 0 : i32
    %c0_i32_0 = arith.constant 0 : i32
    return %c0_i32, %arg1 : i32, i32
  }
  func.func @transform_3(%arg0: i32, %arg1: i32, %arg2: i32) -> (i32, i32) {
    %c0_i32 = arith.constant 0 : i32
    return %arg0, %arg1 : i32, i32
  }
}

module attributes {stable_mosaic.version = 11 : i64} {
  func.func @_flash_attn_kernel(%arg0: i32, %arg1: i32, %arg2: i32, %arg3: memref<1x16x128xbf16, #tpu.memory_space<vmem>>, %arg4: memref<1x16x128xbf16, #tpu.memory_space<vmem>>, %arg5: memref<1x16x128xbf16, #tpu.memory_space<vmem>>, %arg6: memref<1x16x128xbf16, #tpu.memory_space<vmem>>, %arg7: memref<4x16x1xf32, #tpu.memory_space<vmem>>, %arg8: memref<4x16x1xf32, #tpu.memory_space<vmem>>, %arg9: memref<4x16x32xf32, #tpu.memory_space<vmem>>) attributes {dimension_semantics = [#tpu.dimension_semantics<parallel>, #tpu.dimension_semantics<parallel>, #tpu.dimension_semantics<arbitrary>], iteration_bounds = array<i64: 2, 1, 1>, scalar_prefetch = 0 : i64, scratch_operands = 3 : i64, tpu.core_type = #tpu.core_type<tc>, window_params = [{transform_indices = @transform_0, window_bounds = array<i64: 1, 16, 128>}, {transform_indices = @transform_1, window_bounds = array<i64: 1, 16, 128>}, {transform_indices = @transform_2, window_bounds = array<i64: 1, 16, 128>}, {transform_indices = @transform_3, window_bounds = array<i64: 1, 16, 128>}]} {
    %c16_i32 = arith.constant 16 : i32
    %0 = arith.muli %arg1, %c16_i32 : i32
    %c16_i32_0 = arith.constant 16 : i32
    %1 = arith.muli %arg2, %c16_i32_0 : i32
    %c0_i32 = arith.constant 0 : i32
    %2 = arith.cmpi eq, %arg2, %c0_i32 : i32
    %3 = arith.extui %2 : i1 to i32
    %c0_i32_1 = arith.constant 0 : i32
    %4 = arith.cmpi ne, %3, %c0_i32_1 : i32
    scf.if %4 {
      %cst = arith.constant 0xFF800000 : f32
      %12 = vector.broadcast %cst : f32 to vector<4x16x1xf32>
      %c0 = arith.constant 0 : index
      %c0_5 = arith.constant 0 : index
      %c0_6 = arith.constant 0 : index
      %13 = vector.load %arg7[%c0, %c0_5, %c0_6] : memref<4x16x1xf32, #tpu.memory_space<vmem>>, vector<4x16x1xf32>
      tpu.vector_store %arg7[%c0, %c0_5, %c0_6], %12 {strides = array<i32>} : memref<4x16x1xf32, #tpu.memory_space<vmem>>, vector<4x16x1xf32>,
      %cst_7 = arith.constant 0.000000e+00 : f32
      %14 = vector.broadcast %cst_7 : f32 to vector<4x16x1xf32>
      %c0_8 = arith.constant 0 : index
      %c0_9 = arith.constant 0 : index
      %c0_10 = arith.constant 0 : index
      %15 = vector.load %arg8[%c0_8, %c0_9, %c0_10] : memref<4x16x1xf32, #tpu.memory_space<vmem>>, vector<4x16x1xf32>
      tpu.vector_store %arg8[%c0_8, %c0_9, %c0_10], %14 {strides = array<i32>} : memref<4x16x1xf32, #tpu.memory_space<vmem>>, vector<4x16x1xf32>,
      %cst_11 = arith.constant 0.000000e+00 : f32
      %16 = vector.broadcast %cst_11 : f32 to vector<4x16x32xf32>
      %c0_12 = arith.constant 0 : index
      %c0_13 = arith.constant 0 : index
      %c0_14 = arith.constant 0 : index
      %17 = vector.load %arg9[%c0_12, %c0_13, %c0_14] : memref<4x16x32xf32, #tpu.memory_space<vmem>>, vector<4x16x32xf32>
      tpu.vector_store %arg9[%c0_12, %c0_13, %c0_14], %16 {strides = array<i32>} : memref<4x16x32xf32, #tpu.memory_space<vmem>>, vector<4x16x32xf32>,
    } else {
    }
    %c15_i32 = arith.constant 15 : i32
    %5 = arith.addi %0, %c15_i32 : i32
    %6 = arith.cmpi sle, %1, %5 : i32
    %7 = arith.extui %6 : i1 to i32
    %c0_i32_2 = arith.constant 0 : i32
    %8 = arith.cmpi ne, %7, %c0_i32_2 : i32
    scf.if %8 {
      %c0 = arith.constant 0 : index
      %c0_5 = arith.constant 0 : index
      %c0_6 = arith.constant 0 : index
      %12 = vector.load %arg3[%c0, %c0_5, %c0_6] : memref<1x16x128xbf16, #tpu.memory_space<vmem>>, vector<1x16x128xbf16>
      %13 = vector.shape_cast %12 : vector<1x16x128xbf16> to vector<16x128xbf16>
      %c0_7 = arith.constant 0 : index
      %c0_8 = arith.constant 0 : index
      %c0_9 = arith.constant 0 : index
      %14 = vector.load %arg4[%c0_7, %c0_8, %c0_9] : memref<1x16x128xbf16, #tpu.memory_space<vmem>>, vector<1x16x128xbf16>
      %15 = vector.shape_cast %14 : vector<1x16x128xbf16> to vector<16x128xbf16>
      %c0_10 = arith.constant 0 : index
      %c0_11 = arith.constant 0 : index
      %c0_12 = arith.constant 0 : index
      %16 = vector.load %arg5[%c0_10, %c0_11, %c0_12] : memref<1x16x128xbf16, #tpu.memory_space<vmem>>, vector<1x16x128xbf16>
      %17 = vector.shape_cast %16 : vector<1x16x128xbf16> to vector<16x128xbf16>
      %18 = tpu.iota {dimensions = array<i32: 0>} : vector<16x16xi32>
      %19 = vector.broadcast %0 : i32 to vector<16x16xi32>
      %20 = arith.addi %19, %18 : vector<16x16xi32>
      %21 = tpu.iota {dimensions = array<i32: 1>} : vector<16x16xi32>
      %22 = vector.broadcast %1 : i32 to vector<16x16xi32>
      %23 = arith.addi %22, %21 : vector<16x16xi32>
      %24 = arith.cmpi sle, %23, %20 : vector<16x16xi32>
      %25 = vector.extract_strided_slice %13 {offsets = [0, 0], sizes = [16, 32], strides = [1, 1]} : vector<16x128xbf16> to vector<16x32xbf16>
      %26 = vector.extract_strided_slice %15 {offsets = [0, 0], sizes = [16, 32], strides = [1, 1]} : vector<16x128xbf16> to vector<16x32xbf16>
      %cst = arith.constant dense<0.000000e+00> : vector<16x16xf32>
      %27 = tpu.matmul %25, %26, %cst {dimension_numbers = #tpu.dot_dimension_numbers<[1], [1], [0], [0], [0, 0, 1, 0], [], []>} : vector<16x32xbf16>, vector<16x32xbf16>, vector<16x16xf32> -> vector<16x16xf32>
      %cst_13 = arith.constant 0.176776692 : f32
      %28 = vector.broadcast %cst_13 : f32 to vector<16x16xf32>
      %29 = arith.mulf %27, %28 : vector<16x16xf32>
      %cst_14 = arith.constant -1.000000e+09 : f32
      %30 = vector.broadcast %cst_14 : f32 to vector<16x16xf32>
      %31 = arith.select %24, %29, %30 : vector<16x16xi1>, vector<16x16xf32>
      %c0_15 = arith.constant 0 : index
      %c0_16 = arith.constant 0 : index
      %c0_17 = arith.constant 0 : index
      %32 = vector.load %arg7[%c0_15, %c0_16, %c0_17] : memref<4x16x1xf32, #tpu.memory_space<vmem>>, vector<1x16x1xf32>
      %33 = vector.shape_cast %32 : vector<1x16x1xf32> to vector<16x1xf32>
      %cst_18 = arith.constant dense<0xFF800000> : vector<16xf32>
      %34 = vector.multi_reduction <maximumf>, %31, %cst_18 [1] : vector<16x16xf32> to vector<16xf32>
      %35 = vector.shape_cast %34 : vector<16xf32> to vector<16x1xf32>
      %36 = arith.maximumf %33, %35 : vector<16x1xf32>
      %37 = arith.subf %33, %36 : vector<16x1xf32>
      %38 = math.exp %37 : vector<16x1xf32>
      %39 = vector.broadcast %36 : vector<16x1xf32> to vector<16x16xf32>
      %40 = arith.subf %31, %39 : vector<16x16xf32>
      %41 = math.exp %40 : vector<16x16xf32>
      %c0_19 = arith.constant 0 : index
      %c0_20 = arith.constant 0 : index
      %c0_21 = arith.constant 0 : index
      %42 = vector.load %arg8[%c0_19, %c0_20, %c0_21] : memref<4x16x1xf32, #tpu.memory_space<vmem>>, vector<1x16x1xf32>
      %43 = vector.shape_cast %42 : vector<1x16x1xf32> to vector<16x1xf32>
      %44 = arith.mulf %38, %43 : vector<16x1xf32>
      %cst_22 = arith.constant dense<0.000000e+00> : vector<16xf32>
      %45 = vector.multi_reduction <add>, %41, %cst_22 [1] : vector<16x16xf32> to vector<16xf32>
      %46 = vector.shape_cast %45 : vector<16xf32> to vector<16x1xf32>
      %47 = arith.addf %44, %46 : vector<16x1xf32>
      %c0_23 = arith.constant 0 : index
      %c0_24 = arith.constant 0 : index
      %c0_25 = arith.constant 0 : index
      %48 = vector.load %arg8[%c0_23, %c0_24, %c0_25] : memref<4x16x1xf32, #tpu.memory_space<vmem>>, vector<1x16x1xf32>
      %49 = vector.shape_cast %48 : vector<1x16x1xf32> to vector<16x1xf32>
      %50 = vector.shape_cast %47 : vector<16x1xf32> to vector<1x16x1xf32>
      tpu.vector_store %arg8[%c0_23, %c0_24, %c0_25], %50 {strides = array<i32>} : memref<4x16x1xf32, #tpu.memory_space<vmem>>, vector<1x16x1xf32>,
      %c0_26 = arith.constant 0 : index
      %c0_27 = arith.constant 0 : index
      %c0_28 = arith.constant 0 : index
      %51 = vector.load %arg9[%c0_26, %c0_27, %c0_28] : memref<4x16x32xf32, #tpu.memory_space<vmem>>, vector<1x16x32xf32>
      %52 = vector.shape_cast %51 : vector<1x16x32xf32> to vector<16x32xf32>
      %53 = vector.broadcast %38 : vector<16x1xf32> to vector<16x32xf32>
      %54 = arith.mulf %53, %52 : vector<16x32xf32>
      %55 = arith.truncf %41 : vector<16x16xf32> to vector<16x16xbf16>
      %56 = vector.extract_strided_slice %17 {offsets = [0, 0], sizes = [16, 32], strides = [1, 1]} : vector<16x128xbf16> to vector<16x32xbf16>
      %cst_29 = arith.constant dense<0.000000e+00> : vector<16x32xf32>
      %57 = tpu.matmul %55, %56, %cst_29 {dimension_numbers = #tpu.dot_dimension_numbers<[1], [0], [0], [1], [0, 0, 1, 1], [], []>} : vector<16x16xbf16>, vector<16x32xbf16>, vector<16x32xf32> -> vector<16x32xf32>
      %58 = arith.addf %54, %57 : vector<16x32xf32>
      %c0_30 = arith.constant 0 : index
      %c0_31 = arith.constant 0 : index
      %c0_32 = arith.constant 0 : index
      %59 = vector.load %arg9[%c0_30, %c0_31, %c0_32] : memref<4x16x32xf32, #tpu.memory_space<vmem>>, vector<1x16x32xf32>
      %60 = vector.shape_cast %59 : vector<1x16x32xf32> to vector<16x32xf32>
      %61 = vector.shape_cast %58 : vector<16x32xf32> to vector<1x16x32xf32>
      tpu.vector_store %arg9[%c0_30, %c0_31, %c0_32], %61 {strides = array<i32>} : memref<4x16x32xf32, #tpu.memory_space<vmem>>, vector<1x16x32xf32>,
      %c0_33 = arith.constant 0 : index
      %c0_34 = arith.constant 0 : index
      %c0_35 = arith.constant 0 : index
      %62 = vector.load %arg7[%c0_33, %c0_34, %c0_35] : memref<4x16x1xf32, #tpu.memory_space<vmem>>, vector<1x16x1xf32>
      %63 = vector.shape_cast %62 : vector<1x16x1xf32> to vector<16x1xf32>
      %64 = vector.shape_cast %36 : vector<16x1xf32> to vector<1x16x1xf32>
      tpu.vector_store %arg7[%c0_33, %c0_34, %c0_35], %64 {strides = array<i32>} : memref<4x16x1xf32, #tpu.memory_space<vmem>>, vector<1x16x1xf32>,
      %65 = vector.extract_strided_slice %13 {offsets = [0, 32], sizes = [16, 32], strides = [1, 1]} : vector<16x128xbf16> to vector<16x32xbf16>
      %66 = vector.extract_strided_slice %15 {offsets = [0, 32], sizes = [16, 32], strides = [1, 1]} : vector<16x128xbf16> to vector<16x32xbf16>
      %cst_36 = arith.constant dense<0.000000e+00> : vector<16x16xf32>
      %67 = tpu.matmul %65, %66, %cst_36 {dimension_numbers = #tpu.dot_dimension_numbers<[1], [1], [0], [0], [0, 0, 1, 0], [], []>} : vector<16x32xbf16>, vector<16x32xbf16>, vector<16x16xf32> -> vector<16x16xf32>
      %cst_37 = arith.constant 0.176776692 : f32
      %68 = vector.broadcast %cst_37 : f32 to vector<16x16xf32>
      %69 = arith.mulf %67, %68 : vector<16x16xf32>
      %cst_38 = arith.constant -1.000000e+09 : f32
      %70 = vector.broadcast %cst_38 : f32 to vector<16x16xf32>
      %71 = arith.select %24, %69, %70 : vector<16x16xi1>, vector<16x16xf32>
      %c1 = arith.constant 1 : index
      %c0_39 = arith.constant 0 : index
      %c0_40 = arith.constant 0 : index
      %72 = vector.load %arg7[%c1, %c0_39, %c0_40] : memref<4x16x1xf32, #tpu.memory_space<vmem>>, vector<1x16x1xf32>
      %73 = vector.shape_cast %72 : vector<1x16x1xf32> to vector<16x1xf32>
      %cst_41 = arith.constant dense<0xFF800000> : vector<16xf32>
      %74 = vector.multi_reduction <maximumf>, %71, %cst_41 [1] : vector<16x16xf32> to vector<16xf32>
      %75 = vector.shape_cast %74 : vector<16xf32> to vector<16x1xf32>
      %76 = arith.maximumf %73, %75 : vector<16x1xf32>
      %77 = arith.subf %73, %76 : vector<16x1xf32>
      %78 = math.exp %77 : vector<16x1xf32>
      %79 = vector.broadcast %76 : vector<16x1xf32> to vector<16x16xf32>
      %80 = arith.subf %71, %79 : vector<16x16xf32>
      %81 = math.exp %80 : vector<16x16xf32>
      %c1_42 = arith.constant 1 : index
      %c0_43 = arith.constant 0 : index
      %c0_44 = arith.constant 0 : index
      %82 = vector.load %arg8[%c1_42, %c0_43, %c0_44] : memref<4x16x1xf32, #tpu.memory_space<vmem>>, vector<1x16x1xf32>
      %83 = vector.shape_cast %82 : vector<1x16x1xf32> to vector<16x1xf32>
      %84 = arith.mulf %78, %83 : vector<16x1xf32>
      %cst_45 = arith.constant dense<0.000000e+00> : vector<16xf32>
      %85 = vector.multi_reduction <add>, %81, %cst_45 [1] : vector<16x16xf32> to vector<16xf32>
      %86 = vector.shape_cast %85 : vector<16xf32> to vector<16x1xf32>
      %87 = arith.addf %84, %86 : vector<16x1xf32>
      %c1_46 = arith.constant 1 : index
      %c0_47 = arith.constant 0 : index
      %c0_48 = arith.constant 0 : index
      %88 = vector.load %arg8[%c1_46, %c0_47, %c0_48] : memref<4x16x1xf32, #tpu.memory_space<vmem>>, vector<1x16x1xf32>
      %89 = vector.shape_cast %88 : vector<1x16x1xf32> to vector<16x1xf32>
      %90 = vector.shape_cast %87 : vector<16x1xf32> to vector<1x16x1xf32>
      tpu.vector_store %arg8[%c1_46, %c0_47, %c0_48], %90 {strides = array<i32>} : memref<4x16x1xf32, #tpu.memory_space<vmem>>, vector<1x16x1xf32>,
      %c1_49 = arith.constant 1 : index
      %c0_50 = arith.constant 0 : index
      %c0_51 = arith.constant 0 : index
      %91 = vector.load %arg9[%c1_49, %c0_50, %c0_51] : memref<4x16x32xf32, #tpu.memory_space<vmem>>, vector<1x16x32xf32>
      %92 = vector.shape_cast %91 : vector<1x16x32xf32> to vector<16x32xf32>
      %93 = vector.broadcast %78 : vector<16x1xf32> to vector<16x32xf32>
      %94 = arith.mulf %93, %92 : vector<16x32xf32>
      %95 = arith.truncf %81 : vector<16x16xf32> to vector<16x16xbf16>
      %96 = vector.extract_strided_slice %17 {offsets = [0, 32], sizes = [16, 32], strides = [1, 1]} : vector<16x128xbf16> to vector<16x32xbf16>
      %cst_52 = arith.constant dense<0.000000e+00> : vector<16x32xf32>
      %97 = tpu.matmul %95, %96, %cst_52 {dimension_numbers = #tpu.dot_dimension_numbers<[1], [0], [0], [1], [0, 0, 1, 1], [], []>} : vector<16x16xbf16>, vector<16x32xbf16>, vector<16x32xf32> -> vector<16x32xf32>
      %98 = arith.addf %94, %97 : vector<16x32xf32>
      %c1_53 = arith.constant 1 : index
      %c0_54 = arith.constant 0 : index
      %c0_55 = arith.constant 0 : index
      %99 = vector.load %arg9[%c1_53, %c0_54, %c0_55] : memref<4x16x32xf32, #tpu.memory_space<vmem>>, vector<1x16x32xf32>
      %100 = vector.shape_cast %99 : vector<1x16x32xf32> to vector<16x32xf32>
      %101 = vector.shape_cast %98 : vector<16x32xf32> to vector<1x16x32xf32>
      tpu.vector_store %arg9[%c1_53, %c0_54, %c0_55], %101 {strides = array<i32>} : memref<4x16x32xf32, #tpu.memory_space<vmem>>, vector<1x16x32xf32>,
      %c1_56 = arith.constant 1 : index
      %c0_57 = arith.constant 0 : index
      %c0_58 = arith.constant 0 : index
      %102 = vector.load %arg7[%c1_56, %c0_57, %c0_58] : memref<4x16x1xf32, #tpu.memory_space<vmem>>, vector<1x16x1xf32>
      %103 = vector.shape_cast %102 : vector<1x16x1xf32> to vector<16x1xf32>
      %104 = vector.shape_cast %76 : vector<16x1xf32> to vector<1x16x1xf32>
      tpu.vector_store %arg7[%c1_56, %c0_57, %c0_58], %104 {strides = array<i32>} : memref<4x16x1xf32, #tpu.memory_space<vmem>>, vector<1x16x1xf32>,
      %105 = vector.extract_strided_slice %13 {offsets = [0, 64], sizes = [16, 32], strides = [1, 1]} : vector<16x128xbf16> to vector<16x32xbf16>
      %106 = vector.extract_strided_slice %15 {offsets = [0, 64], sizes = [16, 32], strides = [1, 1]} : vector<16x128xbf16> to vector<16x32xbf16>
      %cst_59 = arith.constant dense<0.000000e+00> : vector<16x16xf32>
      %107 = tpu.matmul %105, %106, %cst_59 {dimension_numbers = #tpu.dot_dimension_numbers<[1], [1], [0], [0], [0, 0, 1, 0], [], []>} : vector<16x32xbf16>, vector<16x32xbf16>, vector<16x16xf32> -> vector<16x16xf32>
      %cst_60 = arith.constant 0.176776692 : f32
      %108 = vector.broadcast %cst_60 : f32 to vector<16x16xf32>
      %109 = arith.mulf %107, %108 : vector<16x16xf32>
      %cst_61 = arith.constant -1.000000e+09 : f32
      %110 = vector.broadcast %cst_61 : f32 to vector<16x16xf32>
      %111 = arith.select %24, %109, %110 : vector<16x16xi1>, vector<16x16xf32>
      %c2 = arith.constant 2 : index
      %c0_62 = arith.constant 0 : index
      %c0_63 = arith.constant 0 : index
      %112 = vector.load %arg7[%c2, %c0_62, %c0_63] : memref<4x16x1xf32, #tpu.memory_space<vmem>>, vector<1x16x1xf32>
      %113 = vector.shape_cast %112 : vector<1x16x1xf32> to vector<16x1xf32>
      %cst_64 = arith.constant dense<0xFF800000> : vector<16xf32>
      %114 = vector.multi_reduction <maximumf>, %111, %cst_64 [1] : vector<16x16xf32> to vector<16xf32>
      %115 = vector.shape_cast %114 : vector<16xf32> to vector<16x1xf32>
      %116 = arith.maximumf %113, %115 : vector<16x1xf32>
      %117 = arith.subf %113, %116 : vector<16x1xf32>
      %118 = math.exp %117 : vector<16x1xf32>
      %119 = vector.broadcast %116 : vector<16x1xf32> to vector<16x16xf32>
      %120 = arith.subf %111, %119 : vector<16x16xf32>
      %121 = math.exp %120 : vector<16x16xf32>
      %c2_65 = arith.constant 2 : index
      %c0_66 = arith.constant 0 : index
      %c0_67 = arith.constant 0 : index
      %122 = vector.load %arg8[%c2_65, %c0_66, %c0_67] : memref<4x16x1xf32, #tpu.memory_space<vmem>>, vector<1x16x1xf32>
      %123 = vector.shape_cast %122 : vector<1x16x1xf32> to vector<16x1xf32>
      %124 = arith.mulf %118, %123 : vector<16x1xf32>
      %cst_68 = arith.constant dense<0.000000e+00> : vector<16xf32>
      %125 = vector.multi_reduction <add>, %121, %cst_68 [1] : vector<16x16xf32> to vector<16xf32>
      %126 = vector.shape_cast %125 : vector<16xf32> to vector<16x1xf32>
      %127 = arith.addf %124, %126 : vector<16x1xf32>
      %c2_69 = arith.constant 2 : index
      %c0_70 = arith.constant 0 : index
      %c0_71 = arith.constant 0 : index
      %128 = vector.load %arg8[%c2_69, %c0_70, %c0_71] : memref<4x16x1xf32, #tpu.memory_space<vmem>>, vector<1x16x1xf32>
      %129 = vector.shape_cast %128 : vector<1x16x1xf32> to vector<16x1xf32>
      %130 = vector.shape_cast %127 : vector<16x1xf32> to vector<1x16x1xf32>
      tpu.vector_store %arg8[%c2_69, %c0_70, %c0_71], %130 {strides = array<i32>} : memref<4x16x1xf32, #tpu.memory_space<vmem>>, vector<1x16x1xf32>,
      %c2_72 = arith.constant 2 : index
      %c0_73 = arith.constant 0 : index
      %c0_74 = arith.constant 0 : index
      %131 = vector.load %arg9[%c2_72, %c0_73, %c0_74] : memref<4x16x32xf32, #tpu.memory_space<vmem>>, vector<1x16x32xf32>
      %132 = vector.shape_cast %131 : vector<1x16x32xf32> to vector<16x32xf32>
      %133 = vector.broadcast %118 : vector<16x1xf32> to vector<16x32xf32>
      %134 = arith.mulf %133, %132 : vector<16x32xf32>
      %135 = arith.truncf %121 : vector<16x16xf32> to vector<16x16xbf16>
      %136 = vector.extract_strided_slice %17 {offsets = [0, 64], sizes = [16, 32], strides = [1, 1]} : vector<16x128xbf16> to vector<16x32xbf16>
      %cst_75 = arith.constant dense<0.000000e+00> : vector<16x32xf32>
      %137 = tpu.matmul %135, %136, %cst_75 {dimension_numbers = #tpu.dot_dimension_numbers<[1], [0], [0], [1], [0, 0, 1, 1], [], []>} : vector<16x16xbf16>, vector<16x32xbf16>, vector<16x32xf32> -> vector<16x32xf32>
      %138 = arith.addf %134, %137 : vector<16x32xf32>
      %c2_76 = arith.constant 2 : index
      %c0_77 = arith.constant 0 : index
      %c0_78 = arith.constant 0 : index
      %139 = vector.load %arg9[%c2_76, %c0_77, %c0_78] : memref<4x16x32xf32, #tpu.memory_space<vmem>>, vector<1x16x32xf32>
      %140 = vector.shape_cast %139 : vector<1x16x32xf32> to vector<16x32xf32>
      %141 = vector.shape_cast %138 : vector<16x32xf32> to vector<1x16x32xf32>
      tpu.vector_store %arg9[%c2_76, %c0_77, %c0_78], %141 {strides = array<i32>} : memref<4x16x32xf32, #tpu.memory_space<vmem>>, vector<1x16x32xf32>,
      %c2_79 = arith.constant 2 : index
      %c0_80 = arith.constant 0 : index
      %c0_81 = arith.constant 0 : index
      %142 = vector.load %arg7[%c2_79, %c0_80, %c0_81] : memref<4x16x1xf32, #tpu.memory_space<vmem>>, vector<1x16x1xf32>
      %143 = vector.shape_cast %142 : vector<1x16x1xf32> to vector<16x1xf32>
      %144 = vector.shape_cast %116 : vector<16x1xf32> to vector<1x16x1xf32>
      tpu.vector_store %arg7[%c2_79, %c0_80, %c0_81], %144 {strides = array<i32>} : memref<4x16x1xf32, #tpu.memory_space<vmem>>, vector<1x16x1xf32>,
      %145 = vector.extract_strided_slice %13 {offsets = [0, 96], sizes = [16, 32], strides = [1, 1]} : vector<16x128xbf16> to vector<16x32xbf16>
      %146 = vector.extract_strided_slice %15 {offsets = [0, 96], sizes = [16, 32], strides = [1, 1]} : vector<16x128xbf16> to vector<16x32xbf16>
      %cst_82 = arith.constant dense<0.000000e+00> : vector<16x16xf32>
      %147 = tpu.matmul %145, %146, %cst_82 {dimension_numbers = #tpu.dot_dimension_numbers<[1], [1], [0], [0], [0, 0, 1, 0], [], []>} : vector<16x32xbf16>, vector<16x32xbf16>, vector<16x16xf32> -> vector<16x16xf32>
      %cst_83 = arith.constant 0.176776692 : f32
      %148 = vector.broadcast %cst_83 : f32 to vector<16x16xf32>
      %149 = arith.mulf %147, %148 : vector<16x16xf32>
      %cst_84 = arith.constant -1.000000e+09 : f32
      %150 = vector.broadcast %cst_84 : f32 to vector<16x16xf32>
      %151 = arith.select %24, %149, %150 : vector<16x16xi1>, vector<16x16xf32>
      %c3 = arith.constant 3 : index
      %c0_85 = arith.constant 0 : index
      %c0_86 = arith.constant 0 : index
      %152 = vector.load %arg7[%c3, %c0_85, %c0_86] : memref<4x16x1xf32, #tpu.memory_space<vmem>>, vector<1x16x1xf32>
      %153 = vector.shape_cast %152 : vector<1x16x1xf32> to vector<16x1xf32>
      %cst_87 = arith.constant dense<0xFF800000> : vector<16xf32>
      %154 = vector.multi_reduction <maximumf>, %151, %cst_87 [1] : vector<16x16xf32> to vector<16xf32>
      %155 = vector.shape_cast %154 : vector<16xf32> to vector<16x1xf32>
      %156 = arith.maximumf %153, %155 : vector<16x1xf32>
      %157 = arith.subf %153, %156 : vector<16x1xf32>
      %158 = math.exp %157 : vector<16x1xf32>
      %159 = vector.broadcast %156 : vector<16x1xf32> to vector<16x16xf32>
      %160 = arith.subf %151, %159 : vector<16x16xf32>
      %161 = math.exp %160 : vector<16x16xf32>
      %c3_88 = arith.constant 3 : index
      %c0_89 = arith.constant 0 : index
      %c0_90 = arith.constant 0 : index
      %162 = vector.load %arg8[%c3_88, %c0_89, %c0_90] : memref<4x16x1xf32, #tpu.memory_space<vmem>>, vector<1x16x1xf32>
      %163 = vector.shape_cast %162 : vector<1x16x1xf32> to vector<16x1xf32>
      %164 = arith.mulf %158, %163 : vector<16x1xf32>
      %cst_91 = arith.constant dense<0.000000e+00> : vector<16xf32>
      %165 = vector.multi_reduction <add>, %161, %cst_91 [1] : vector<16x16xf32> to vector<16xf32>
      %166 = vector.shape_cast %165 : vector<16xf32> to vector<16x1xf32>
      %167 = arith.addf %164, %166 : vector<16x1xf32>
      %c3_92 = arith.constant 3 : index
      %c0_93 = arith.constant 0 : index
      %c0_94 = arith.constant 0 : index
      %168 = vector.load %arg8[%c3_92, %c0_93, %c0_94] : memref<4x16x1xf32, #tpu.memory_space<vmem>>, vector<1x16x1xf32>
      %169 = vector.shape_cast %168 : vector<1x16x1xf32> to vector<16x1xf32>
      %170 = vector.shape_cast %167 : vector<16x1xf32> to vector<1x16x1xf32>
      tpu.vector_store %arg8[%c3_92, %c0_93, %c0_94], %170 {strides = array<i32>} : memref<4x16x1xf32, #tpu.memory_space<vmem>>, vector<1x16x1xf32>,
      %c3_95 = arith.constant 3 : index
      %c0_96 = arith.constant 0 : index
      %c0_97 = arith.constant 0 : index
      %171 = vector.load %arg9[%c3_95, %c0_96, %c0_97] : memref<4x16x32xf32, #tpu.memory_space<vmem>>, vector<1x16x32xf32>
      %172 = vector.shape_cast %171 : vector<1x16x32xf32> to vector<16x32xf32>
      %173 = vector.broadcast %158 : vector<16x1xf32> to vector<16x32xf32>
      %174 = arith.mulf %173, %172 : vector<16x32xf32>
      %175 = arith.truncf %161 : vector<16x16xf32> to vector<16x16xbf16>
      %176 = vector.extract_strided_slice %17 {offsets = [0, 96], sizes = [16, 32], strides = [1, 1]} : vector<16x128xbf16> to vector<16x32xbf16>
      %cst_98 = arith.constant dense<0.000000e+00> : vector<16x32xf32>
      %177 = tpu.matmul %175, %176, %cst_98 {dimension_numbers = #tpu.dot_dimension_numbers<[1], [0], [0], [1], [0, 0, 1, 1], [], []>} : vector<16x16xbf16>, vector<16x32xbf16>, vector<16x32xf32> -> vector<16x32xf32>
      %178 = arith.addf %174, %177 : vector<16x32xf32>
      %c3_99 = arith.constant 3 : index
      %c0_100 = arith.constant 0 : index
      %c0_101 = arith.constant 0 : index
      %179 = vector.load %arg9[%c3_99, %c0_100, %c0_101] : memref<4x16x32xf32, #tpu.memory_space<vmem>>, vector<1x16x32xf32>
      %180 = vector.shape_cast %179 : vector<1x16x32xf32> to vector<16x32xf32>
      %181 = vector.shape_cast %178 : vector<16x32xf32> to vector<1x16x32xf32>
      tpu.vector_store %arg9[%c3_99, %c0_100, %c0_101], %181 {strides = array<i32>} : memref<4x16x32xf32, #tpu.memory_space<vmem>>, vector<1x16x32xf32>,
      %c3_102 = arith.constant 3 : index
      %c0_103 = arith.constant 0 : index
      %c0_104 = arith.constant 0 : index
      %182 = vector.load %arg7[%c3_102, %c0_103, %c0_104] : memref<4x16x1xf32, #tpu.memory_space<vmem>>, vector<1x16x1xf32>
      %183 = vector.shape_cast %182 : vector<1x16x1xf32> to vector<16x1xf32>
      %184 = vector.shape_cast %156 : vector<16x1xf32> to vector<1x16x1xf32>
      tpu.vector_store %arg7[%c3_102, %c0_103, %c0_104], %184 {strides = array<i32>} : memref<4x16x1xf32, #tpu.memory_space<vmem>>, vector<1x16x1xf32>,
    } else {
    }
    %c0_i32_3 = arith.constant 0 : i32
    %9 = arith.cmpi eq, %arg2, %c0_i32_3 : i32
    %10 = arith.extui %9 : i1 to i32
    %c0_i32_4 = arith.constant 0 : i32
    %11 = arith.cmpi ne, %10, %c0_i32_4 : i32
    scf.if %11 {
      %c0 = arith.constant 0 : index
      %c0_5 = arith.constant 0 : index
      %c0_6 = arith.constant 0 : index
      %12 = vector.load %arg8[%c0, %c0_5, %c0_6] : memref<4x16x1xf32, #tpu.memory_space<vmem>>, vector<1x16x1xf32>
      %13 = vector.shape_cast %12 : vector<1x16x1xf32> to vector<16x1xf32>
      %14 = tpu.reciprocal %13 {approx = true} : vector<16x1xf32> -> vector<16x1xf32>
      %c0_7 = arith.constant 0 : index
      %c0_8 = arith.constant 0 : index
      %c0_9 = arith.constant 0 : index
      %15 = vector.load %arg9[%c0_7, %c0_8, %c0_9] : memref<4x16x32xf32, #tpu.memory_space<vmem>>, vector<1x16x32xf32>
      %16 = vector.shape_cast %15 : vector<1x16x32xf32> to vector<16x32xf32>
      %17 = vector.broadcast %14 : vector<16x1xf32> to vector<16x32xf32>
      %18 = arith.mulf %16, %17 : vector<16x32xf32>
      %19 = arith.truncf %18 : vector<16x32xf32> to vector<16x32xbf16>
      %c0_10 = arith.constant 0 : index
      %c0_11 = arith.constant 0 : index
      %c0_12 = arith.constant 0 : index
      %20 = vector.load %arg6[%c0_10, %c0_11, %c0_12] : memref<1x16x128xbf16, #tpu.memory_space<vmem>>, vector<1x16x32xbf16>
      %21 = vector.shape_cast %20 : vector<1x16x32xbf16> to vector<16x32xbf16>
      %22 = vector.shape_cast %19 : vector<16x32xbf16> to vector<1x16x32xbf16>
      tpu.vector_store %arg6[%c0_10, %c0_11, %c0_12], %22 {strides = array<i32>} : memref<1x16x128xbf16, #tpu.memory_space<vmem>>, vector<1x16x32xbf16>,
      %c1 = arith.constant 1 : index
      %c0_13 = arith.constant 0 : index
      %c0_14 = arith.constant 0 : index
      %23 = vector.load %arg8[%c1, %c0_13, %c0_14] : memref<4x16x1xf32, #tpu.memory_space<vmem>>, vector<1x16x1xf32>
      %24 = vector.shape_cast %23 : vector<1x16x1xf32> to vector<16x1xf32>
      %25 = tpu.reciprocal %24 {approx = true} : vector<16x1xf32> -> vector<16x1xf32>
      %c1_15 = arith.constant 1 : index
      %c0_16 = arith.constant 0 : index
      %c0_17 = arith.constant 0 : index
      %26 = vector.load %arg9[%c1_15, %c0_16, %c0_17] : memref<4x16x32xf32, #tpu.memory_space<vmem>>, vector<1x16x32xf32>
      %27 = vector.shape_cast %26 : vector<1x16x32xf32> to vector<16x32xf32>
      %28 = vector.broadcast %25 : vector<16x1xf32> to vector<16x32xf32>
      %29 = arith.mulf %27, %28 : vector<16x32xf32>
      %30 = arith.truncf %29 : vector<16x32xf32> to vector<16x32xbf16>
      %c0_18 = arith.constant 0 : index
      %c0_19 = arith.constant 0 : index
      %c32 = arith.constant 32 : index
      %31 = vector.load %arg6[%c0_18, %c0_19, %c32] : memref<1x16x128xbf16, #tpu.memory_space<vmem>>, vector<1x16x32xbf16>
      %32 = vector.shape_cast %31 : vector<1x16x32xbf16> to vector<16x32xbf16>
      %33 = vector.shape_cast %30 : vector<16x32xbf16> to vector<1x16x32xbf16>
      tpu.vector_store %arg6[%c0_18, %c0_19, %c32], %33 {strides = array<i32>} : memref<1x16x128xbf16, #tpu.memory_space<vmem>>, vector<1x16x32xbf16>,
      %c2 = arith.constant 2 : index
      %c0_20 = arith.constant 0 : index
      %c0_21 = arith.constant 0 : index
      %34 = vector.load %arg8[%c2, %c0_20, %c0_21] : memref<4x16x1xf32, #tpu.memory_space<vmem>>, vector<1x16x1xf32>
      %35 = vector.shape_cast %34 : vector<1x16x1xf32> to vector<16x1xf32>
      %36 = tpu.reciprocal %35 {approx = true} : vector<16x1xf32> -> vector<16x1xf32>
      %c2_22 = arith.constant 2 : index
      %c0_23 = arith.constant 0 : index
      %c0_24 = arith.constant 0 : index
      %37 = vector.load %arg9[%c2_22, %c0_23, %c0_24] : memref<4x16x32xf32, #tpu.memory_space<vmem>>, vector<1x16x32xf32>
      %38 = vector.shape_cast %37 : vector<1x16x32xf32> to vector<16x32xf32>
      %39 = vector.broadcast %36 : vector<16x1xf32> to vector<16x32xf32>
      %40 = arith.mulf %38, %39 : vector<16x32xf32>
      %41 = arith.truncf %40 : vector<16x32xf32> to vector<16x32xbf16>
      %c0_25 = arith.constant 0 : index
      %c0_26 = arith.constant 0 : index
      %c64 = arith.constant 64 : index
      %42 = vector.load %arg6[%c0_25, %c0_26, %c64] : memref<1x16x128xbf16, #tpu.memory_space<vmem>>, vector<1x16x32xbf16>
      %43 = vector.shape_cast %42 : vector<1x16x32xbf16> to vector<16x32xbf16>
      %44 = vector.shape_cast %41 : vector<16x32xbf16> to vector<1x16x32xbf16>
      tpu.vector_store %arg6[%c0_25, %c0_26, %c64], %44 {strides = array<i32>} : memref<1x16x128xbf16, #tpu.memory_space<vmem>>, vector<1x16x32xbf16>,
      %c3 = arith.constant 3 : index
      %c0_27 = arith.constant 0 : index
      %c0_28 = arith.constant 0 : index
      %45 = vector.load %arg8[%c3, %c0_27, %c0_28] : memref<4x16x1xf32, #tpu.memory_space<vmem>>, vector<1x16x1xf32>
      %46 = vector.shape_cast %45 : vector<1x16x1xf32> to vector<16x1xf32>
      %47 = tpu.reciprocal %46 {approx = true} : vector<16x1xf32> -> vector<16x1xf32>
      %c3_29 = arith.constant 3 : index
      %c0_30 = arith.constant 0 : index
      %c0_31 = arith.constant 0 : index
      %48 = vector.load %arg9[%c3_29, %c0_30, %c0_31] : memref<4x16x32xf32, #tpu.memory_space<vmem>>, vector<1x16x32xf32>
      %49 = vector.shape_cast %48 : vector<1x16x32xf32> to vector<16x32xf32>
      %50 = vector.broadcast %47 : vector<16x1xf32> to vector<16x32xf32>
      %51 = arith.mulf %49, %50 : vector<16x32xf32>
      %52 = arith.truncf %51 : vector<16x32xf32> to vector<16x32xbf16>
      %c0_32 = arith.constant 0 : index
      %c0_33 = arith.constant 0 : index
      %c96 = arith.constant 96 : index
      %53 = vector.load %arg6[%c0_32, %c0_33, %c96] : memref<1x16x128xbf16, #tpu.memory_space<vmem>>, vector<1x16x32xbf16>
      %54 = vector.shape_cast %53 : vector<1x16x32xbf16> to vector<16x32xbf16>
      %55 = vector.shape_cast %52 : vector<16x32xbf16> to vector<1x16x32xbf16>
      tpu.vector_store %arg6[%c0_32, %c0_33, %c96], %55 {strides = array<i32>} : memref<1x16x128xbf16, #tpu.memory_space<vmem>>, vector<1x16x32xbf16>,
    } else {
    }
    return
  }
  func.func @transform_0(%arg0: i32, %arg1: i32, %arg2: i32) -> (i32, i32, i32) {
    %c0_i32 = arith.constant 0 : i32
    %c0_i32_0 = arith.constant 0 : i32
    return %arg0, %arg1, %c0_i32 : i32, i32, i32
  }
  func.func @transform_1(%arg0: i32, %arg1: i32, %arg2: i32) -> (i32, i32, i32) {
    %c1_i32 = arith.constant 1 : i32
    %c0_i32 = arith.constant 0 : i32
    return %arg0, %arg2, %c1_i32 : i32, i32, i32
  }
  func.func @transform_2(%arg0: i32, %arg1: i32, %arg2: i32) -> (i32, i32, i32) {
    %c2_i32 = arith.constant 2 : i32
    %c0_i32 = arith.constant 0 : i32
    return %arg0, %arg2, %c2_i32 : i32, i32, i32
  }
  func.func @transform_3(%arg0: i32, %arg1: i32, %arg2: i32) -> (i32, i32, i32) {
    %c0_i32 = arith.constant 0 : i32
    %c0_i32_0 = arith.constant 0 : i32
    return %arg0, %arg1, %c0_i32 : i32, i32, i32
  }
}

module attributes {stable_mosaic.version = 11 : i64} {
  func.func @kernel(%arg0: i32, %arg1: i32, %arg2: i32, %arg3: memref<32x128xbf16, #tpu.memory_space<vmem>>, %arg4: memref<128x256xbf16, #tpu.memory_space<vmem>>, %arg5: memref<1x256xf32, #tpu.memory_space<vmem>>, %arg6: memref<32x256xbf16, #tpu.memory_space<vmem>>, %arg7: memref<32x256xf32, #tpu.memory_space<vmem>>) attributes {dimension_semantics = [#tpu.dimension_semantics<parallel>, #tpu.dimension_semantics<parallel>, #tpu.dimension_semantics<arbitrary>], iteration_bounds = array<i64: 1, 1, 1>, scalar_prefetch = 0 : i64, scratch_operands = 1 : i64, tpu.core_type = #tpu.core_type<tc>, window_params = [{transform_indices = @transform_0, window_bounds = array<i64: 32, 128>}, {transform_indices = @transform_1, window_bounds = array<i64: 128, 256>}, {transform_indices = @transform_2, window_bounds = array<i64: 1, 256>}, {transform_indices = @transform_3, window_bounds = array<i64: 32, 256>}]} {
    %c0_i32 = arith.constant 0 : i32
    %0 = arith.cmpi eq, %arg2, %c0_i32 : i32
    %1 = arith.extui %0 : i1 to i32
    %c0_i32_0 = arith.constant 0 : i32
    %2 = arith.cmpi ne, %1, %c0_i32_0 : i32
    scf.if %2 {
      %cst_10 = arith.constant 0.000000e+00 : f32
      %12 = vector.broadcast %cst_10 : f32 to vector<32x256xf32>
      %c0_11 = arith.constant 0 : index
      %c0_12 = arith.constant 0 : index
      %13 = vector.load %arg7[%c0_11, %c0_12] : memref<32x256xf32, #tpu.memory_space<vmem>>, vector<32x256xf32>
      tpu.vector_store %arg7[%c0_11, %c0_12], %12 {strides = array<i32>} : memref<32x256xf32, #tpu.memory_space<vmem>>, vector<32x256xf32>,
    } else {
    }
    %c0 = arith.constant 0 : index
    %c0_1 = arith.constant 0 : index
    %3 = vector.load %arg7[%c0, %c0_1] : memref<32x256xf32, #tpu.memory_space<vmem>>, vector<32x256xf32>
    %c0_2 = arith.constant 0 : index
    %c0_3 = arith.constant 0 : index
    %4 = vector.load %arg3[%c0_2, %c0_3] : memref<32x128xbf16, #tpu.memory_space<vmem>>, vector<32x128xbf16>
    %c0_4 = arith.constant 0 : index
    %c0_5 = arith.constant 0 : index
    %5 = vector.load %arg4[%c0_4, %c0_5] : memref<128x256xbf16, #tpu.memory_space<vmem>>, vector<128x256xbf16>
    %cst = arith.constant dense<0.000000e+00> : vector<32x256xf32>
    %6 = tpu.matmul %4, %5, %cst {dimension_numbers = #tpu.dot_dimension_numbers<[1], [0], [0], [1], [0, 0, 1, 1], [], []>} : vector<32x128xbf16>, vector<128x256xbf16>, vector<32x256xf32> -> vector<32x256xf32>
    %7 = arith.addf %3, %6 : vector<32x256xf32>
    %c0_6 = arith.constant 0 : index
    %c0_7 = arith.constant 0 : index
    %8 = vector.load %arg7[%c0_6, %c0_7] : memref<32x256xf32, #tpu.memory_space<vmem>>, vector<32x256xf32>
    tpu.vector_store %arg7[%c0_6, %c0_7], %7 {strides = array<i32>} : memref<32x256xf32, #tpu.memory_space<vmem>>, vector<32x256xf32>,
    %c0_i32_8 = arith.constant 0 : i32
    %9 = arith.cmpi eq, %arg2, %c0_i32_8 : i32
    %10 = arith.extui %9 : i1 to i32
    %c0_i32_9 = arith.constant 0 : i32
    %11 = arith.cmpi ne, %10, %c0_i32_9 : i32
    scf.if %11 {
      %c0_10 = arith.constant 0 : index
      %c0_11 = arith.constant 0 : index
      %12 = vector.load %arg7[%c0_10, %c0_11] : memref<32x256xf32, #tpu.memory_space<vmem>>, vector<32x256xf32>
      %c0_12 = arith.constant 0 : index
      %c0_13 = arith.constant 0 : index
      %13 = vector.load %arg5[%c0_12, %c0_13] : memref<1x256xf32, #tpu.memory_space<vmem>>, vector<1x256xf32>
      %14 = vector.broadcast %13 : vector<1x256xf32> to vector<32x256xf32>
      %15 = arith.addf %12, %14 : vector<32x256xf32>
      %cst_14 = arith.constant 5.000000e-01 : f32
      %16 = vector.broadcast %cst_14 : f32 to vector<32x256xf32>
      %17 = arith.mulf %16, %15 : vector<32x256xf32>
      %cst_15 = arith.constant 0.707106769 : f32
      %18 = vector.broadcast %cst_15 : f32 to vector<32x256xf32>
      %19 = arith.mulf %15, %18 : vector<32x256xf32>
      %20 = math.erf %19 : vector<32x256xf32>
      %cst_16 = arith.constant 1.000000e+00 : f32
      %21 = vector.broadcast %cst_16 : f32 to vector<32x256xf32>
      %22 = arith.addf %21, %20 : vector<32x256xf32>
      %23 = arith.mulf %17, %22 : vector<32x256xf32>
      %24 = arith.truncf %23 : vector<32x256xf32> to vector<32x256xbf16>
      %c0_17 = arith.constant 0 : index
      %c0_18 = arith.constant 0 : index
      %25 = vector.load %arg6[%c0_17, %c0_18] : memref<32x256xbf16, #tpu.memory_space<vmem>>, vector<32x256xbf16>
      tpu.vector_store %arg6[%c0_17, %c0_18], %24 {strides = array<i32>} : memref<32x256xbf16, #tpu.memory_space<vmem>>, vector<32x256xbf16>,
    } else {
    }
    return
  }
  func.func @transform_0(%arg0: i32, %arg1: i32, %arg2: i32) -> (i32, i32) {
    %c0_i32 = arith.constant 0 : i32
    return %arg0, %arg2 : i32, i32
  }
  func.func @transform_1(%arg0: i32, %arg1: i32, %arg2: i32) -> (i32, i32) {
    %c0_i32 = arith.constant 0 : i32
    return %arg2, %arg1 : i32, i32
  }
  func.func @transform_2(%arg0: i32, %arg1: i32, %arg2: i32) -> (i32, i32) {
    %c0_i32 = arith.constant 0 : i32
    %c0_i32_0 = arith.constant 0 : i32
    return %c0_i32, %arg1 : i32, i32
  }
  func.func @transform_3(%arg0: i32, %arg1: i32, %arg2: i32) -> (i32, i32) {
    %c0_i32 = arith.constant 0 : i32
    return %arg0, %arg1 : i32, i32
  }
}

module attributes {stable_mosaic.version = 11 : i64} {
  func.func @_linear_add_ln_kernel(%arg0: i32, %arg1: i32, %arg2: memref<32x128xbf16, #tpu.memory_space<vmem>>, %arg3: memref<128x128xbf16, #tpu.memory_space<vmem>>, %arg4: memref<1x128xf32, #tpu.memory_space<vmem>>, %arg5: memref<32x128xbf16, #tpu.memory_space<vmem>>, %arg6: memref<1x128xf32, #tpu.memory_space<vmem>>, %arg7: memref<1x128xf32, #tpu.memory_space<vmem>>, %arg8: memref<32x128xbf16, #tpu.memory_space<vmem>>, %arg9: memref<32x128xf32, #tpu.memory_space<vmem>>) attributes {dimension_semantics = [#tpu.dimension_semantics<parallel>, #tpu.dimension_semantics<arbitrary>], iteration_bounds = array<i64: 1, 1>, scalar_prefetch = 0 : i64, scratch_operands = 1 : i64, tpu.core_type = #tpu.core_type<tc>, window_params = [{transform_indices = @transform_0, window_bounds = array<i64: 32, 128>}, {transform_indices = @transform_1, window_bounds = array<i64: 128, 128>}, {pipeline_mode = #tpu.pipeline_mode<synchronous>, transform_indices = @transform_2, window_bounds = array<i64: 1, 128>}, {transform_indices = @transform_3, window_bounds = array<i64: 32, 128>}, {pipeline_mode = #tpu.pipeline_mode<synchronous>, transform_indices = @transform_4, window_bounds = array<i64: 1, 128>}, {pipeline_mode = #tpu.pipeline_mode<synchronous>, transform_indices = @transform_5, window_bounds = array<i64: 1, 128>}, {transform_indices = @transform_6, window_bounds = array<i64: 32, 128>}]} {
    %c0_i32 = arith.constant 0 : i32
    %0 = arith.cmpi eq, %arg1, %c0_i32 : i32
    %1 = arith.extui %0 : i1 to i32
    %c0_i32_0 = arith.constant 0 : i32
    %2 = arith.cmpi ne, %1, %c0_i32_0 : i32
    scf.if %2 {
      %cst_10 = arith.constant 0.000000e+00 : f32
      %12 = vector.broadcast %cst_10 : f32 to vector<32x128xf32>
      %c0_11 = arith.constant 0 : index
      %c0_12 = arith.constant 0 : index
      %13 = vector.load %arg9[%c0_11, %c0_12] : memref<32x128xf32, #tpu.memory_space<vmem>>, vector<32x128xf32>
      tpu.vector_store %arg9[%c0_11, %c0_12], %12 {strides = array<i32>} : memref<32x128xf32, #tpu.memory_space<vmem>>, vector<32x128xf32>,
    } else {
    }
    %c0 = arith.constant 0 : index
    %c0_1 = arith.constant 0 : index
    %3 = vector.load %arg9[%c0, %c0_1] : memref<32x128xf32, #tpu.memory_space<vmem>>, vector<32x128xf32>
    %c0_2 = arith.constant 0 : index
    %c0_3 = arith.constant 0 : index
    %4 = vector.load %arg2[%c0_2, %c0_3] : memref<32x128xbf16, #tpu.memory_space<vmem>>, vector<32x128xbf16>
    %c0_4 = arith.constant 0 : index
    %c0_5 = arith.constant 0 : index
    %5 = vector.load %arg3[%c0_4, %c0_5] : memref<128x128xbf16, #tpu.memory_space<vmem>>, vector<128x128xbf16>
    %cst = arith.constant dense<0.000000e+00> : vector<32x128xf32>
    %6 = tpu.matmul %4, %5, %cst {dimension_numbers = #tpu.dot_dimension_numbers<[1], [0], [0], [1], [0, 0, 1, 1], [], []>} : vector<32x128xbf16>, vector<128x128xbf16>, vector<32x128xf32> -> vector<32x128xf32>
    %7 = arith.addf %3, %6 : vector<32x128xf32>
    %c0_6 = arith.constant 0 : index
    %c0_7 = arith.constant 0 : index
    %8 = vector.load %arg9[%c0_6, %c0_7] : memref<32x128xf32, #tpu.memory_space<vmem>>, vector<32x128xf32>
    tpu.vector_store %arg9[%c0_6, %c0_7], %7 {strides = array<i32>} : memref<32x128xf32, #tpu.memory_space<vmem>>, vector<32x128xf32>,
    %c0_i32_8 = arith.constant 0 : i32
    %9 = arith.cmpi eq, %arg1, %c0_i32_8 : i32
    %10 = arith.extui %9 : i1 to i32
    %c0_i32_9 = arith.constant 0 : i32
    %11 = arith.cmpi ne, %10, %c0_i32_9 : i32
    scf.if %11 {
      %c0_10 = arith.constant 0 : index
      %c0_11 = arith.constant 0 : index
      %12 = vector.load %arg9[%c0_10, %c0_11] : memref<32x128xf32, #tpu.memory_space<vmem>>, vector<32x128xf32>
      %c0_12 = arith.constant 0 : index
      %c0_13 = arith.constant 0 : index
      %13 = vector.load %arg4[%c0_12, %c0_13] : memref<1x128xf32, #tpu.memory_space<vmem>>, vector<1x128xf32>
      %14 = vector.broadcast %13 : vector<1x128xf32> to vector<32x128xf32>
      %15 = arith.addf %12, %14 : vector<32x128xf32>
      %c0_14 = arith.constant 0 : index
      %c0_15 = arith.constant 0 : index
      %16 = vector.load %arg5[%c0_14, %c0_15] : memref<32x128xbf16, #tpu.memory_space<vmem>>, vector<32x128xbf16>
      %17 = arith.extf %16 : vector<32x128xbf16> to vector<32x128xf32>
      %18 = arith.addf %17, %15 : vector<32x128xf32>
      %cst_16 = arith.constant dense<0.000000e+00> : vector<32xf32>
      %19 = vector.multi_reduction <add>, %18, %cst_16 [1] : vector<32x128xf32> to vector<32xf32>
      %20 = vector.shape_cast %19 : vector<32xf32> to vector<32x1xf32>
      %cst_17 = arith.constant 1.280000e+02 : f32
      %21 = vector.broadcast %cst_17 : f32 to vector<32x1xf32>
      %22 = arith.divf %20, %21 : vector<32x1xf32>
      %23 = vector.broadcast %22 : vector<32x1xf32> to vector<32x128xf32>
      %24 = arith.subf %18, %23 : vector<32x128xf32>
      %25 = arith.mulf %24, %24 : vector<32x128xf32>
      %cst_18 = arith.constant dense<0.000000e+00> : vector<32xf32>
      %26 = vector.multi_reduction <add>, %25, %cst_18 [1] : vector<32x128xf32> to vector<32xf32>
      %27 = vector.shape_cast %26 : vector<32xf32> to vector<32x1xf32>
      %cst_19 = arith.constant 1.280000e+02 : f32
      %28 = vector.broadcast %cst_19 : f32 to vector<32x1xf32>
      %29 = arith.divf %27, %28 : vector<32x1xf32>
      %cst_20 = arith.constant 9.99999974E-6 : f32
      %30 = vector.broadcast %cst_20 : f32 to vector<32x1xf32>
      %31 = arith.addf %29, %30 : vector<32x1xf32>
      %32 = math.rsqrt %31 : vector<32x1xf32>
      %33 = vector.broadcast %22 : vector<32x1xf32> to vector<32x128xf32>
      %34 = arith.subf %18, %33 : vector<32x128xf32>
      %35 = vector.broadcast %32 : vector<32x1xf32> to vector<32x128xf32>
      %36 = arith.mulf %34, %35 : vector<32x128xf32>
      %c0_21 = arith.constant 0 : index
      %c0_22 = arith.constant 0 : index
      %37 = vector.load %arg6[%c0_21, %c0_22] : memref<1x128xf32, #tpu.memory_space<vmem>>, vector<1x128xf32>
      %38 = vector.broadcast %37 : vector<1x128xf32> to vector<32x128xf32>
      %39 = arith.mulf %36, %38 : vector<32x128xf32>
      %c0_23 = arith.constant 0 : index
      %c0_24 = arith.constant 0 : index
      %40 = vector.load %arg7[%c0_23, %c0_24] : memref<1x128xf32, #tpu.memory_space<vmem>>, vector<1x128xf32>
      %41 = vector.broadcast %40 : vector<1x128xf32> to vector<32x128xf32>
      %42 = arith.addf %39, %41 : vector<32x128xf32>
      %43 = arith.truncf %42 : vector<32x128xf32> to vector<32x128xbf16>
      %c0_25 = arith.constant 0 : index
      %c0_26 = arith.constant 0 : index
      %44 = vector.load %arg8[%c0_25, %c0_26] : memref<32x128xbf16, #tpu.memory_space<vmem>>, vector<32x128xbf16>
      tpu.vector_store %arg8[%c0_25, %c0_26], %43 {strides = array<i32>} : memref<32x128xbf16, #tpu.memory_space<vmem>>, vector<32x128xbf16>,
    } else {
    }
    return
  }
  func.func @transform_0(%arg0: i32, %arg1: i32) -> (i32, i32) {
    %c0_i32 = arith.constant 0 : i32
    return %arg0, %arg1 : i32, i32
  }
  func.func @transform_1(%arg0: i32, %arg1: i32) -> (i32, i32) {
    %c0_i32 = arith.constant 0 : i32
    %c0_i32_0 = arith.constant 0 : i32
    return %arg1, %c0_i32 : i32, i32
  }
  func.func @transform_2(%arg0: i32, %arg1: i32) -> (i32, i32) {
    %c0_i32 = arith.constant 0 : i32
    %c0_i32_0 = arith.constant 0 : i32
    %c0_i32_1 = arith.constant 0 : i32
    return %c0_i32, %c0_i32_0 : i32, i32
  }
  func.func @transform_3(%arg0: i32, %arg1: i32) -> (i32, i32) {
    %c0_i32 = arith.constant 0 : i32
    %c0_i32_0 = arith.constant 0 : i32
    return %arg0, %c0_i32 : i32, i32
  }
  func.func @transform_4(%arg0: i32, %arg1: i32) -> (i32, i32) {
    %c0_i32 = arith.constant 0 : i32
    %c0_i32_0 = arith.constant 0 : i32
    %c0_i32_1 = arith.constant 0 : i32
    return %c0_i32, %c0_i32_0 : i32, i32
  }
  func.func @transform_5(%arg0: i32, %arg1: i32) -> (i32, i32) {
    %c0_i32 = arith.constant 0 : i32
    %c0_i32_0 = arith.constant 0 : i32
    %c0_i32_1 = arith.constant 0 : i32
    return %c0_i32, %c0_i32_0 : i32, i32
  }
  func.func @transform_6(%arg0: i32, %arg1: i32) -> (i32, i32) {
    %c0_i32 = arith.constant 0 : i32
    %c0_i32_0 = arith.constant 0 : i32
    return %arg0, %c0_i32 : i32, i32
  }
}

module attributes {stable_mosaic.version = 11 : i64} {
  func.func @kernel(%arg0: i32, %arg1: i32, %arg2: i32, %arg3: memref<32x128xbf16, #tpu.memory_space<vmem>>, %arg4: memref<128x256xbf16, #tpu.memory_space<vmem>>, %arg5: memref<32x256xf32, #tpu.memory_space<vmem>>, %arg6: memref<32x256xf32, #tpu.memory_space<vmem>>) attributes {dimension_semantics = [#tpu.dimension_semantics<parallel>, #tpu.dimension_semantics<parallel>, #tpu.dimension_semantics<arbitrary>], iteration_bounds = array<i64: 1, 1, 1>, scalar_prefetch = 0 : i64, scratch_operands = 1 : i64, tpu.core_type = #tpu.core_type<tc>, window_params = [{transform_indices = @transform_0, window_bounds = array<i64: 32, 128>}, {transform_indices = @transform_1, window_bounds = array<i64: 128, 256>}, {transform_indices = @transform_2, window_bounds = array<i64: 32, 256>}]} {
    %c0_i32 = arith.constant 0 : i32
    %0 = arith.cmpi eq, %arg2, %c0_i32 : i32
    %1 = arith.extui %0 : i1 to i32
    %c0_i32_0 = arith.constant 0 : i32
    %2 = arith.cmpi ne, %1, %c0_i32_0 : i32
    scf.if %2 {
      %cst_10 = arith.constant 0.000000e+00 : f32
      %12 = vector.broadcast %cst_10 : f32 to vector<32x256xf32>
      %c0_11 = arith.constant 0 : index
      %c0_12 = arith.constant 0 : index
      %13 = vector.load %arg6[%c0_11, %c0_12] : memref<32x256xf32, #tpu.memory_space<vmem>>, vector<32x256xf32>
      tpu.vector_store %arg6[%c0_11, %c0_12], %12 {strides = array<i32>} : memref<32x256xf32, #tpu.memory_space<vmem>>, vector<32x256xf32>,
    } else {
    }
    %c0 = arith.constant 0 : index
    %c0_1 = arith.constant 0 : index
    %3 = vector.load %arg6[%c0, %c0_1] : memref<32x256xf32, #tpu.memory_space<vmem>>, vector<32x256xf32>
    %c0_2 = arith.constant 0 : index
    %c0_3 = arith.constant 0 : index
    %4 = vector.load %arg3[%c0_2, %c0_3] : memref<32x128xbf16, #tpu.memory_space<vmem>>, vector<32x128xbf16>
    %c0_4 = arith.constant 0 : index
    %c0_5 = arith.constant 0 : index
    %5 = vector.load %arg4[%c0_4, %c0_5] : memref<128x256xbf16, #tpu.memory_space<vmem>>, vector<128x256xbf16>
    %cst = arith.constant dense<0.000000e+00> : vector<32x256xf32>
    %6 = tpu.matmul %4, %5, %cst {dimension_numbers = #tpu.dot_dimension_numbers<[1], [0], [0], [1], [0, 0, 1, 1], [], []>} : vector<32x128xbf16>, vector<128x256xbf16>, vector<32x256xf32> -> vector<32x256xf32>
    %7 = arith.addf %3, %6 : vector<32x256xf32>
    %c0_6 = arith.constant 0 : index
    %c0_7 = arith.constant 0 : index
    %8 = vector.load %arg6[%c0_6, %c0_7] : memref<32x256xf32, #tpu.memory_space<vmem>>, vector<32x256xf32>
    tpu.vector_store %arg6[%c0_6, %c0_7], %7 {strides = array<i32>} : memref<32x256xf32, #tpu.memory_space<vmem>>, vector<32x256xf32>,
    %c0_i32_8 = arith.constant 0 : i32
    %9 = arith.cmpi eq, %arg2, %c0_i32_8 : i32
    %10 = arith.extui %9 : i1 to i32
    %c0_i32_9 = arith.constant 0 : i32
    %11 = arith.cmpi ne, %10, %c0_i32_9 : i32
    scf.if %11 {
      %c0_10 = arith.constant 0 : index
      %c0_11 = arith.constant 0 : index
      %12 = vector.load %arg6[%c0_10, %c0_11] : memref<32x256xf32, #tpu.memory_space<vmem>>, vector<32x256xf32>
      %c0_12 = arith.constant 0 : index
      %c0_13 = arith.constant 0 : index
      %13 = vector.load %arg5[%c0_12, %c0_13] : memref<32x256xf32, #tpu.memory_space<vmem>>, vector<32x256xf32>
      tpu.vector_store %arg5[%c0_12, %c0_13], %12 {strides = array<i32>} : memref<32x256xf32, #tpu.memory_space<vmem>>, vector<32x256xf32>,
    } else {
    }
    return
  }
  func.func @transform_0(%arg0: i32, %arg1: i32, %arg2: i32) -> (i32, i32) {
    %c0_i32 = arith.constant 0 : i32
    return %arg0, %arg2 : i32, i32
  }
  func.func @transform_1(%arg0: i32, %arg1: i32, %arg2: i32) -> (i32, i32) {
    %c0_i32 = arith.constant 0 : i32
    return %arg2, %arg1 : i32, i32
  }
  func.func @transform_2(%arg0: i32, %arg1: i32, %arg2: i32) -> (i32, i32) {
    %c0_i32 = arith.constant 0 : i32
    return %arg0, %arg1 : i32, i32
  }
}

module attributes {stable_mosaic.version = 11 : i64} {
  func.func @_layernorm_kernel(%arg0: i32, %arg1: memref<32x128xbf16, #tpu.memory_space<vmem>>, %arg2: memref<1x128xf32, #tpu.memory_space<vmem>>, %arg3: memref<1x128xf32, #tpu.memory_space<vmem>>, %arg4: memref<32x128xbf16, #tpu.memory_space<vmem>>) attributes {dimension_semantics = [#tpu.dimension_semantics<parallel>], iteration_bounds = array<i64: 1>, scalar_prefetch = 0 : i64, scratch_operands = 0 : i64, tpu.core_type = #tpu.core_type<tc>, window_params = [{transform_indices = @transform_0, window_bounds = array<i64: 32, 128>}, {pipeline_mode = #tpu.pipeline_mode<synchronous>, transform_indices = @transform_1, window_bounds = array<i64: 1, 128>}, {pipeline_mode = #tpu.pipeline_mode<synchronous>, transform_indices = @transform_2, window_bounds = array<i64: 1, 128>}, {transform_indices = @transform_3, window_bounds = array<i64: 32, 128>}]} {
    %c0 = arith.constant 0 : index
    %c0_0 = arith.constant 0 : index
    %0 = vector.load %arg1[%c0, %c0_0] : memref<32x128xbf16, #tpu.memory_space<vmem>>, vector<32x128xbf16>
    %1 = arith.extf %0 : vector<32x128xbf16> to vector<32x128xf32>
    %cst = arith.constant dense<0.000000e+00> : vector<32xf32>
    %2 = vector.multi_reduction <add>, %1, %cst [1] : vector<32x128xf32> to vector<32xf32>
    %3 = vector.shape_cast %2 : vector<32xf32> to vector<32x1xf32>
    %cst_1 = arith.constant 1.280000e+02 : f32
    %4 = vector.broadcast %cst_1 : f32 to vector<32x1xf32>
    %5 = arith.divf %3, %4 : vector<32x1xf32>
    %6 = vector.broadcast %5 : vector<32x1xf32> to vector<32x128xf32>
    %7 = arith.subf %1, %6 : vector<32x128xf32>
    %8 = arith.mulf %7, %7 : vector<32x128xf32>
    %cst_2 = arith.constant dense<0.000000e+00> : vector<32xf32>
    %9 = vector.multi_reduction <add>, %8, %cst_2 [1] : vector<32x128xf32> to vector<32xf32>
    %10 = vector.shape_cast %9 : vector<32xf32> to vector<32x1xf32>
    %cst_3 = arith.constant 1.280000e+02 : f32
    %11 = vector.broadcast %cst_3 : f32 to vector<32x1xf32>
    %12 = arith.divf %10, %11 : vector<32x1xf32>
    %cst_4 = arith.constant 9.99999974E-6 : f32
    %13 = vector.broadcast %cst_4 : f32 to vector<32x1xf32>
    %14 = arith.addf %12, %13 : vector<32x1xf32>
    %15 = math.rsqrt %14 : vector<32x1xf32>
    %16 = vector.broadcast %5 : vector<32x1xf32> to vector<32x128xf32>
    %17 = arith.subf %1, %16 : vector<32x128xf32>
    %18 = vector.broadcast %15 : vector<32x1xf32> to vector<32x128xf32>
    %19 = arith.mulf %17, %18 : vector<32x128xf32>
    %c0_5 = arith.constant 0 : index
    %c0_6 = arith.constant 0 : index
    %20 = vector.load %arg2[%c0_5, %c0_6] : memref<1x128xf32, #tpu.memory_space<vmem>>, vector<1x128xf32>
    %21 = vector.broadcast %20 : vector<1x128xf32> to vector<32x128xf32>
    %22 = arith.mulf %19, %21 : vector<32x128xf32>
    %c0_7 = arith.constant 0 : index
    %c0_8 = arith.constant 0 : index
    %23 = vector.load %arg3[%c0_7, %c0_8] : memref<1x128xf32, #tpu.memory_space<vmem>>, vector<1x128xf32>
    %24 = vector.broadcast %23 : vector<1x128xf32> to vector<32x128xf32>
    %25 = arith.addf %22, %24 : vector<32x128xf32>
    %26 = arith.truncf %25 : vector<32x128xf32> to vector<32x128xbf16>
    %c0_9 = arith.constant 0 : index
    %c0_10 = arith.constant 0 : index
    %27 = vector.load %arg4[%c0_9, %c0_10] : memref<32x128xbf16, #tpu.memory_space<vmem>>, vector<32x128xbf16>
    tpu.vector_store %arg4[%c0_9, %c0_10], %26 {strides = array<i32>} : memref<32x128xbf16, #tpu.memory_space<vmem>>, vector<32x128xbf16>,
    return
  }
  func.func @transform_0(%arg0: i32) -> (i32, i32) {
    %c0_i32 = arith.constant 0 : i32
    %c0_i32_0 = arith.constant 0 : i32
    return %arg0, %c0_i32 : i32, i32
  }
  func.func @transform_1(%arg0: i32) -> (i32, i32) {
    %c0_i32 = arith.constant 0 : i32
    %c0_i32_0 = arith.constant 0 : i32
    %c0_i32_1 = arith.constant 0 : i32
    return %c0_i32, %c0_i32_0 : i32, i32
  }
  func.func @transform_2(%arg0: i32) -> (i32, i32) {
    %c0_i32 = arith.constant 0 : i32
    %c0_i32_0 = arith.constant 0 : i32
    %c0_i32_1 = arith.constant 0 : i32
    return %c0_i32, %c0_i32_0 : i32, i32
  }
  func.func @transform_3(%arg0: i32) -> (i32, i32) {
    %c0_i32 = arith.constant 0 : i32
    %c0_i32_0 = arith.constant 0 : i32
    return %arg0, %c0_i32 : i32, i32
  }
}

module attributes {stable_mosaic.version = 11 : i64} {
  func.func @_linear_add_ln_kernel(%arg0: i32, %arg1: i32, %arg2: memref<32x256xbf16, #tpu.memory_space<vmem>>, %arg3: memref<256x128xbf16, #tpu.memory_space<vmem>>, %arg4: memref<1x128xf32, #tpu.memory_space<vmem>>, %arg5: memref<32x128xbf16, #tpu.memory_space<vmem>>, %arg6: memref<1x128xf32, #tpu.memory_space<vmem>>, %arg7: memref<1x128xf32, #tpu.memory_space<vmem>>, %arg8: memref<32x128xbf16, #tpu.memory_space<vmem>>, %arg9: memref<32x128xf32, #tpu.memory_space<vmem>>) attributes {dimension_semantics = [#tpu.dimension_semantics<parallel>, #tpu.dimension_semantics<arbitrary>], iteration_bounds = array<i64: 1, 1>, scalar_prefetch = 0 : i64, scratch_operands = 1 : i64, tpu.core_type = #tpu.core_type<tc>, window_params = [{transform_indices = @transform_0, window_bounds = array<i64: 32, 256>}, {transform_indices = @transform_1, window_bounds = array<i64: 256, 128>}, {pipeline_mode = #tpu.pipeline_mode<synchronous>, transform_indices = @transform_2, window_bounds = array<i64: 1, 128>}, {transform_indices = @transform_3, window_bounds = array<i64: 32, 128>}, {pipeline_mode = #tpu.pipeline_mode<synchronous>, transform_indices = @transform_4, window_bounds = array<i64: 1, 128>}, {pipeline_mode = #tpu.pipeline_mode<synchronous>, transform_indices = @transform_5, window_bounds = array<i64: 1, 128>}, {transform_indices = @transform_6, window_bounds = array<i64: 32, 128>}]} {
    %c0_i32 = arith.constant 0 : i32
    %0 = arith.cmpi eq, %arg1, %c0_i32 : i32
    %1 = arith.extui %0 : i1 to i32
    %c0_i32_0 = arith.constant 0 : i32
    %2 = arith.cmpi ne, %1, %c0_i32_0 : i32
    scf.if %2 {
      %cst_10 = arith.constant 0.000000e+00 : f32
      %12 = vector.broadcast %cst_10 : f32 to vector<32x128xf32>
      %c0_11 = arith.constant 0 : index
      %c0_12 = arith.constant 0 : index
      %13 = vector.load %arg9[%c0_11, %c0_12] : memref<32x128xf32, #tpu.memory_space<vmem>>, vector<32x128xf32>
      tpu.vector_store %arg9[%c0_11, %c0_12], %12 {strides = array<i32>} : memref<32x128xf32, #tpu.memory_space<vmem>>, vector<32x128xf32>,
    } else {
    }
    %c0 = arith.constant 0 : index
    %c0_1 = arith.constant 0 : index
    %3 = vector.load %arg9[%c0, %c0_1] : memref<32x128xf32, #tpu.memory_space<vmem>>, vector<32x128xf32>
    %c0_2 = arith.constant 0 : index
    %c0_3 = arith.constant 0 : index
    %4 = vector.load %arg2[%c0_2, %c0_3] : memref<32x256xbf16, #tpu.memory_space<vmem>>, vector<32x256xbf16>
    %c0_4 = arith.constant 0 : index
    %c0_5 = arith.constant 0 : index
    %5 = vector.load %arg3[%c0_4, %c0_5] : memref<256x128xbf16, #tpu.memory_space<vmem>>, vector<256x128xbf16>
    %cst = arith.constant dense<0.000000e+00> : vector<32x128xf32>
    %6 = tpu.matmul %4, %5, %cst {dimension_numbers = #tpu.dot_dimension_numbers<[1], [0], [0], [1], [0, 0, 1, 1], [], []>} : vector<32x256xbf16>, vector<256x128xbf16>, vector<32x128xf32> -> vector<32x128xf32>
    %7 = arith.addf %3, %6 : vector<32x128xf32>
    %c0_6 = arith.constant 0 : index
    %c0_7 = arith.constant 0 : index
    %8 = vector.load %arg9[%c0_6, %c0_7] : memref<32x128xf32, #tpu.memory_space<vmem>>, vector<32x128xf32>
    tpu.vector_store %arg9[%c0_6, %c0_7], %7 {strides = array<i32>} : memref<32x128xf32, #tpu.memory_space<vmem>>, vector<32x128xf32>,
    %c0_i32_8 = arith.constant 0 : i32
    %9 = arith.cmpi eq, %arg1, %c0_i32_8 : i32
    %10 = arith.extui %9 : i1 to i32
    %c0_i32_9 = arith.constant 0 : i32
    %11 = arith.cmpi ne, %10, %c0_i32_9 : i32
    scf.if %11 {
      %c0_10 = arith.constant 0 : index
      %c0_11 = arith.constant 0 : index
      %12 = vector.load %arg9[%c0_10, %c0_11] : memref<32x128xf32, #tpu.memory_space<vmem>>, vector<32x128xf32>
      %c0_12 = arith.constant 0 : index
      %c0_13 = arith.constant 0 : index
      %13 = vector.load %arg4[%c0_12, %c0_13] : memref<1x128xf32, #tpu.memory_space<vmem>>, vector<1x128xf32>
      %14 = vector.broadcast %13 : vector<1x128xf32> to vector<32x128xf32>
      %15 = arith.addf %12, %14 : vector<32x128xf32>
      %c0_14 = arith.constant 0 : index
      %c0_15 = arith.constant 0 : index
      %16 = vector.load %arg5[%c0_14, %c0_15] : memref<32x128xbf16, #tpu.memory_space<vmem>>, vector<32x128xbf16>
      %17 = arith.extf %16 : vector<32x128xbf16> to vector<32x128xf32>
      %18 = arith.addf %17, %15 : vector<32x128xf32>
      %cst_16 = arith.constant dense<0.000000e+00> : vector<32xf32>
      %19 = vector.multi_reduction <add>, %18, %cst_16 [1] : vector<32x128xf32> to vector<32xf32>
      %20 = vector.shape_cast %19 : vector<32xf32> to vector<32x1xf32>
      %cst_17 = arith.constant 1.280000e+02 : f32
      %21 = vector.broadcast %cst_17 : f32 to vector<32x1xf32>
      %22 = arith.divf %20, %21 : vector<32x1xf32>
      %23 = vector.broadcast %22 : vector<32x1xf32> to vector<32x128xf32>
      %24 = arith.subf %18, %23 : vector<32x128xf32>
      %25 = arith.mulf %24, %24 : vector<32x128xf32>
      %cst_18 = arith.constant dense<0.000000e+00> : vector<32xf32>
      %26 = vector.multi_reduction <add>, %25, %cst_18 [1] : vector<32x128xf32> to vector<32xf32>
      %27 = vector.shape_cast %26 : vector<32xf32> to vector<32x1xf32>
      %cst_19 = arith.constant 1.280000e+02 : f32
      %28 = vector.broadcast %cst_19 : f32 to vector<32x1xf32>
      %29 = arith.divf %27, %28 : vector<32x1xf32>
      %cst_20 = arith.constant 9.99999974E-6 : f32
      %30 = vector.broadcast %cst_20 : f32 to vector<32x1xf32>
      %31 = arith.addf %29, %30 : vector<32x1xf32>
      %32 = math.rsqrt %31 : vector<32x1xf32>
      %33 = vector.broadcast %22 : vector<32x1xf32> to vector<32x128xf32>
      %34 = arith.subf %18, %33 : vector<32x128xf32>
      %35 = vector.broadcast %32 : vector<32x1xf32> to vector<32x128xf32>
      %36 = arith.mulf %34, %35 : vector<32x128xf32>
      %c0_21 = arith.constant 0 : index
      %c0_22 = arith.constant 0 : index
      %37 = vector.load %arg6[%c0_21, %c0_22] : memref<1x128xf32, #tpu.memory_space<vmem>>, vector<1x128xf32>
      %38 = vector.broadcast %37 : vector<1x128xf32> to vector<32x128xf32>
      %39 = arith.mulf %36, %38 : vector<32x128xf32>
      %c0_23 = arith.constant 0 : index
      %c0_24 = arith.constant 0 : index
      %40 = vector.load %arg7[%c0_23, %c0_24] : memref<1x128xf32, #tpu.memory_space<vmem>>, vector<1x128xf32>
      %41 = vector.broadcast %40 : vector<1x128xf32> to vector<32x128xf32>
      %42 = arith.addf %39, %41 : vector<32x128xf32>
      %43 = arith.truncf %42 : vector<32x128xf32> to vector<32x128xbf16>
      %c0_25 = arith.constant 0 : index
      %c0_26 = arith.constant 0 : index
      %44 = vector.load %arg8[%c0_25, %c0_26] : memref<32x128xbf16, #tpu.memory_space<vmem>>, vector<32x128xbf16>
      tpu.vector_store %arg8[%c0_25, %c0_26], %43 {strides = array<i32>} : memref<32x128xbf16, #tpu.memory_space<vmem>>, vector<32x128xbf16>,
    } else {
    }
    return
  }
  func.func @transform_0(%arg0: i32, %arg1: i32) -> (i32, i32) {
    %c0_i32 = arith.constant 0 : i32
    return %arg0, %arg1 : i32, i32
  }
  func.func @transform_1(%arg0: i32, %arg1: i32) -> (i32, i32) {
    %c0_i32 = arith.constant 0 : i32
    %c0_i32_0 = arith.constant 0 : i32
    return %arg1, %c0_i32 : i32, i32
  }
  func.func @transform_2(%arg0: i32, %arg1: i32) -> (i32, i32) {
    %c0_i32 = arith.constant 0 : i32
    %c0_i32_0 = arith.constant 0 : i32
    %c0_i32_1 = arith.constant 0 : i32
    return %c0_i32, %c0_i32_0 : i32, i32
  }
  func.func @transform_3(%arg0: i32, %arg1: i32) -> (i32, i32) {
    %c0_i32 = arith.constant 0 : i32
    %c0_i32_0 = arith.constant 0 : i32
    return %arg0, %c0_i32 : i32, i32
  }
  func.func @transform_4(%arg0: i32, %arg1: i32) -> (i32, i32) {
    %c0_i32 = arith.constant 0 : i32
    %c0_i32_0 = arith.constant 0 : i32
    %c0_i32_1 = arith.constant 0 : i32
    return %c0_i32, %c0_i32_0 : i32, i32
  }
  func.func @transform_5(%arg0: i32, %arg1: i32) -> (i32, i32) {
    %c0_i32 = arith.constant 0 : i32
    %c0_i32_0 = arith.constant 0 : i32
    %c0_i32_1 = arith.constant 0 : i32
    return %c0_i32, %c0_i32_0 : i32, i32
  }
  func.func @transform_6(%arg0: i32, %arg1: i32) -> (i32, i32) {
    %c0_i32 = arith.constant 0 : i32
    %c0_i32_0 = arith.constant 0 : i32
    return %arg0, %c0_i32 : i32, i32
  }
}

</mosaic_0001>

<llo_original>
// kernel: gpt2_forward.12
$region0: #{gpt2_forward.12}
  #allocation0 [shape = 'u32[]', space=smem, size = 0x4, offset = 0x4, fixed_abs, tag = 'smem constant byte address 0x4 - core index']
  #allocation1 [shape = 'u32[144,128]{1,0:T(1,128)}', space=vmem, size = 0x12000, scoped, tag = 'internal scratch']
  #allocation2 [shape = 'f32[32,384]{1,0:T(8,128)}', space=vmem, size = 0xc000, scoped, tag = 'scratch operand']
  %s0 = inlined_call_operand.vmem [shape: bf16[32,128], index: 0, kind: input, shape index: {}]
  %s1 = inlined_call_operand.vmem [shape: bf16[128,384], index: 1, kind: input, shape index: {}]
  %s2 = inlined_call_operand.vmem [shape: f32[1,384], index: 2, kind: input, shape index: {}]
  %s3 = inlined_call_operand.vmem [shape: bf16[32,384], index: 3, kind: output, shape index: {}]
  %s4 = sld [smem:[#allocation0]]
  $region30: #{gpt2_forward.12} parent=0
    _
  %s6 = ssub.s32 1, %s4
  %s7 = scalar_select 0, %s6, %s4
  // Predicated region
  $region2: #{gpt2_forward.12} parent=0 // pred_check
    _
  $region3: #{gpt2_forward.12} parent=0 // pred_check_branch
    %9 = sbr.rel (0) target = $region5
  $region4: #{gpt2_forward.12} parent=0 // pred_region
    _
  $region5: #{gpt2_forward.12} parent=0 // pred_fallthru
    _
  // Predicated region
  $region6: #{gpt2_forward.12} parent=0 // pred_check
    _
  $region7: #{gpt2_forward.12} parent=0 // pred_check_branch
    %11 = sbr.rel (0) target = $region9
  $region8: #{gpt2_forward.12} parent=0 // pred_region
    _
  $region9: #{gpt2_forward.12} parent=0 // pred_fallthru
    _
  // Predicated region
  $region10: #{gpt2_forward.12} parent=0 // pred_check
    _
  $region11: #{gpt2_forward.12} parent=0 // pred_check_branch
    %13 = sbr.rel (0) target = $region13
  $region12: #{gpt2_forward.12} parent=0 // pred_region
    _
  $region13: #{gpt2_forward.12} parent=0 // pred_fallthru
    _
  %p15 = scmp.eq.s32.totalorder 0, 0
  // Predicated region
  $region14: #{gpt2_forward.12} parent=0 // pred_check
    %p16 = pneg %p15
  $region15: #{gpt2_forward.12} parent=0 // pred_check_branch
    %18 = sbr.rel (%p16) target = $region17
  $region16: #{gpt2_forward.12} parent=0 // pred_region
    %19 = vst [vmem:[#allocation2] sm:$0xff] 0.0
    %20 = vst [vmem:[#allocation2 + $0x8] sm:$0xff] 0.0
    %21 = vst [vmem:[#allocation2 + $0x10] sm:$0xff] 0.0
    %22 = vst [vmem:[#allocation2 + $0x18] sm:$0xff] 0.0
    %23 = vst [vmem:[#allocation2 + $0x20] sm:$0xff] 0.0
    %24 = vst [vmem:[#allocation2 + $0x28] sm:$0xff] 0.0
    %25 = vst [vmem:[#allocation2 + $0x30] sm:$0xff] 0.0
    %26 = vst [vmem:[#allocation2 + $0x38] sm:$0xff] 0.0
    %27 = vst [vmem:[#allocation2 + $0x40] sm:$0xff] 0.0
    %28 = vst [vmem:[#allocation2 + $0x48] sm:$0xff] 0.0
    %29 = vst [vmem:[#allocation2 + $0x50] sm:$0xff] 0.0
    %30 = vst [vmem:[#allocation2 + $0x58] sm:$0xff] 0.0
  $region17: #{gpt2_forward.12} parent=0 // pred_fallthru
    _
  %v31 = vld [vmem:[#allocation2] sm:$0xff]
  %v32 = vld [vmem:[#allocation2 + $0x8] sm:$0xff]
  %v33 = vld [vmem:[#allocation2 + $0x10] sm:$0xff]
  %v34 = vld [vmem:[#allocation2 + $0x18] sm:$0xff]
  %v35 = vld [vmem:[#allocation2 + $0x20] sm:$0xff]
  %v36 = vld [vmem:[#allocation2 + $0x28] sm:$0xff]
  %v37 = vld [vmem:[#allocation2 + $0x30] sm:$0xff]
  %v38 = vld [vmem:[#allocation2 + $0x38] sm:$0xff]
  %v39 = vld [vmem:[#allocation2 + $0x40] sm:$0xff]
  %v40 = vld [vmem:[#allocation2 + $0x48] sm:$0xff]
  %v41 = vld [vmem:[#allocation2 + $0x50] sm:$0xff]
  %v42 = vld [vmem:[#allocation2 + $0x58] sm:$0xff]
  %v43 = vld [vmem:[%s0] sm:$0xf]
  %v44 = vld [vmem:[%s0 + $0x4] sm:$0xf]
  %v45 = vld [vmem:[%s0 + $0x8] sm:$0xf]
  %v46 = vld [vmem:[%s0 + $0xc] sm:$0xf]
  %v47 = vld [vmem:[%s1] sm:$0xff]
  %v48 = vld [vmem:[%s1 + $0x8] sm:$0xf]
  %v49 = vld [vmem:[%s1 + $0xc] sm:$0xff]
  %v50 = vld [vmem:[%s1 + $0x14] sm:$0xf]
  %v51 = vld [vmem:[%s1 + $0x18] sm:$0xff]
  %v52 = vld [vmem:[%s1 + $0x20] sm:$0xf]
  %v53 = vld [vmem:[%s1 + $0x24] sm:$0xff]
  %v54 = vld [vmem:[%s1 + $0x2c] sm:$0xf]
  %v55 = vld [vmem:[%s1 + $0x30] sm:$0xff]
  %v56 = vld [vmem:[%s1 + $0x38] sm:$0xf]
  %v57 = vld [vmem:[%s1 + $0x3c] sm:$0xff]
  %v58 = vld [vmem:[%s1 + $0x44] sm:$0xf]
  %v59 = vld [vmem:[%s1 + $0x48] sm:$0xff]
  %v60 = vld [vmem:[%s1 + $0x50] sm:$0xf]
  %v61 = vld [vmem:[%s1 + $0x54] sm:$0xff]
  %v62 = vld [vmem:[%s1 + $0x5c] sm:$0xf]
  %v63 = vld [vmem:[%s1 + $0x60] sm:$0xff]
  %v64 = vld [vmem:[%s1 + $0x68] sm:$0xf]
  %v65 = vld [vmem:[%s1 + $0x6c] sm:$0xff]
  %v66 = vld [vmem:[%s1 + $0x74] sm:$0xf]
  %v67 = vld [vmem:[%s1 + $0x78] sm:$0xff]
  %v68 = vld [vmem:[%s1 + $0x80] sm:$0xf]
  %v69 = vld [vmem:[%s1 + $0x84] sm:$0xff]
  %v70 = vld [vmem:[%s1 + $0x8c] sm:$0xf]
  %v71 = vld [vmem:[%s1 + $0x90] sm:$0xff]
  %v72 = vld [vmem:[%s1 + $0x98] sm:$0xf]
  %v73 = vld [vmem:[%s1 + $0x9c] sm:$0xff]
  %v74 = vld [vmem:[%s1 + $0xa4] sm:$0xf]
  %v75 = vld [vmem:[%s1 + $0xa8] sm:$0xff]
  %v76 = vld [vmem:[%s1 + $0xb0] sm:$0xf]
  %v77 = vld [vmem:[%s1 + $0xb4] sm:$0xff]
  %v78 = vld [vmem:[%s1 + $0xbc] sm:$0xf]
  %v83 = vunpack.c.l.b16 %v43
  %v84 = vunpack.c.l.b16 %v44
  %v85 = vunpack.c.l.b16 %v45
  %v86 = vunpack.c.l.b16 %v46
  %v87 = vpack.c.b16 %v84, %v83
  %v88 = vpack.c.b16 %v86, %v85
  %v123 = vunpack.c.l.b16 %v47
  %v124 = vunpack.c.h.b16 %v47
  %v125 = vunpack.c.l.b16 %v48
  %v126 = vunpack.c.l.b16 %v49
  %v127 = vunpack.c.h.b16 %v49
  %v128 = vunpack.c.l.b16 %v50
  %v129 = vunpack.c.l.b16 %v51
  %v130 = vunpack.c.h.b16 %v51
  %v131 = vunpack.c.l.b16 %v52
  %v132 = vunpack.c.l.b16 %v53
  %v133 = vunpack.c.h.b16 %v53
  %v134 = vunpack.c.l.b16 %v54
  %v135 = vunpack.c.l.b16 %v55
  %v136 = vunpack.c.h.b16 %v55
  %v137 = vunpack.c.l.b16 %v56
  %v138 = vunpack.c.l.b16 %v57
  %v139 = vunpack.c.h.b16 %v57
  %v140 = vunpack.c.l.b16 %v58
  %v141 = vunpack.c.l.b16 %v59
  %v142 = vunpack.c.h.b16 %v59
  %v143 = vunpack.c.l.b16 %v60
  %v144 = vunpack.c.l.b16 %v61
  %v145 = vunpack.c.h.b16 %v61
  %v146 = vunpack.c.l.b16 %v62
  %v147 = vunpack.c.l.b16 %v63
  %v148 = vunpack.c.h.b16 %v63
  %v149 = vunpack.c.l.b16 %v64
  %v150 = vunpack.c.l.b16 %v65
  %v151 = vunpack.c.h.b16 %v65
  %v152 = vunpack.c.l.b16 %v66
  %v153 = vunpack.c.l.b16 %v67
  %v154 = vunpack.c.h.b16 %v67
  %v155 = vunpack.c.l.b16 %v68
  %v156 = vunpack.c.l.b16 %v69
  %v157 = vunpack.c.h.b16 %v69
  %v158 = vunpack.c.l.b16 %v70
  %v159 = vunpack.c.l.b16 %v71
  %v160 = vunpack.c.h.b16 %v71
  %v161 = vunpack.c.l.b16 %v72
  %v162 = vunpack.c.l.b16 %v73
  %v163 = vunpack.c.h.b16 %v73
  %v164 = vunpack.c.l.b16 %v74
  %v165 = vunpack.c.l.b16 %v75
  %v166 = vunpack.c.h.b16 %v75
  %v167 = vunpack.c.l.b16 %v76
  %v168 = vunpack.c.l.b16 %v77
  %v169 = vunpack.c.h.b16 %v77
  %v170 = vunpack.c.l.b16 %v78
  %v171 = vpack.c.b16 %v126, %v123
  %v172 = vpack.c.b16 %v127, %v124
  %v173 = vpack.c.b16 %v128, %v125
  %v174 = vpack.c.b16 %v132, %v129
  %v175 = vpack.c.b16 %v133, %v130
  %v176 = vpack.c.b16 %v134, %v131
  %v177 = vpack.c.b16 %v138, %v135
  %v178 = vpack.c.b16 %v139, %v136
  %v179 = vpack.c.b16 %v140, %v137
  %v180 = vpack.c.b16 %v144, %v141
  %v181 = vpack.c.b16 %v145, %v142
  %v182 = vpack.c.b16 %v146, %v143
  %v183 = vpack.c.b16 %v150, %v147
  %v184 = vpack.c.b16 %v151, %v148
  %v185 = vpack.c.b16 %v152, %v149
  %v186 = vpack.c.b16 %v156, %v153
  %v187 = vpack.c.b16 %v157, %v154
  %v188 = vpack.c.b16 %v158, %v155
  %v189 = vpack.c.b16 %v162, %v159
  %v190 = vpack.c.b16 %v163, %v160
  %v191 = vpack.c.b16 %v164, %v161
  %v192 = vpack.c.b16 %v168, %v165
  %v193 = vpack.c.b16 %v169, %v166
  %v194 = vpack.c.b16 %v170, %v167
  %219 = vmatprep.subr.bf16.mxu0 %v172
  %220 = vmatpush1.bf16.msra.mxu0 %v171
  %221 = vmatprep.subr.bf16.mxu0 %v175
  %222 = vmatpush1.bf16.msra.mxu0 %v174
  %223 = vmatprep.subr.bf16.mxu0 %v178
  %224 = vmatpush1.bf16.msra.mxu0 %v177
  %225 = vmatprep.subr.bf16.mxu0 %v181
  %226 = vmatpush1.bf16.msra.mxu0 %v180
  %227 = vmatprep.subr.bf16.mxu0 %v184
  %228 = vmatpush1.bf16.msra.mxu0 %v183
  %229 = vmatprep.subr.bf16.mxu0 %v187
  %230 = vmatpush1.bf16.msra.mxu0 %v186
  %231 = vmatprep.subr.bf16.mxu0 %v190
  %232 = vmatpush1.bf16.msra.mxu0 %v189
  %233 = vmatprep.subr.bf16.mxu0 %v193
  %234 = vmatpush1.bf16.msra.mxu0 %v192
  %235 = vmatprep.subr.bf16.mxu0 0
  %236 = vmatpush1.bf16.msra.mxu0 0
  %237 = vmatprep.subr.bf16.mxu0 0
  %238 = vmatpush1.bf16.msra.mxu0 0
  %239 = vmatprep.subr.bf16.mxu0 0
  %240 = vmatpush1.bf16.msra.mxu0 0
  %241 = vmatprep.subr.bf16.mxu0 0
  %242 = vmatpush1.bf16.msra.mxu0 0
  %243 = vmatprep.subr.bf16.mxu0 0
  %244 = vmatpush1.bf16.msra.mxu0 0
  %245 = vmatprep.subr.bf16.mxu0 0
  %246 = vmatpush1.bf16.msra.mxu0 0
  %247 = vmatprep.subr.bf16.mxu0 0
  %248 = vmatpush1.bf16.msra.mxu0 0
  %249 = vmatprep.subr.bf16.mxu0 0
  %250 = vmatpush1.bf16.msra.mxu0 0
  %251 = vmatprep.mubr.bf16.mxu0 0
  %252 = vmatmul.mubr.bf16.gmra.mrb[0].mxu0 %v87
  %v253 = vpop.f32.mrb[0].mxu0
  %v254 = vadd.f32 0.0, %v253
  %v255 = vpop.f32.mrb[0].mxu0
  %v256 = vadd.f32 0.0, %v255
  %v257 = vpop.f32.mrb[0].mxu0
  %v258 = vadd.f32 0.0, %v257
  %v259 = vpop.f32.mrb[0].mxu0
  %v260 = vadd.f32 0.0, %v259
  %261 = vmatprep.mubr.bf16.mxu0 0
  %262 = vmatmul.mubr.bf16.gmra.mrb[0].mxu0 %v88
  %v263 = vpop.f32.mrb[0].mxu0
  %v264 = vadd.f32 0.0, %v263
  %v265 = vpop.f32.mrb[0].mxu0
  %v266 = vadd.f32 0.0, %v265
  %v267 = vpop.f32.mrb[0].mxu0
  %v268 = vadd.f32 0.0, %v267
  %v269 = vpop.f32.mrb[0].mxu0
  %v270 = vadd.f32 0.0, %v269
  %271 = vdwg.mxu0
  %272 = vmatprep.subr.bf16.mxu0 0
  %273 = vmatpush1.bf16.msra.mxu0 %v173
  %274 = vmatprep.subr.bf16.mxu0 0
  %275 = vmatpush1.bf16.msra.mxu0 %v176
  %276 = vmatprep.subr.bf16.mxu0 0
  %277 = vmatpush1.bf16.msra.mxu0 %v179
  %278 = vmatprep.subr.bf16.mxu0 0
  %279 = vmatpush1.bf16.msra.mxu0 %v182
  %280 = vmatprep.subr.bf16.mxu0 0
  %281 = vmatpush1.bf16.msra.mxu0 %v185
  %282 = vmatprep.subr.bf16.mxu0 0
  %283 = vmatpush1.bf16.msra.mxu0 %v188
  %284 = vmatprep.subr.bf16.mxu0 0
  %285 = vmatpush1.bf16.msra.mxu0 %v191
  %286 = vmatprep.subr.bf16.mxu0 0
  %287 = vmatpush1.bf16.msra.mxu0 %v194
  %288 = vmatprep.subr.bf16.mxu0 0
  %289 = vmatpush1.bf16.msra.mxu0 0
  %290 = vmatprep.subr.bf16.mxu0 0
  %291 = vmatpush1.bf16.msra.mxu0 0
  %292 = vmatprep.subr.bf16.mxu0 0
  %293 = vmatpush1.bf16.msra.mxu0 0
  %294 = vmatprep.subr.bf16.mxu0 0
  %295 = vmatpush1.bf16.msra.mxu0 0
  %296 = vmatprep.subr.bf16.mxu0 0
  %297 = vmatpush1.bf16.msra.mxu0 0
  %298 = vmatprep.subr.bf16.mxu0 0
  %299 = vmatpush1.bf16.msra.mxu0 0
  %300 = vmatprep.subr.bf16.mxu0 0
  %301 = vmatpush1.bf16.msra.mxu0 0
  %302 = vmatprep.subr.bf16.mxu0 0
  %303 = vmatpush1.bf16.msra.mxu0 0
  %304 = vmatprep.mubr.bf16.mxu0 0
  %305 = vmatmul.mubr.bf16.gmra.mrb[0].mxu0 %v87
  %v306 = vpop.f32.mrb[0].mxu0
  %v307 = vadd.f32 0.0, %v306
  %v308 = vpop.f32.mrb[0].mxu0
  %v309 = vpop.f32.mrb[0].mxu0
  %v310 = vadd.f32 0.0, %v309
  %v311 = vpop.f32.mrb[0].mxu0
  %312 = vmatprep.mubr.bf16.mxu0 0
  %313 = vmatmul.mubr.bf16.gmra.mrb[0].mxu0 %v88
  %v314 = vpop.f32.mrb[0].mxu0
  %v315 = vadd.f32 0.0, %v314
  %v316 = vpop.f32.mrb[0].mxu0
  %v317 = vpop.f32.mrb[0].mxu0
  %v318 = vadd.f32 0.0, %v317
  %v319 = vpop.f32.mrb[0].mxu0
  %320 = vdwg.mxu0
  %v321 = vadd.f32 %v31, %v254
  %v322 = vadd.f32 %v32, %v256
  %v323 = vadd.f32 %v33, %v307
  %v324 = vadd.f32 %v34, %v258
  %v325 = vadd.f32 %v35, %v260
  %v326 = vadd.f32 %v36, %v310
  %v327 = vadd.f32 %v37, %v264
  %v328 = vadd.f32 %v38, %v266
  %v329 = vadd.f32 %v39, %v315
  %v330 = vadd.f32 %v40, %v268
  %v331 = vadd.f32 %v41, %v270
  %v332 = vadd.f32 %v42, %v318
  %333 = vst [vmem:[#allocation2] sm:$0xff] %v321
  %334 = vst [vmem:[#allocation2 + $0x8] sm:$0xff] %v322
  %335 = vst [vmem:[#allocation2 + $0x10] sm:$0xff] %v323
  %336 = vst [vmem:[#allocation2 + $0x18] sm:$0xff] %v324
  %337 = vst [vmem:[#allocation2 + $0x20] sm:$0xff] %v325
  %338 = vst [vmem:[#allocation2 + $0x28] sm:$0xff] %v326
  %339 = vst [vmem:[#allocation2 + $0x30] sm:$0xff] %v327
  %340 = vst [vmem:[#allocation2 + $0x38] sm:$0xff] %v328
  %341 = vst [vmem:[#allocation2 + $0x40] sm:$0xff] %v329
  %342 = vst [vmem:[#allocation2 + $0x48] sm:$0xff] %v330
  %343 = vst [vmem:[#allocation2 + $0x50] sm:$0xff] %v331
  %344 = vst [vmem:[#allocation2 + $0x58] sm:$0xff] %v332
  // Predicated region
  $region18: #{gpt2_forward.12} parent=0 // pred_check
    %p345 = pneg %p15
  $region19: #{gpt2_forward.12} parent=0 // pred_check_branch
    %347 = sbr.rel (%p345) target = $region21
  $region20: #{gpt2_forward.12} parent=0 // pred_region
    %v348 = vld [vmem:[#allocation2] sm:$0xff]
    %v349 = vld [vmem:[#allocation2 + $0x8] sm:$0xff]
    %v350 = vld [vmem:[#allocation2 + $0x10] sm:$0xff]
    %v351 = vld [vmem:[#allocation2 + $0x18] sm:$0xff]
    %v352 = vld [vmem:[#allocation2 + $0x20] sm:$0xff]
    %v353 = vld [vmem:[#allocation2 + $0x28] sm:$0xff]
    %v354 = vld [vmem:[#allocation2 + $0x30] sm:$0xff]
    %v355 = vld [vmem:[#allocation2 + $0x38] sm:$0xff]
    %v356 = vld [vmem:[#allocation2 + $0x40] sm:$0xff]
    %v357 = vld [vmem:[#allocation2 + $0x48] sm:$0xff]
    %v358 = vld [vmem:[#allocation2 + $0x50] sm:$0xff]
    %v359 = vld [vmem:[#allocation2 + $0x58] sm:$0xff]
    %v360 = vld [vmem:[%s2] sm:$0x7]
    %v362 = vlaneseq
    %v363 = vshrl.u32 %v362, 7
    %v364 = vsub.s32 0, %v363
    %v365 = vrot.slane %v360, %v364
    %v366 = vlaneseq
    %v367 = vshrl.u32 %v366, 7
    %v368 = vsub.s32 1, %v367
    %v369 = vrot.slane %v360, %v368
    %v370 = vlaneseq
    %v371 = vshrl.u32 %v370, 7
    %v372 = vsub.s32 2, %v371
    %v373 = vrot.slane %v360, %v372
    %v377 = vadd.f32 %v348, %v365
    %v378 = vadd.f32 %v349, %v369
    %v379 = vadd.f32 %v350, %v373
    %v380 = vadd.f32 %v351, %v365
    %v381 = vadd.f32 %v352, %v369
    %v382 = vadd.f32 %v353, %v373
    %v383 = vadd.f32 %v354, %v365
    %v384 = vadd.f32 %v355, %v369
    %v385 = vadd.f32 %v356, %v373
    %v386 = vadd.f32 %v357, %v365
    %v387 = vadd.f32 %v358, %v369
    %v388 = vadd.f32 %v359, %v373
    %v389 = vpack.c.bf16 %v380, %v377
    %v390 = vpack.c.bf16 %v381, %v378
    %v391 = vpack.c.bf16 %v382, %v379
    %v392 = vpack.c.bf16 %v386, %v383
    %v393 = vpack.c.bf16 %v387, %v384
    %v394 = vpack.c.bf16 %v388, %v385
    %v401 = vunpack.c.l.b16 %v389
    %v402 = vunpack.c.l.b16 %v390
    %v403 = vunpack.c.l.b16 %v391
    %v404 = vunpack.c.h.b16 %v389
    %v405 = vunpack.c.h.b16 %v390
    %v406 = vunpack.c.h.b16 %v391
    %v407 = vunpack.c.l.b16 %v392
    %v408 = vunpack.c.l.b16 %v393
    %v409 = vunpack.c.l.b16 %v394
    %v410 = vunpack.c.h.b16 %v392
    %v411 = vunpack.c.h.b16 %v393
    %v412 = vunpack.c.h.b16 %v394
    %v413 = vpack.c.b16 %v402, %v401
    %v414 = vpack.c.b16 %v403, %v403
    %v415 = vpack.c.b16 %v405, %v404
    %v416 = vpack.c.b16 %v406, %v406
    %v417 = vpack.c.b16 %v408, %v407
    %v418 = vpack.c.b16 %v409, %v409
    %v419 = vpack.c.b16 %v411, %v410
    %v420 = vpack.c.b16 %v412, %v412
    %429 = vst [vmem:[%s3] sm:$0xff] %v413
    %430 = vst [vmem:[%s3 + $0x8] sm:$0xf] %v414
    %431 = vst [vmem:[%s3 + $0xc] sm:$0xff] %v415
    %432 = vst [vmem:[%s3 + $0x14] sm:$0xf] %v416
    %433 = vst [vmem:[%s3 + $0x18] sm:$0xff] %v417
    %434 = vst [vmem:[%s3 + $0x20] sm:$0xf] %v418
    %435 = vst [vmem:[%s3 + $0x24] sm:$0xff] %v419
    %436 = vst [vmem:[%s3 + $0x2c] sm:$0xf] %v420
  $region21: #{gpt2_forward.12} parent=0 // pred_fallthru
    _
  // Predicated region
  $region22: #{gpt2_forward.12} parent=0 // pred_check
    _
  $region23: #{gpt2_forward.12} parent=0 // pred_check_branch
    %438 = sbr.rel (0) target = $region25
  $region24: #{gpt2_forward.12} parent=0 // pred_region
    _
  $region25: #{gpt2_forward.12} parent=0 // pred_fallthru
    _
  // Predicated region
  $region26: #{gpt2_forward.12} parent=0 // pred_check
    _
  $region27: #{gpt2_forward.12} parent=0 // pred_check_branch
    %440 = sbr.rel (0) target = $region29
  $region28: #{gpt2_forward.12} parent=0 // pred_region
    _
  $region29: #{gpt2_forward.12} parent=0 // pred_fallthru
    _

// kernel: gpt2_forward.15
$region0: #{gpt2_forward.15}
  #allocation0 [shape = 'u32[]', space=smem, size = 0x4, offset = 0x4, fixed_abs, tag = 'smem constant byte address 0x4 - core index']
  #allocation1 [shape = 'u32[144,128]{1,0:T(1,128)}', space=vmem, size = 0x12000, scoped, tag = 'internal scratch']
  #allocation2 [shape = 'f32[32,256]{1,0:T(8,128)}', space=vmem, size = 0x8000, scoped, tag = 'scratch operand']
  %s0 = inlined_call_operand.vmem [shape: bf16[32,128], index: 0, kind: input, shape index: {}]
  %s1 = inlined_call_operand.vmem [shape: bf16[128,256], index: 1, kind: input, shape index: {}]
  %s2 = inlined_call_operand.vmem [shape: f32[1,256], index: 2, kind: input, shape index: {}]
  %s3 = inlined_call_operand.vmem [shape: bf16[32,256], index: 3, kind: output, shape index: {}]
  %s4 = sld [smem:[#allocation0]]
  $region30: #{gpt2_forward.15} parent=0
    _
  %s6 = ssub.s32 1, %s4
  %s7 = scalar_select 0, %s6, %s4
  // Predicated region
  $region2: #{gpt2_forward.15} parent=0 // pred_check
    _
  $region3: #{gpt2_forward.15} parent=0 // pred_check_branch
    %9 = sbr.rel (0) target = $region5
  $region4: #{gpt2_forward.15} parent=0 // pred_region
    _
  $region5: #{gpt2_forward.15} parent=0 // pred_fallthru
    _
  // Predicated region
  $region6: #{gpt2_forward.15} parent=0 // pred_check
    _
  $region7: #{gpt2_forward.15} parent=0 // pred_check_branch
    %11 = sbr.rel (0) target = $region9
  $region8: #{gpt2_forward.15} parent=0 // pred_region
    _
  $region9: #{gpt2_forward.15} parent=0 // pred_fallthru
    _
  // Predicated region
  $region10: #{gpt2_forward.15} parent=0 // pred_check
    _
  $region11: #{gpt2_forward.15} parent=0 // pred_check_branch
    %13 = sbr.rel (0) target = $region13
  $region12: #{gpt2_forward.15} parent=0 // pred_region
    _
  $region13: #{gpt2_forward.15} parent=0 // pred_fallthru
    _
  %p15 = scmp.eq.s32.totalorder 0, 0
  // Predicated region
  $region14: #{gpt2_forward.15} parent=0 // pred_check
    %p16 = pneg %p15
  $region15: #{gpt2_forward.15} parent=0 // pred_check_branch
    %18 = sbr.rel (%p16) target = $region17
  $region16: #{gpt2_forward.15} parent=0 // pred_region
    %19 = vst [vmem:[#allocation2] sm:$0xff] 0.0
    %20 = vst [vmem:[#allocation2 + $0x8] sm:$0xff] 0.0
    %21 = vst [vmem:[#allocation2 + $0x10] sm:$0xff] 0.0
    %22 = vst [vmem:[#allocation2 + $0x18] sm:$0xff] 0.0
    %23 = vst [vmem:[#allocation2 + $0x20] sm:$0xff] 0.0
    %24 = vst [vmem:[#allocation2 + $0x28] sm:$0xff] 0.0
    %25 = vst [vmem:[#allocation2 + $0x30] sm:$0xff] 0.0
    %26 = vst [vmem:[#allocation2 + $0x38] sm:$0xff] 0.0
  $region17: #{gpt2_forward.15} parent=0 // pred_fallthru
    _
  %v27 = vld [vmem:[#allocation2] sm:$0xff]
  %v28 = vld [vmem:[#allocation2 + $0x8] sm:$0xff]
  %v29 = vld [vmem:[#allocation2 + $0x10] sm:$0xff]
  %v30 = vld [vmem:[#allocation2 + $0x18] sm:$0xff]
  %v31 = vld [vmem:[#allocation2 + $0x20] sm:$0xff]
  %v32 = vld [vmem:[#allocation2 + $0x28] sm:$0xff]
  %v33 = vld [vmem:[#allocation2 + $0x30] sm:$0xff]
  %v34 = vld [vmem:[#allocation2 + $0x38] sm:$0xff]
  %v35 = vld [vmem:[%s0] sm:$0xf]
  %v36 = vld [vmem:[%s0 + $0x4] sm:$0xf]
  %v37 = vld [vmem:[%s0 + $0x8] sm:$0xf]
  %v38 = vld [vmem:[%s0 + $0xc] sm:$0xf]
  %v39 = vld [vmem:[%s1] sm:$0xff]
  %v40 = vld [vmem:[%s1 + $0x8] sm:$0xff]
  %v41 = vld [vmem:[%s1 + $0x10] sm:$0xff]
  %v42 = vld [vmem:[%s1 + $0x18] sm:$0xff]
  %v43 = vld [vmem:[%s1 + $0x20] sm:$0xff]
  %v44 = vld [vmem:[%s1 + $0x28] sm:$0xff]
  %v45 = vld [vmem:[%s1 + $0x30] sm:$0xff]
  %v46 = vld [vmem:[%s1 + $0x38] sm:$0xff]
  %v47 = vld [vmem:[%s1 + $0x40] sm:$0xff]
  %v48 = vld [vmem:[%s1 + $0x48] sm:$0xff]
  %v49 = vld [vmem:[%s1 + $0x50] sm:$0xff]
  %v50 = vld [vmem:[%s1 + $0x58] sm:$0xff]
  %v51 = vld [vmem:[%s1 + $0x60] sm:$0xff]
  %v52 = vld [vmem:[%s1 + $0x68] sm:$0xff]
  %v53 = vld [vmem:[%s1 + $0x70] sm:$0xff]
  %v54 = vld [vmem:[%s1 + $0x78] sm:$0xff]
  %v59 = vunpack.c.l.b16 %v35
  %v60 = vunpack.c.l.b16 %v36
  %v61 = vunpack.c.l.b16 %v37
  %v62 = vunpack.c.l.b16 %v38
  %v63 = vpack.c.b16 %v60, %v59
  %v64 = vpack.c.b16 %v62, %v61
  %v83 = vunpack.c.l.b16 %v39
  %v84 = vunpack.c.h.b16 %v39
  %v85 = vunpack.c.l.b16 %v40
  %v86 = vunpack.c.h.b16 %v40
  %v87 = vunpack.c.l.b16 %v41
  %v88 = vunpack.c.h.b16 %v41
  %v89 = vunpack.c.l.b16 %v42
  %v90 = vunpack.c.h.b16 %v42
  %v91 = vunpack.c.l.b16 %v43
  %v92 = vunpack.c.h.b16 %v43
  %v93 = vunpack.c.l.b16 %v44
  %v94 = vunpack.c.h.b16 %v44
  %v95 = vunpack.c.l.b16 %v45
  %v96 = vunpack.c.h.b16 %v45
  %v97 = vunpack.c.l.b16 %v46
  %v98 = vunpack.c.h.b16 %v46
  %v99 = vunpack.c.l.b16 %v47
  %v100 = vunpack.c.h.b16 %v47
  %v101 = vunpack.c.l.b16 %v48
  %v102 = vunpack.c.h.b16 %v48
  %v103 = vunpack.c.l.b16 %v49
  %v104 = vunpack.c.h.b16 %v49
  %v105 = vunpack.c.l.b16 %v50
  %v106 = vunpack.c.h.b16 %v50
  %v107 = vunpack.c.l.b16 %v51
  %v108 = vunpack.c.h.b16 %v51
  %v109 = vunpack.c.l.b16 %v52
  %v110 = vunpack.c.h.b16 %v52
  %v111 = vunpack.c.l.b16 %v53
  %v112 = vunpack.c.h.b16 %v53
  %v113 = vunpack.c.l.b16 %v54
  %v114 = vunpack.c.h.b16 %v54
  %v115 = vpack.c.b16 %v85, %v83
  %v116 = vpack.c.b16 %v86, %v84
  %v117 = vpack.c.b16 %v89, %v87
  %v118 = vpack.c.b16 %v90, %v88
  %v119 = vpack.c.b16 %v93, %v91
  %v120 = vpack.c.b16 %v94, %v92
  %v121 = vpack.c.b16 %v97, %v95
  %v122 = vpack.c.b16 %v98, %v96
  %v123 = vpack.c.b16 %v101, %v99
  %v124 = vpack.c.b16 %v102, %v100
  %v125 = vpack.c.b16 %v105, %v103
  %v126 = vpack.c.b16 %v106, %v104
  %v127 = vpack.c.b16 %v109, %v107
  %v128 = vpack.c.b16 %v110, %v108
  %v129 = vpack.c.b16 %v113, %v111
  %v130 = vpack.c.b16 %v114, %v112
  %147 = vmatprep.subr.bf16.mxu0 %v116
  %148 = vmatpush1.bf16.msra.mxu0 %v115
  %149 = vmatprep.subr.bf16.mxu0 %v118
  %150 = vmatpush1.bf16.msra.mxu0 %v117
  %151 = vmatprep.subr.bf16.mxu0 %v120
  %152 = vmatpush1.bf16.msra.mxu0 %v119
  %153 = vmatprep.subr.bf16.mxu0 %v122
  %154 = vmatpush1.bf16.msra.mxu0 %v121
  %155 = vmatprep.subr.bf16.mxu0 %v124
  %156 = vmatpush1.bf16.msra.mxu0 %v123
  %157 = vmatprep.subr.bf16.mxu0 %v126
  %158 = vmatpush1.bf16.msra.mxu0 %v125
  %159 = vmatprep.subr.bf16.mxu0 %v128
  %160 = vmatpush1.bf16.msra.mxu0 %v127
  %161 = vmatprep.subr.bf16.mxu0 %v130
  %162 = vmatpush1.bf16.msra.mxu0 %v129
  %163 = vmatprep.subr.bf16.mxu0 0
  %164 = vmatpush1.bf16.msra.mxu0 0
  %165 = vmatprep.subr.bf16.mxu0 0
  %166 = vmatpush1.bf16.msra.mxu0 0
  %167 = vmatprep.subr.bf16.mxu0 0
  %168 = vmatpush1.bf16.msra.mxu0 0
  %169 = vmatprep.subr.bf16.mxu0 0
  %170 = vmatpush1.bf16.msra.mxu0 0
  %171 = vmatprep.subr.bf16.mxu0 0
  %172 = vmatpush1.bf16.msra.mxu0 0
  %173 = vmatprep.subr.bf16.mxu0 0
  %174 = vmatpush1.bf16.msra.mxu0 0
  %175 = vmatprep.subr.bf16.mxu0 0
  %176 = vmatpush1.bf16.msra.mxu0 0
  %177 = vmatprep.subr.bf16.mxu0 0
  %178 = vmatpush1.bf16.msra.mxu0 0
  %179 = vmatprep.mubr.bf16.mxu0 0
  %180 = vmatmul.mubr.bf16.gmra.mrb[0].mxu0 %v63
  %v181 = vpop.f32.mrb[0].mxu0
  %v182 = vadd.f32 0.0, %v181
  %v183 = vpop.f32.mrb[0].mxu0
  %v184 = vadd.f32 0.0, %v183
  %v185 = vpop.f32.mrb[0].mxu0
  %v186 = vadd.f32 0.0, %v185
  %v187 = vpop.f32.mrb[0].mxu0
  %v188 = vadd.f32 0.0, %v187
  %189 = vmatprep.mubr.bf16.mxu0 0
  %190 = vmatmul.mubr.bf16.gmra.mrb[0].mxu0 %v64
  %v191 = vpop.f32.mrb[0].mxu0
  %v192 = vadd.f32 0.0, %v191
  %v193 = vpop.f32.mrb[0].mxu0
  %v194 = vadd.f32 0.0, %v193
  %v195 = vpop.f32.mrb[0].mxu0
  %v196 = vadd.f32 0.0, %v195
  %v197 = vpop.f32.mrb[0].mxu0
  %v198 = vadd.f32 0.0, %v197
  %199 = vdwg.mxu0
  %v200 = vadd.f32 %v27, %v182
  %v201 = vadd.f32 %v28, %v184
  %v202 = vadd.f32 %v29, %v186
  %v203 = vadd.f32 %v30, %v188
  %v204 = vadd.f32 %v31, %v192
  %v205 = vadd.f32 %v32, %v194
  %v206 = vadd.f32 %v33, %v196
  %v207 = vadd.f32 %v34, %v198
  %208 = vst [vmem:[#allocation2] sm:$0xff] %v200
  %209 = vst [vmem:[#allocation2 + $0x8] sm:$0xff] %v201
  %210 = vst [vmem:[#allocation2 + $0x10] sm:$0xff] %v202
  %211 = vst [vmem:[#allocation2 + $0x18] sm:$0xff] %v203
  %212 = vst [vmem:[#allocation2 + $0x20] sm:$0xff] %v204
  %213 = vst [vmem:[#allocation2 + $0x28] sm:$0xff] %v205
  %214 = vst [vmem:[#allocation2 + $0x30] sm:$0xff] %v206
  %215 = vst [vmem:[#allocation2 + $0x38] sm:$0xff] %v207
  // Predicated region
  $region18: #{gpt2_forward.15} parent=0 // pred_check
    %p216 = pneg %p15
  $region19: #{gpt2_forward.15} parent=0 // pred_check_branch
    %218 = sbr.rel (%p216) target = $region21
  $region20: #{gpt2_forward.15} parent=0 // pred_region
    %v219 = vld [vmem:[#allocation2] sm:$0xff]
    %v220 = vld [vmem:[#allocation2 + $0x8] sm:$0xff]
    %v221 = vld [vmem:[#allocation2 + $0x10] sm:$0xff]
    %v222 = vld [vmem:[#allocation2 + $0x18] sm:$0xff]
    %v223 = vld [vmem:[#allocation2 + $0x20] sm:$0xff]
    %v224 = vld [vmem:[#allocation2 + $0x28] sm:$0xff]
    %v225 = vld [vmem:[#allocation2 + $0x30] sm:$0xff]
    %v226 = vld [vmem:[#allocation2 + $0x38] sm:$0xff]
    %v227 = vld [vmem:[%s2] sm:$0x3]
    %v229 = vlaneseq
    %v230 = vshrl.u32 %v229, 7
    %v231 = vsub.s32 0, %v230
    %v232 = vrot.slane %v227, %v231
    %v233 = vlaneseq
    %v234 = vshrl.u32 %v233, 7
    %v235 = vsub.s32 1, %v234
    %v236 = vrot.slane %v227, %v235
    %v239 = vadd.f32 %v219, %v232
    %v240 = vadd.f32 %v220, %v236
    %v241 = vadd.f32 %v221, %v232
    %v242 = vadd.f32 %v222, %v236
    %v243 = vadd.f32 %v223, %v232
    %v244 = vadd.f32 %v224, %v236
    %v245 = vadd.f32 %v225, %v232
    %v246 = vadd.f32 %v226, %v236
    %v247 = vmul.f32 %v239, 0.5
    %v248 = vmul.f32 %v240, 0.5
    %v249 = vmul.f32 %v241, 0.5
    %v250 = vmul.f32 %v242, 0.5
    %v251 = vmul.f32 %v243, 0.5
    %v252 = vmul.f32 %v244, 0.5
    %v253 = vmul.f32 %v245, 0.5
    %v254 = vmul.f32 %v246, 0.5
    %v255 = vmul.f32 %v239, 0.70710677
    %v256 = vmul.f32 %v240, 0.70710677
    %v257 = vmul.f32 %v241, 0.70710677
    %v258 = vmul.f32 %v242, 0.70710677
    %v259 = vmul.f32 %v243, 0.70710677
    %v260 = vmul.f32 %v244, 0.70710677
    %v261 = vmul.f32 %v245, 0.70710677
    %v262 = vmul.f32 %v246, 0.70710677
    %v263 = verf.f32.pop %v255
    %v264 = verf.f32.pop %v256
    %v265 = verf.f32.pop %v257
    %v266 = verf.f32.pop %v258
    %v267 = verf.f32.pop %v259
    %v268 = verf.f32.pop %v260
    %v269 = verf.f32.pop %v261
    %v270 = verf.f32.pop %v262
    %v271 = vadd.f32 %v263, 1.0
    %v272 = vadd.f32 %v264, 1.0
    %v273 = vadd.f32 %v265, 1.0
    %v274 = vadd.f32 %v266, 1.0
    %v275 = vadd.f32 %v267, 1.0
    %v276 = vadd.f32 %v268, 1.0
    %v277 = vadd.f32 %v269, 1.0
    %v278 = vadd.f32 %v270, 1.0
    %v279 = vmul.f32 %v247, %v271
    %v280 = vmul.f32 %v248, %v272
    %v281 = vmul.f32 %v249, %v273
    %v282 = vmul.f32 %v250, %v274
    %v283 = vmul.f32 %v251, %v275
    %v284 = vmul.f32 %v252, %v276
    %v285 = vmul.f32 %v253, %v277
    %v286 = vmul.f32 %v254, %v278
    %v287 = vpack.c.bf16 %v281, %v279
    %v288 = vpack.c.bf16 %v282, %v280
    %v289 = vpack.c.bf16 %v285, %v283
    %v290 = vpack.c.bf16 %v286, %v284
    %v295 = vunpack.c.l.b16 %v287
    %v296 = vunpack.c.l.b16 %v288
    %v297 = vunpack.c.h.b16 %v287
    %v298 = vunpack.c.h.b16 %v288
    %v299 = vunpack.c.l.b16 %v289
    %v300 = vunpack.c.l.b16 %v290
    %v301 = vunpack.c.h.b16 %v289
    %v302 = vunpack.c.h.b16 %v290
    %v303 = vpack.c.b16 %v296, %v295
    %v304 = vpack.c.b16 %v298, %v297
    %v305 = vpack.c.b16 %v300, %v299
    %v306 = vpack.c.b16 %v302, %v301
    %311 = vst [vmem:[%s3] sm:$0xff] %v303
    %312 = vst [vmem:[%s3 + $0x8] sm:$0xff] %v304
    %313 = vst [vmem:[%s3 + $0x10] sm:$0xff] %v305
    %314 = vst [vmem:[%s3 + $0x18] sm:$0xff] %v306
  $region21: #{gpt2_forward.15} parent=0 // pred_fallthru
    _
  // Predicated region
  $region22: #{gpt2_forward.15} parent=0 // pred_check
    _
  $region23: #{gpt2_forward.15} parent=0 // pred_check_branch
    %316 = sbr.rel (0) target = $region25
  $region24: #{gpt2_forward.15} parent=0 // pred_region
    _
  $region25: #{gpt2_forward.15} parent=0 // pred_fallthru
    _
  // Predicated region
  $region26: #{gpt2_forward.15} parent=0 // pred_check
    _
  $region27: #{gpt2_forward.15} parent=0 // pred_check_branch
    %318 = sbr.rel (0) target = $region29
  $region28: #{gpt2_forward.15} parent=0 // pred_region
    _
  $region29: #{gpt2_forward.15} parent=0 // pred_fallthru
    _

// kernel: gpt2_forward.14
$region0: #{gpt2_forward.14}
  #allocation0 [shape = 'u32[]', space=smem, size = 0x4, offset = 0x4, fixed_abs, tag = 'smem constant byte address 0x4 - core index']
  #allocation1 [shape = 'u32[144,128]{1,0:T(1,128)}', space=vmem, size = 0x12000, scoped, tag = 'internal scratch']
  #allocation2 [shape = 'f32[32,128]{1,0:T(8,128)}', space=vmem, size = 0x4000, scoped, tag = 'scratch operand']
  %s0 = inlined_call_operand.vmem [shape: bf16[32,128], index: 0, kind: input, shape index: {}]
  %s1 = inlined_call_operand.vmem [shape: bf16[128,128], index: 1, kind: input, shape index: {}]
  %s2 = inlined_call_operand.vmem [shape: f32[1,128], index: 2, kind: input, shape index: {}]
  %s3 = inlined_call_operand.vmem [shape: bf16[32,128], index: 3, kind: input, shape index: {}]
  %s4 = inlined_call_operand.vmem [shape: f32[1,128], index: 4, kind: input, shape index: {}]
  %s5 = inlined_call_operand.vmem [shape: f32[1,128], index: 5, kind: input, shape index: {}]
  %s6 = inlined_call_operand.vmem [shape: bf16[32,128], index: 6, kind: output, shape index: {}]
  %s7 = sld [smem:[#allocation0]]
  $region42: #{gpt2_forward.14} parent=0
    _
  %s9 = ssub.s32 1, %s7
  %s10 = scalar_select 0, %s9, %s7
  // Predicated region
  $region2: #{gpt2_forward.14} parent=0 // pred_check
    _
  $region3: #{gpt2_forward.14} parent=0 // pred_check_branch
    %12 = sbr.rel (0) target = $region5
  $region4: #{gpt2_forward.14} parent=0 // pred_region
    _
  $region5: #{gpt2_forward.14} parent=0 // pred_fallthru
    _
  // Predicated region
  $region6: #{gpt2_forward.14} parent=0 // pred_check
    _
  $region7: #{gpt2_forward.14} parent=0 // pred_check_branch
    %14 = sbr.rel (0) target = $region9
  $region8: #{gpt2_forward.14} parent=0 // pred_region
    _
  $region9: #{gpt2_forward.14} parent=0 // pred_fallthru
    _
  // Predicated region
  $region10: #{gpt2_forward.14} parent=0 // pred_check
    _
  $region11: #{gpt2_forward.14} parent=0 // pred_check_branch
    %16 = sbr.rel (0) target = $region13
  $region12: #{gpt2_forward.14} parent=0 // pred_region
    _
  $region13: #{gpt2_forward.14} parent=0 // pred_fallthru
    _
  // Predicated region
  $region14: #{gpt2_forward.14} parent=0 // pred_check
    _
  $region15: #{gpt2_forward.14} parent=0 // pred_check_branch
    %18 = sbr.rel (0) target = $region17
  $region16: #{gpt2_forward.14} parent=0 // pred_region
    _
  $region17: #{gpt2_forward.14} parent=0 // pred_fallthru
    _
  // Predicated region
  $region18: #{gpt2_forward.14} parent=0 // pred_check
    _
  $region19: #{gpt2_forward.14} parent=0 // pred_check_branch
    %20 = sbr.rel (0) target = $region21
  $region20: #{gpt2_forward.14} parent=0 // pred_region
    _
  $region21: #{gpt2_forward.14} parent=0 // pred_fallthru
    _
  // Predicated region
  $region22: #{gpt2_forward.14} parent=0 // pred_check
    _
  $region23: #{gpt2_forward.14} parent=0 // pred_check_branch
    %22 = sbr.rel (0) target = $region25
  $region24: #{gpt2_forward.14} parent=0 // pred_region
    _
  $region25: #{gpt2_forward.14} parent=0 // pred_fallthru
    _
  %p24 = scmp.eq.s32.totalorder 0, 0
  // Predicated region
  $region26: #{gpt2_forward.14} parent=0 // pred_check
    %p25 = pneg %p24
  $region27: #{gpt2_forward.14} parent=0 // pred_check_branch
    %27 = sbr.rel (%p25) target = $region29
  $region28: #{gpt2_forward.14} parent=0 // pred_region
    %28 = vst [vmem:[#allocation2] sm:$0xff] 0.0
    %29 = vst [vmem:[#allocation2 + $0x8] sm:$0xff] 0.0
    %30 = vst [vmem:[#allocation2 + $0x10] sm:$0xff] 0.0
    %31 = vst [vmem:[#allocation2 + $0x18] sm:$0xff] 0.0
  $region29: #{gpt2_forward.14} parent=0 // pred_fallthru
    _
  %v32 = vld [vmem:[#allocation2] sm:$0xff]
  %v33 = vld [vmem:[#allocation2 + $0x8] sm:$0xff]
  %v34 = vld [vmem:[#allocation2 + $0x10] sm:$0xff]
  %v35 = vld [vmem:[#allocation2 + $0x18] sm:$0xff]
  %v36 = vld [vmem:[%s0] sm:$0xf]
  %v37 = vld [vmem:[%s0 + $0x4] sm:$0xf]
  %v38 = vld [vmem:[%s0 + $0x8] sm:$0xf]
  %v39 = vld [vmem:[%s0 + $0xc] sm:$0xf]
  %v40 = vld [vmem:[%s1] sm:$0xf]
  %v41 = vld [vmem:[%s1 + $0x4] sm:$0xf]
  %v42 = vld [vmem:[%s1 + $0x8] sm:$0xf]
  %v43 = vld [vmem:[%s1 + $0xc] sm:$0xf]
  %v44 = vld [vmem:[%s1 + $0x10] sm:$0xf]
  %v45 = vld [vmem:[%s1 + $0x14] sm:$0xf]
  %v46 = vld [vmem:[%s1 + $0x18] sm:$0xf]
  %v47 = vld [vmem:[%s1 + $0x1c] sm:$0xf]
  %v48 = vld [vmem:[%s1 + $0x20] sm:$0xf]
  %v49 = vld [vmem:[%s1 + $0x24] sm:$0xf]
  %v50 = vld [vmem:[%s1 + $0x28] sm:$0xf]
  %v51 = vld [vmem:[%s1 + $0x2c] sm:$0xf]
  %v52 = vld [vmem:[%s1 + $0x30] sm:$0xf]
  %v53 = vld [vmem:[%s1 + $0x34] sm:$0xf]
  %v54 = vld [vmem:[%s1 + $0x38] sm:$0xf]
  %v55 = vld [vmem:[%s1 + $0x3c] sm:$0xf]
  %v60 = vunpack.c.l.b16 %v36
  %v61 = vunpack.c.l.b16 %v37
  %v62 = vunpack.c.l.b16 %v38
  %v63 = vunpack.c.l.b16 %v39
  %v64 = vpack.c.b16 %v61, %v60
  %v65 = vpack.c.b16 %v63, %v62
  %v84 = vunpack.c.l.b16 %v40
  %v85 = vunpack.c.l.b16 %v41
  %v86 = vunpack.c.l.b16 %v42
  %v87 = vunpack.c.l.b16 %v43
  %v88 = vunpack.c.l.b16 %v44
  %v89 = vunpack.c.l.b16 %v45
  %v90 = vunpack.c.l.b16 %v46
  %v91 = vunpack.c.l.b16 %v47
  %v92 = vunpack.c.l.b16 %v48
  %v93 = vunpack.c.l.b16 %v49
  %v94 = vunpack.c.l.b16 %v50
  %v95 = vunpack.c.l.b16 %v51
  %v96 = vunpack.c.l.b16 %v52
  %v97 = vunpack.c.l.b16 %v53
  %v98 = vunpack.c.l.b16 %v54
  %v99 = vunpack.c.l.b16 %v55
  %v100 = vpack.c.b16 %v85, %v84
  %v101 = vpack.c.b16 %v87, %v86
  %v102 = vpack.c.b16 %v89, %v88
  %v103 = vpack.c.b16 %v91, %v90
  %v104 = vpack.c.b16 %v93, %v92
  %v105 = vpack.c.b16 %v95, %v94
  %v106 = vpack.c.b16 %v97, %v96
  %v107 = vpack.c.b16 %v99, %v98
  %116 = vmatprep.subr.bf16.mxu0 0
  %117 = vmatpush1.bf16.msra.mxu0 %v100
  %118 = vmatprep.subr.bf16.mxu0 0
  %119 = vmatpush1.bf16.msra.mxu0 %v101
  %120 = vmatprep.subr.bf16.mxu0 0
  %121 = vmatpush1.bf16.msra.mxu0 %v102
  %122 = vmatprep.subr.bf16.mxu0 0
  %123 = vmatpush1.bf16.msra.mxu0 %v103
  %124 = vmatprep.subr.bf16.mxu0 0
  %125 = vmatpush1.bf16.msra.mxu0 %v104
  %126 = vmatprep.subr.bf16.mxu0 0
  %127 = vmatpush1.bf16.msra.mxu0 %v105
  %128 = vmatprep.subr.bf16.mxu0 0
  %129 = vmatpush1.bf16.msra.mxu0 %v106
  %130 = vmatprep.subr.bf16.mxu0 0
  %131 = vmatpush1.bf16.msra.mxu0 %v107
  %132 = vmatprep.subr.bf16.mxu0 0
  %133 = vmatpush1.bf16.msra.mxu0 0
  %134 = vmatprep.subr.bf16.mxu0 0
  %135 = vmatpush1.bf16.msra.mxu0 0
  %136 = vmatprep.subr.bf16.mxu0 0
  %137 = vmatpush1.bf16.msra.mxu0 0
  %138 = vmatprep.subr.bf16.mxu0 0
  %139 = vmatpush1.bf16.msra.mxu0 0
  %140 = vmatprep.subr.bf16.mxu0 0
  %141 = vmatpush1.bf16.msra.mxu0 0
  %142 = vmatprep.subr.bf16.mxu0 0
  %143 = vmatpush1.bf16.msra.mxu0 0
  %144 = vmatprep.subr.bf16.mxu0 0
  %145 = vmatpush1.bf16.msra.mxu0 0
  %146 = vmatprep.subr.bf16.mxu0 0
  %147 = vmatpush1.bf16.msra.mxu0 0
  %148 = vmatprep.mubr.bf16.mxu0 0
  %149 = vmatmul.mubr.bf16.gmra.mrb[0].mxu0 %v64
  %v150 = vpop.f32.mrb[0].mxu0
  %v151 = vadd.f32 0.0, %v150
  %v152 = vpop.f32.mrb[0].mxu0
  %v153 = vpop.f32.mrb[0].mxu0
  %v154 = vadd.f32 0.0, %v153
  %v155 = vpop.f32.mrb[0].mxu0
  %156 = vmatprep.mubr.bf16.mxu0 0
  %157 = vmatmul.mubr.bf16.gmra.mrb[0].mxu0 %v65
  %v158 = vpop.f32.mrb[0].mxu0
  %v159 = vadd.f32 0.0, %v158
  %v160 = vpop.f32.mrb[0].mxu0
  %v161 = vpop.f32.mrb[0].mxu0
  %v162 = vadd.f32 0.0, %v161
  %v163 = vpop.f32.mrb[0].mxu0
  %164 = vdwg.mxu0
  %v165 = vadd.f32 %v32, %v151
  %v166 = vadd.f32 %v33, %v154
  %v167 = vadd.f32 %v34, %v159
  %v168 = vadd.f32 %v35, %v162
  %169 = vst [vmem:[#allocation2] sm:$0xff] %v165
  %170 = vst [vmem:[#allocation2 + $0x8] sm:$0xff] %v166
  %171 = vst [vmem:[#allocation2 + $0x10] sm:$0xff] %v167
  %172 = vst [vmem:[#allocation2 + $0x18] sm:$0xff] %v168
  // Predicated region
  $region30: #{gpt2_forward.14} parent=0 // pred_check
    %p173 = pneg %p24
  $region31: #{gpt2_forward.14} parent=0 // pred_check_branch
    %175 = sbr.rel (%p173) target = $region33
  $region32: #{gpt2_forward.14} parent=0 // pred_region
    %v176 = vld [vmem:[#allocation2] sm:$0xff]
    %v177 = vld [vmem:[#allocation2 + $0x8] sm:$0xff]
    %v178 = vld [vmem:[#allocation2 + $0x10] sm:$0xff]
    %v179 = vld [vmem:[#allocation2 + $0x18] sm:$0xff]
    %v180 = vld [vmem:[%s2] sm:$0x1]
    %v182 = vlaneseq
    %v183 = vshrl.u32 %v182, 7
    %v184 = vsub.s32 0, %v183
    %v185 = vrot.slane %v180, %v184
    %v187 = vadd.f32 %v176, %v185
    %v188 = vadd.f32 %v177, %v185
    %v189 = vadd.f32 %v178, %v185
    %v190 = vadd.f32 %v179, %v185
    %v191 = vld [vmem:[%s3] sm:$0xf]
    %v192 = vld [vmem:[%s3 + $0x4] sm:$0xf]
    %v193 = vld [vmem:[%s3 + $0x8] sm:$0xf]
    %v194 = vld [vmem:[%s3 + $0xc] sm:$0xf]
    %v195 = vunpack.c.l.bf16 %v191
    %v196 = vunpack.c.l.bf16 %v192
    %v197 = vunpack.c.l.bf16 %v193
    %v198 = vunpack.c.l.bf16 %v194
    %v199 = vadd.f32 %v195, %v187
    %v200 = vadd.f32 %v196, %v188
    %v201 = vadd.f32 %v197, %v189
    %v202 = vadd.f32 %v198, %v190
    %203 = vadd.xlane.f32.xlu0 %v199
    %v204 = vpop.xlane.xlu0 %203
    %205 = vadd.xlane.f32.xlu0 %v200
    %v206 = vpop.xlane.xlu0 %205
    %207 = vadd.xlane.f32.xlu0 %v201
    %v208 = vpop.xlane.xlu0 %207
    %209 = vadd.xlane.f32.xlu0 %v202
    %v210 = vpop.xlane.xlu0 %209
    %v211 = vrcp.pop 128.0
    %v212 = vmul.f32 %v204, %v211
    %v213 = vmul.f32 %v206, %v211
    %v214 = vmul.f32 %v208, %v211
    %v215 = vmul.f32 %v210, %v211
    %v216 = vsub.f32 %v199, %v212
    %v217 = vsub.f32 %v200, %v213
    %v218 = vsub.f32 %v201, %v214
    %v219 = vsub.f32 %v202, %v215
    %v220 = vmul.f32 %v216, %v216
    %v221 = vmul.f32 %v217, %v217
    %v222 = vmul.f32 %v218, %v218
    %v223 = vmul.f32 %v219, %v219
    %224 = vadd.xlane.f32.xlu0 %v220
    %v225 = vpop.xlane.xlu0 %224
    %226 = vadd.xlane.f32.xlu0 %v221
    %v227 = vpop.xlane.xlu0 %226
    %228 = vadd.xlane.f32.xlu0 %v222
    %v229 = vpop.xlane.xlu0 %228
    %230 = vadd.xlane.f32.xlu0 %v223
    %v231 = vpop.xlane.xlu0 %230
    %v232 = vmul.f32 %v225, %v211
    %v233 = vmul.f32 %v227, %v211
    %v234 = vmul.f32 %v229, %v211
    %v235 = vmul.f32 %v231, %v211
    %v236 = vadd.f32 %v232, 1e-05
    %v237 = vadd.f32 %v233, 1e-05
    %v238 = vadd.f32 %v234, 1e-05
    %v239 = vadd.f32 %v235, 1e-05
    %v240 = vrsqrt.pop %v236
    %v241 = vrsqrt.pop %v237
    %v242 = vrsqrt.pop %v238
    %v243 = vrsqrt.pop %v239
    %v244 = vmul.f32 %v216, %v240
    %v245 = vmul.f32 %v217, %v241
    %v246 = vmul.f32 %v218, %v242
    %v247 = vmul.f32 %v219, %v243
    %v248 = vld [vmem:[%s4] sm:$0x1]
    %v250 = vlaneseq
    %v251 = vshrl.u32 %v250, 7
    %v252 = vsub.s32 0, %v251
    %v253 = vrot.slane %v248, %v252
    %v255 = vmul.f32 %v244, %v253
    %v256 = vmul.f32 %v245, %v253
    %v257 = vmul.f32 %v246, %v253
    %v258 = vmul.f32 %v247, %v253
    %v259 = vld [vmem:[%s5] sm:$0x1]
    %v261 = vlaneseq
    %v262 = vshrl.u32 %v261, 7
    %v263 = vsub.s32 0, %v262
    %v264 = vrot.slane %v259, %v263
    %v266 = vadd.f32 %v255, %v264
    %v267 = vadd.f32 %v256, %v264
    %v268 = vadd.f32 %v257, %v264
    %v269 = vadd.f32 %v258, %v264
    %v270 = vpack.c.bf16 %v267, %v266
    %v271 = vpack.c.bf16 %v269, %v268
    %v274 = vunpack.c.l.b16 %v270
    %v275 = vunpack.c.h.b16 %v270
    %v276 = vunpack.c.l.b16 %v271
    %v277 = vunpack.c.h.b16 %v271
    %v278 = vpack.c.b16 %v274, %v274
    %v279 = vpack.c.b16 %v275, %v275
    %v280 = vpack.c.b16 %v276, %v276
    %v281 = vpack.c.b16 %v277, %v277
    %286 = vst [vmem:[%s6] sm:$0xf] %v278
    %287 = vst [vmem:[%s6 + $0x4] sm:$0xf] %v279
    %288 = vst [vmem:[%s6 + $0x8] sm:$0xf] %v280
    %289 = vst [vmem:[%s6 + $0xc] sm:$0xf] %v281
  $region33: #{gpt2_forward.14} parent=0 // pred_fallthru
    _
  // Predicated region
  $region34: #{gpt2_forward.14} parent=0 // pred_check
    _
  $region35: #{gpt2_forward.14} parent=0 // pred_check_branch
    %291 = sbr.rel (0) target = $region37
  $region36: #{gpt2_forward.14} parent=0 // pred_region
    _
  $region37: #{gpt2_forward.14} parent=0 // pred_fallthru
    _
  // Predicated region
  $region38: #{gpt2_forward.14} parent=0 // pred_check
    _
  $region39: #{gpt2_forward.14} parent=0 // pred_check_branch
    %293 = sbr.rel (0) target = $region41
  $region40: #{gpt2_forward.14} parent=0 // pred_region
    _
  $region41: #{gpt2_forward.14} parent=0 // pred_fallthru
    _

// kernel: gpt2_forward.13
$region0: #{gpt2_forward.13}
  #allocation0 [shape = 'u32[]', space=smem, size = 0x4, offset = 0x4, fixed_abs, tag = 'smem constant byte address 0x4 - core index']
  #allocation1 [shape = 'u32[144,128]{1,0:T(1,128)}', space=vmem, size = 0x12000, scoped, tag = 'internal scratch']
  #allocation2 [shape = 'f32[4,16,1]{2,1,0:T(8,128)}', space=vmem, size = 0x8000, scoped, tag = 'scratch operand']
  #allocation3 [shape = 'f32[4,16,1]{2,1,0:T(8,128)}', space=vmem, size = 0x8000, scoped, tag = 'scratch operand']
  #allocation4 [shape = 'f32[4,16,32]{2,1,0:T(8,128)}', space=vmem, size = 0x8000, scoped, tag = 'scratch operand']
  %s0 = inlined_call_operand.vmem [shape: bf16[2,16,384], index: 0, kind: input, shape index: {}, may-alias: {0,1,2}]
  %s1 = inlined_call_operand.vmem [shape: bf16[2,16,384], index: 1, kind: input, shape index: {}, may-alias: {0,1,2}]
  %s2 = inlined_call_operand.vmem [shape: bf16[2,16,384], index: 2, kind: input, shape index: {}, may-alias: {0,1,2}]
  %s3 = inlined_call_operand.vmem [shape: bf16[2,16,128], index: 3, kind: output, shape index: {}]
  %s4 = sld [smem:[#allocation0]]
  $region180: #{gpt2_forward.13} parent=0
    _
  %s6 = ssub.s32 1, %s4
  %s7 = scalar_select 0, %s6, %s4
  $region1: #{gpt2_forward.13} parent=0
    #allocation5 [shape = 'u8[8192]{0}', space=vmem, size = 0x2000, scoped, tag = 'input window, operand 0']
    #allocation6 [shape = 'u8[8192]{0}', space=vmem, size = 0x2000, scoped, tag = 'input window, operand 1']
    #allocation7 [shape = 'u8[8192]{0}', space=vmem, size = 0x2000, scoped, tag = 'input window, operand 2']
    loop: start=0, step=1, limit=4
    $region2: #{gpt2_forward.13} parent=1 // loop_pre_header
      _
    $region3: #{gpt2_forward.13} parent=1 // loop_header
      %s9 = sphi 0, %s13
      %p10 = scmp.ge.s32.totalorder %s9, 4
      %s16 = sphi 0, %s35
      %s17 = sphi 0, %s31
      %s18 = sphi 0, %s27
      %s19 = sphi 0, %s16
      %s20 = sphi 0, %s17
      %s21 = sphi 0, %s18
      %s22 = sphi 0, %s19
      %s23 = sphi 0, %s20
      %s24 = sphi 0, %s21
      %s40 = sphi 0, %s42
      %s43 = sphi 0, %s40
      %s44 = sphi 0, %s43
      %s60 = sphi 0, %s44
      %s68 = sphi 0, %s70
      %s71 = sphi 0, %s68
      %s72 = sphi 0, %s71
      %s88 = sphi 0, %s72
      %s96 = sphi 0, %s98
      %s99 = sphi 0, %s96
      %s100 = sphi 0, %s99
      %s116 = sphi 0, %s100
      %s124 = sphi 0, %s126
      %s127 = sphi 0, %s124
      %s128 = sphi 0, %s127
      %s144 = sphi 0, %s128
    $region4: #{gpt2_forward.13} parent=1 // loop_header_branch
      %12 = sbr.rel (%p10) target = $region8
    $region5: #{gpt2_forward.13} parent=1 // loop_body
      %s14 = ssub.s32 %s9, 1
      %s15 = ssub.s32 %s9, 2
      %s25 = sadd.s32 1, %s18
      %p26 = scmp.ge.s32.totalorder %s25, 1
      %s27 = scalar_select %p26, 0, %s25
      %s28 = sadd.s32 1, %s17
      %s29 = scalar_select %p26, %s28, %s17
      %p30 = scmp.ge.s32.totalorder %s29, 1
      %s31 = scalar_select %p30, 0, %s29
      %s32 = sadd.s32 1, %s16
      %s33 = scalar_select %p30, %s32, %s16
      %p34 = scmp.ge.s32.totalorder %s33, 2
      %s35 = scalar_select %p34, 0, %s33
      %s36 = ssub.s32 %s16, %s35
      %s37 = ssub.s32 %s17, %s31
      %s38 = sor.u32 %s36, %s37
      %p39 = scmp.eq.s32.totalorder %s38, 0
      %s41 = sadd.s32 %s40, 1
      %s42 = scalar_select %p39, %s40, %s41
      %p45 = pneg %p39
      %p46 = scmp.eq.s32.totalorder %s9, 1
      %p47 = por %p45, %p46
      %p48 = scmp.ne.s32.totalorder %s40, %s43
      %p49 = scmp.eq.s32.totalorder %s9, 0
      %p50 = por %p48, %p49
      %p51 = scmp.ne.s32.totalorder %s40, %s43
      %p52 = scmp.eq.s32.totalorder %s14, 1
      %p53 = por %p51, %p52
      %p54 = scmp.ne.s32.totalorder %s43, %s44
      %p55 = scmp.eq.s32.totalorder %s14, 0
      %p56 = por %p54, %p55
      %p57 = scmp.ne.s32.totalorder %s43, %s44
      %p58 = scmp.eq.s32.totalorder %s15, 1
      %p59 = por %p57, %p58
      %p61 = scmp.ne.s32.totalorder %s44, %s60
      %p62 = scmp.eq.s32.totalorder %s15, 0
      %p63 = por %p61, %p62
      %s64 = ssub.s32 %s16, %s35
      %s65 = ssub.s32 %s18, %s27
      %s66 = sor.u32 %s64, %s65
      %p67 = scmp.eq.s32.totalorder %s66, 0
      %s69 = sadd.s32 %s68, 1
      %s70 = scalar_select %p67, %s68, %s69
      %p73 = pneg %p67
      %p74 = scmp.eq.s32.totalorder %s9, 1
      %p75 = por %p73, %p74
      %p76 = scmp.ne.s32.totalorder %s68, %s71
      %p77 = scmp.eq.s32.totalorder %s9, 0
      %p78 = por %p76, %p77
      %p79 = scmp.ne.s32.totalorder %s68, %s71
      %p80 = scmp.eq.s32.totalorder %s14, 1
      %p81 = por %p79, %p80
      %p82 = scmp.ne.s32.totalorder %s71, %s72
      %p83 = scmp.eq.s32.totalorder %s14, 0
      %p84 = por %p82, %p83
      %p85 = scmp.ne.s32.totalorder %s71, %s72
      %p86 = scmp.eq.s32.totalorder %s15, 1
      %p87 = por %p85, %p86
      %p89 = scmp.ne.s32.totalorder %s72, %s88
      %p90 = scmp.eq.s32.totalorder %s15, 0
      %p91 = por %p89, %p90
      %s92 = ssub.s32 %s16, %s35
      %s93 = ssub.s32 %s18, %s27
      %s94 = sor.u32 %s92, %s93
      %p95 = scmp.eq.s32.totalorder %s94, 0
      %s97 = sadd.s32 %s96, 1
      %s98 = scalar_select %p95, %s96, %s97
      %p101 = pneg %p95
      %p102 = scmp.eq.s32.totalorder %s9, 1
      %p103 = por %p101, %p102
      %p104 = scmp.ne.s32.totalorder %s96, %s99
      %p105 = scmp.eq.s32.totalorder %s9, 0
      %p106 = por %p104, %p105
      %p107 = scmp.ne.s32.totalorder %s96, %s99
      %p108 = scmp.eq.s32.totalorder %s14, 1
      %p109 = por %p107, %p108
      %p110 = scmp.ne.s32.totalorder %s99, %s100
      %p111 = scmp.eq.s32.totalorder %s14, 0
      %p112 = por %p110, %p111
      %p113 = scmp.ne.s32.totalorder %s99, %s100
      %p114 = scmp.eq.s32.totalorder %s15, 1
      %p115 = por %p113, %p114
      %p117 = scmp.ne.s32.totalorder %s100, %s116
      %p118 = scmp.eq.s32.totalorder %s15, 0
      %p119 = por %p117, %p118
      %s120 = ssub.s32 %s16, %s35
      %s121 = ssub.s32 %s17, %s31
      %s122 = sor.u32 %s120, %s121
      %p123 = scmp.eq.s32.totalorder %s122, 0
      %s125 = sadd.s32 %s124, 1
      %s126 = scalar_select %p123, %s124, %s125
      %p129 = pneg %p123
      %p130 = scmp.eq.s32.totalorder %s9, 1
      %p131 = por %p129, %p130
      %p132 = scmp.ne.s32.totalorder %s124, %s127
      %p133 = scmp.eq.s32.totalorder %s9, 0
      %p134 = por %p132, %p133
      %p135 = scmp.ne.s32.totalorder %s124, %s127
      %p136 = scmp.eq.s32.totalorder %s14, 1
      %p137 = por %p135, %p136
      %p138 = scmp.ne.s32.totalorder %s127, %s128
      %p139 = scmp.eq.s32.totalorder %s14, 0
      %p140 = por %p138, %p139
      %p141 = scmp.ne.s32.totalorder %s127, %s128
      %p142 = scmp.eq.s32.totalorder %s15, 1
      %p143 = por %p141, %p142
      %p145 = scmp.ne.s32.totalorder %s128, %s144
      %p146 = scmp.eq.s32.totalorder %s15, 0
      %p147 = por %p145, %p146
      %p148 = scmp.le.s32.totalorder 1, %s9
      %p149 = scmp.lt.s32.totalorder %s9, 3
      %p150 = pnand %p148, %p149
      %p151 = pneg %p150
      // Predicated region
      $region9: #{gpt2_forward.13} parent=5 // pred_check
        _
      $region10: #{gpt2_forward.13} parent=5 // pred_check_branch
        %153 = sbr.rel (%p150) target = $region12
      $region11: #{gpt2_forward.13} parent=5 // pred_region
        %s154 = ssub.s32 %s9, 1
      $region12: #{gpt2_forward.13} parent=5 // pred_fallthru
        _
      %p155 = scmp.lt.s32.totalorder %s9, 2
      // Predicated region
      $region13: #{gpt2_forward.13} parent=5 // pred_check
        %p156 = pneg %p155
      $region14: #{gpt2_forward.13} parent=5 // pred_check_branch
        %158 = sbr.rel (%p156) target = $region16
      $region15: #{gpt2_forward.13} parent=5 // pred_region
        // Predicated region
        $region17: #{gpt2_forward.13} parent=15 // pred_check
          %p159 = pneg %p50
        $region18: #{gpt2_forward.13} parent=15 // pred_check_branch
          %161 = sbr.rel (%p159) target = $region20
        $region19: #{gpt2_forward.13} parent=15 // pred_region
          %s162 = sand.u32 %s40, 1
          %s163 = sand.u32 %s40, 1
          %s164 = smul.addr %s163, 8
          %s165 = scalar_lea.vmem [#allocation5], %s164
          %s166 = smul.u32 2, %s17
          %s167 = smul.addr %s166, 3
          %s168 = smul.addr %s16, 6
          %s169 = sadd.s32 %s167, %s168
          %s170 = smul.addr %s169, 4
          %s171 = scalar_lea.vmem %s0, %s170
          // Predicated region
          $region21: #{gpt2_forward.13} parent=19 // pred_check
            _
          $region22: #{gpt2_forward.13} parent=19 // pred_check_branch
            %173 = sbr.rel (0) target = $region24
          $region23: #{gpt2_forward.13} parent=19 // pred_region
            // Predicated region
            $region25: #{gpt2_forward.13} parent=23 // pred_check
              _
            $region26: #{gpt2_forward.13} parent=23 // pred_check_branch
              %175 = sbr.rel target = $region28
            $region27: #{gpt2_forward.13} parent=23 // pred_region
              // Predicated region
              $region40: #{gpt2_forward.13} parent=27 // pred_check
                _
              $region41: #{gpt2_forward.13} parent=27 // pred_check_branch
                %192 = sbr.rel (0) target = $region43
              $region42: #{gpt2_forward.13} parent=27 // pred_region
                loop: start=0, step=1, limit=1
                $region44: #{gpt2_forward.13} parent=42 // loop_pre_header
                  _
                $region45: #{gpt2_forward.13} parent=42 // loop_header
                  %s194 = sphi 0, %s198
                  %p195 = scmp.ge.s32.totalorder %s194, 1
                  %s199 = sphi %s171, %s171
                  %s200 = sphi %s165, %s165
                $region46: #{gpt2_forward.13} parent=42 // loop_header_branch
                  %197 = sbr.rel (%p195) target = $region50
                $region47: #{gpt2_forward.13} parent=42 // loop_body
                  _
                $region48: #{gpt2_forward.13} parent=42 // loop_footer
                  %s198 = sadd.s32 1, %s194
                $region49: #{gpt2_forward.13} parent=42 // loop_footer_branch
                  %193 = sbr.rel target = $region45
                $region50: #{gpt2_forward.13} parent=42 // loop_exit
                  _
                loop: start=0, step=1, limit=1
                $region51: #{gpt2_forward.13} parent=42 // loop_pre_header
                  _
                $region52: #{gpt2_forward.13} parent=42 // loop_header
                  %s203 = sphi 0, %s207
                  %p204 = scmp.ge.s32.totalorder %s203, 1
                  %s208 = sphi %s171, %s171
                  %s209 = sphi %s165, %s165
                $region53: #{gpt2_forward.13} parent=42 // loop_header_branch
                  %206 = sbr.rel (%p204) target = $region57
                $region54: #{gpt2_forward.13} parent=42 // loop_body
                  %v210 = vld [vmem:[%s208] sm:$0xf]
                  %211 = vst [vmem:[%s209] sm:$0xf] %v210
                  %v212 = vld [vmem:[%s208 + $0xc] sm:$0xf]
                  %213 = vst [vmem:[%s209 + $0x4] sm:$0xf] %v212
                $region55: #{gpt2_forward.13} parent=42 // loop_footer
                  %s207 = sadd.s32 1, %s203
                $region56: #{gpt2_forward.13} parent=42 // loop_footer_branch
                  %202 = sbr.rel target = $region52
                $region57: #{gpt2_forward.13} parent=42 // loop_exit
                  _
              $region43: #{gpt2_forward.13} parent=27 // pred_fallthru
                _
            $region28: #{gpt2_forward.13} parent=23 // pred_fallthru
              _
            // Predicated region
            $region29: #{gpt2_forward.13} parent=23 // pred_check
              _
            $region30: #{gpt2_forward.13} parent=23 // pred_check_branch
              %177 = sbr.rel (0) target = $region32
            $region31: #{gpt2_forward.13} parent=23 // pred_region
              loop: start=0, step=1, limit=1
              $region33: #{gpt2_forward.13} parent=31 // loop_pre_header
                _
              $region34: #{gpt2_forward.13} parent=31 // loop_header
                %s180 = sphi 0, %s184
                %p181 = scmp.ge.s32.totalorder %s180, 1
                %s185 = sphi %s171, %s171
                %s186 = sphi %s165, %s165
              $region35: #{gpt2_forward.13} parent=31 // loop_header_branch
                %183 = sbr.rel (%p181) target = $region39
              $region36: #{gpt2_forward.13} parent=31 // loop_body
                %v187 = vld [vmem:[%s185] sm:$0xf]
                %188 = vst [vmem:[%s186] sm:$0xf] %v187
                %v189 = vld [vmem:[%s185 + $0xc] sm:$0xf]
                %190 = vst [vmem:[%s186 + $0x4] sm:$0xf] %v189
              $region37: #{gpt2_forward.13} parent=31 // loop_footer
                %s184 = sadd.s32 1, %s180
              $region38: #{gpt2_forward.13} parent=31 // loop_footer_branch
                %179 = sbr.rel target = $region34
              $region39: #{gpt2_forward.13} parent=31 // loop_exit
                _
            $region32: #{gpt2_forward.13} parent=23 // pred_fallthru
              _
          $region24: #{gpt2_forward.13} parent=19 // pred_fallthru
            _
          %214 = vnop
        $region20: #{gpt2_forward.13} parent=15 // pred_fallthru
          _
        // Predicated region
        $region58: #{gpt2_forward.13} parent=15 // pred_check
          %p215 = pneg %p78
        $region59: #{gpt2_forward.13} parent=15 // pred_check_branch
          %217 = sbr.rel (%p215) target = $region61
        $region60: #{gpt2_forward.13} parent=15 // pred_region
          %s218 = sand.u32 %s68, 1
          %s219 = sand.u32 %s68, 1
          %s220 = smul.addr %s219, 8
          %s221 = scalar_lea.vmem [#allocation6], %s220
          %s222 = smul.u32 2, %s18
          %s223 = smul.addr %s222, 3
          %s224 = sadd.s32 1, %s223
          %s225 = smul.addr %s16, 6
          %s226 = sadd.s32 %s224, %s225
          %s227 = smul.addr %s226, 4
          %s228 = scalar_lea.vmem %s1, %s227
          // Predicated region
          $region62: #{gpt2_forward.13} parent=60 // pred_check
            _
          $region63: #{gpt2_forward.13} parent=60 // pred_check_branch
            %230 = sbr.rel (0) target = $region65
          $region64: #{gpt2_forward.13} parent=60 // pred_region
            // Predicated region
            $region66: #{gpt2_forward.13} parent=64 // pred_check
              _
            $region67: #{gpt2_forward.13} parent=64 // pred_check_branch
              %232 = sbr.rel target = $region69
            $region68: #{gpt2_forward.13} parent=64 // pred_region
              // Predicated region
              $region81: #{gpt2_forward.13} parent=68 // pred_check
                _
              $region82: #{gpt2_forward.13} parent=68 // pred_check_branch
                %249 = sbr.rel (0) target = $region84
              $region83: #{gpt2_forward.13} parent=68 // pred_region
                loop: start=0, step=1, limit=1
                $region85: #{gpt2_forward.13} parent=83 // loop_pre_header
                  _
                $region86: #{gpt2_forward.13} parent=83 // loop_header
                  %s251 = sphi 0, %s255
                  %p252 = scmp.ge.s32.totalorder %s251, 1
                  %s256 = sphi %s228, %s228
                  %s257 = sphi %s221, %s221
                $region87: #{gpt2_forward.13} parent=83 // loop_header_branch
                  %254 = sbr.rel (%p252) target = $region91
                $region88: #{gpt2_forward.13} parent=83 // loop_body
                  _
                $region89: #{gpt2_forward.13} parent=83 // loop_footer
                  %s255 = sadd.s32 1, %s251
                $region90: #{gpt2_forward.13} parent=83 // loop_footer_branch
                  %250 = sbr.rel target = $region86
                $region91: #{gpt2_forward.13} parent=83 // loop_exit
                  _
                loop: start=0, step=1, limit=1
                $region92: #{gpt2_forward.13} parent=83 // loop_pre_header
                  _
                $region93: #{gpt2_forward.13} parent=83 // loop_header
                  %s260 = sphi 0, %s264
                  %p261 = scmp.ge.s32.totalorder %s260, 1
                  %s265 = sphi %s228, %s228
                  %s266 = sphi %s221, %s221
                $region94: #{gpt2_forward.13} parent=83 // loop_header_branch
                  %263 = sbr.rel (%p261) target = $region98
                $region95: #{gpt2_forward.13} parent=83 // loop_body
                  %v267 = vld [vmem:[%s265] sm:$0xf]
                  %268 = vst [vmem:[%s266] sm:$0xf] %v267
                  %v269 = vld [vmem:[%s265 + $0xc] sm:$0xf]
                  %270 = vst [vmem:[%s266 + $0x4] sm:$0xf] %v269
                $region96: #{gpt2_forward.13} parent=83 // loop_footer
                  %s264 = sadd.s32 1, %s260
                $region97: #{gpt2_forward.13} parent=83 // loop_footer_branch
                  %259 = sbr.rel target = $region93
                $region98: #{gpt2_forward.13} parent=83 // loop_exit
                  _
              $region84: #{gpt2_forward.13} parent=68 // pred_fallthru
                _
            $region69: #{gpt2_forward.13} parent=64 // pred_fallthru
              _
            // Predicated region
            $region70: #{gpt2_forward.13} parent=64 // pred_check
              _
            $region71: #{gpt2_forward.13} parent=64 // pred_check_branch
              %234 = sbr.rel (0) target = $region73
            $region72: #{gpt2_forward.13} parent=64 // pred_region
              loop: start=0, step=1, limit=1
              $region74: #{gpt2_forward.13} parent=72 // loop_pre_header
                _
              $region75: #{gpt2_forward.13} parent=72 // loop_header
                %s237 = sphi 0, %s241
                %p238 = scmp.ge.s32.totalorder %s237, 1
                %s242 = sphi %s228, %s228
                %s243 = sphi %s221, %s221
              $region76: #{gpt2_forward.13} parent=72 // loop_header_branch
                %240 = sbr.rel (%p238) target = $region80
              $region77: #{gpt2_forward.13} parent=72 // loop_body
                %v244 = vld [vmem:[%s242] sm:$0xf]
                %245 = vst [vmem:[%s243] sm:$0xf] %v244
                %v246 = vld [vmem:[%s242 + $0xc] sm:$0xf]
                %247 = vst [vmem:[%s243 + $0x4] sm:$0xf] %v246
              $region78: #{gpt2_forward.13} parent=72 // loop_footer
                %s241 = sadd.s32 1, %s237
              $region79: #{gpt2_forward.13} parent=72 // loop_footer_branch
                %236 = sbr.rel target = $region75
              $region80: #{gpt2_forward.13} parent=72 // loop_exit
                _
            $region73: #{gpt2_forward.13} parent=64 // pred_fallthru
              _
          $region65: #{gpt2_forward.13} parent=60 // pred_fallthru
            _
          %271 = vnop
        $region61: #{gpt2_forward.13} parent=15 // pred_fallthru
          _
        // Predicated region
        $region99: #{gpt2_forward.13} parent=15 // pred_check
          %p272 = pneg %p106
        $region100: #{gpt2_forward.13} parent=15 // pred_check_branch
          %274 = sbr.rel (%p272) target = $region102
        $region101: #{gpt2_forward.13} parent=15 // pred_region
          %s275 = sand.u32 %s96, 1
          %s276 = sand.u32 %s96, 1
          %s277 = smul.addr %s276, 8
          %s278 = scalar_lea.vmem [#allocation7], %s277
          %s279 = smul.u32 2, %s18
          %s280 = smul.addr %s279, 3
          %s281 = sadd.s32 2, %s280
          %s282 = smul.addr %s16, 6
          %s283 = sadd.s32 %s281, %s282
          %s284 = smul.addr %s283, 4
          %s285 = scalar_lea.vmem %s2, %s284
          // Predicated region
          $region103: #{gpt2_forward.13} parent=101 // pred_check
            _
          $region104: #{gpt2_forward.13} parent=101 // pred_check_branch
            %287 = sbr.rel (0) target = $region106
          $region105: #{gpt2_forward.13} parent=101 // pred_region
            // Predicated region
            $region107: #{gpt2_forward.13} parent=105 // pred_check
              _
            $region108: #{gpt2_forward.13} parent=105 // pred_check_branch
              %289 = sbr.rel target = $region110
            $region109: #{gpt2_forward.13} parent=105 // pred_region
              // Predicated region
              $region122: #{gpt2_forward.13} parent=109 // pred_check
                _
              $region123: #{gpt2_forward.13} parent=109 // pred_check_branch
                %306 = sbr.rel (0) target = $region125
              $region124: #{gpt2_forward.13} parent=109 // pred_region
                loop: start=0, step=1, limit=1
                $region126: #{gpt2_forward.13} parent=124 // loop_pre_header
                  _
                $region127: #{gpt2_forward.13} parent=124 // loop_header
                  %s308 = sphi 0, %s312
                  %p309 = scmp.ge.s32.totalorder %s308, 1
                  %s313 = sphi %s285, %s285
                  %s314 = sphi %s278, %s278
                $region128: #{gpt2_forward.13} parent=124 // loop_header_branch
                  %311 = sbr.rel (%p309) target = $region132
                $region129: #{gpt2_forward.13} parent=124 // loop_body
                  _
                $region130: #{gpt2_forward.13} parent=124 // loop_footer
                  %s312 = sadd.s32 1, %s308
                $region131: #{gpt2_forward.13} parent=124 // loop_footer_branch
                  %307 = sbr.rel target = $region127
                $region132: #{gpt2_forward.13} parent=124 // loop_exit
                  _
                loop: start=0, step=1, limit=1
                $region133: #{gpt2_forward.13} parent=124 // loop_pre_header
                  _
                $region134: #{gpt2_forward.13} parent=124 // loop_header
                  %s317 = sphi 0, %s321
                  %p318 = scmp.ge.s32.totalorder %s317, 1
                  %s322 = sphi %s285, %s285
                  %s323 = sphi %s278, %s278
                $region135: #{gpt2_forward.13} parent=124 // loop_header_branch
                  %320 = sbr.rel (%p318) target = $region139
                $region136: #{gpt2_forward.13} parent=124 // loop_body
                  %v324 = vld [vmem:[%s322] sm:$0xf]
                  %325 = vst [vmem:[%s323] sm:$0xf] %v324
                  %v326 = vld [vmem:[%s322 + $0xc] sm:$0xf]
                  %327 = vst [vmem:[%s323 + $0x4] sm:$0xf] %v326
                $region137: #{gpt2_forward.13} parent=124 // loop_footer
                  %s321 = sadd.s32 1, %s317
                $region138: #{gpt2_forward.13} parent=124 // loop_footer_branch
                  %316 = sbr.rel target = $region134
                $region139: #{gpt2_forward.13} parent=124 // loop_exit
                  _
              $region125: #{gpt2_forward.13} parent=109 // pred_fallthru
                _
            $region110: #{gpt2_forward.13} parent=105 // pred_fallthru
              _
            // Predicated region
            $region111: #{gpt2_forward.13} parent=105 // pred_check
              _
            $region112: #{gpt2_forward.13} parent=105 // pred_check_branch
              %291 = sbr.rel (0) target = $region114
            $region113: #{gpt2_forward.13} parent=105 // pred_region
              loop: start=0, step=1, limit=1
              $region115: #{gpt2_forward.13} parent=113 // loop_pre_header
                _
              $region116: #{gpt2_forward.13} parent=113 // loop_header
                %s294 = sphi 0, %s298
                %p295 = scmp.ge.s32.totalorder %s294, 1
                %s299 = sphi %s285, %s285
                %s300 = sphi %s278, %s278
              $region117: #{gpt2_forward.13} parent=113 // loop_header_branch
                %297 = sbr.rel (%p295) target = $region121
              $region118: #{gpt2_forward.13} parent=113 // loop_body
                %v301 = vld [vmem:[%s299] sm:$0xf]
                %302 = vst [vmem:[%s300] sm:$0xf] %v301
                %v303 = vld [vmem:[%s299 + $0xc] sm:$0xf]
                %304 = vst [vmem:[%s300 + $0x4] sm:$0xf] %v303
              $region119: #{gpt2_forward.13} parent=113 // loop_footer
                %s298 = sadd.s32 1, %s294
              $region120: #{gpt2_forward.13} parent=113 // loop_footer_branch
                %293 = sbr.rel target = $region116
              $region121: #{gpt2_forward.13} parent=113 // loop_exit
                _
            $region114: #{gpt2_forward.13} parent=105 // pred_fallthru
              _
          $region106: #{gpt2_forward.13} parent=101 // pred_fallthru
            _
          %328 = vnop
        $region102: #{gpt2_forward.13} parent=15 // pred_fallthru
          _
      $region16: #{gpt2_forward.13} parent=5 // pred_fallthru
        _
      %p329 = scmp.le.s32.totalorder 1, %s9
      %p330 = scmp.lt.s32.totalorder %s9, 3
      %p331 = pnand %p329, %p330
      %p332 = pneg %p331
      // Predicated region
      $region140: #{gpt2_forward.13} parent=5 // pred_check
        _
      $region141: #{gpt2_forward.13} parent=5 // pred_check_branch
        %334 = sbr.rel (%p331) target = $region143
      $region142: #{gpt2_forward.13} parent=5 // pred_region
        %s335 = ssub.s32 %s9, 1
        %s336 = sand.u32 %s43, 1
        %s337 = sand.u32 %s43, 1
        %s338 = smul.addr %s337, 8
        %s339 = scalar_lea.vmem [#allocation5], %s338
        // Predicated region
        $region144: #{gpt2_forward.13} parent=142 // pred_check
          %p340 = pneg %p56
        $region145: #{gpt2_forward.13} parent=142 // pred_check_branch
          %342 = sbr.rel (%p340) target = $region147
        $region146: #{gpt2_forward.13} parent=142 // pred_region
          _
        $region147: #{gpt2_forward.13} parent=142 // pred_fallthru
          _
        %s343 = sand.u32 %s71, 1
        %s344 = sand.u32 %s71, 1
        %s345 = smul.addr %s344, 8
        %s346 = scalar_lea.vmem [#allocation6], %s345
        // Predicated region
        $region148: #{gpt2_forward.13} parent=142 // pred_check
          %p347 = pneg %p84
        $region149: #{gpt2_forward.13} parent=142 // pred_check_branch
          %349 = sbr.rel (%p347) target = $region151
        $region150: #{gpt2_forward.13} parent=142 // pred_region
          _
        $region151: #{gpt2_forward.13} parent=142 // pred_fallthru
          _
        %s350 = sand.u32 %s99, 1
        %s351 = sand.u32 %s99, 1
        %s352 = smul.addr %s351, 8
        %s353 = scalar_lea.vmem [#allocation7], %s352
        // Predicated region
        $region152: #{gpt2_forward.13} parent=142 // pred_check
          %p354 = pneg %p112
        $region153: #{gpt2_forward.13} parent=142 // pred_check_branch
          %356 = sbr.rel (%p354) target = $region155
        $region154: #{gpt2_forward.13} parent=142 // pred_region
          _
        $region155: #{gpt2_forward.13} parent=142 // pred_fallthru
          _
        %s357 = sand.u32 %s43, 1
        %s358 = sand.u32 %s43, 1
        %s359 = smul.addr %s358, 8
        %s360 = scalar_lea.vmem [#allocation5], %s359
        %p361 = pneg %p56
        %p362 = pneg %p53
        %s363 = sand.u32 %s71, 1
        %s364 = sand.u32 %s71, 1
        %s365 = smul.addr %s364, 8
        %s366 = scalar_lea.vmem [#allocation6], %s365
        %p367 = pneg %p84
        %p368 = pneg %p81
        %s369 = sand.u32 %s99, 1
        %s370 = sand.u32 %s99, 1
        %s371 = smul.addr %s370, 8
        %s372 = scalar_lea.vmem [#allocation7], %s371
        %p373 = pneg %p112
        %p374 = pneg %p109
        %p375 = pneg %p140
        %p376 = pneg %p137
        %s377 = smul.u32 2, %s20
        %p378 = scmp.lt.s32.totalorder %s19, 1
        %s379 = scalar_select %p378, %s19, 1
        %p380 = scmp.lt.s32.totalorder %s377, 1
        %s381 = scalar_select %p380, %s377, 1
        %s382 = smul.addr %s379, 2
        %s383 = sadd.s32 %s381, %s382
        %s384 = smul.addr %s383, 4
        %s385 = scalar_lea.vmem %s3, %s384
        %s386 = smul.u32 2, %s20
        %s387 = smul.u32 2, %s21
        %s388 = smul.u32 2, %s21
        %s389 = smul.u32 2, %s20
        %p390 = scmp.lt.s32.totalorder %s19, 1
        %s391 = scalar_select %p390, %s19, 1
        %p392 = scmp.lt.s32.totalorder %s389, 1
        %s393 = scalar_select %p392, %s389, 1
        %s394 = smul.addr %s391, 2
        %s395 = sadd.s32 %s393, %s394
        %s396 = smul.addr %s395, 4
        %s397 = scalar_lea.vmem %s3, %s396
        %s398 = smul.u32 2, %s20
        %s400 = smul.u32 %s20, 16
        %s401 = smul.u32 %s21, 16
        %p402 = scmp.eq.s32.totalorder %s21, 0
        // Predicated region
        $region156: #{gpt2_forward.13} parent=142 // pred_check
          %p403 = pneg %p402
        $region157: #{gpt2_forward.13} parent=142 // pred_check_branch
          %405 = sbr.rel (%p403) target = $region159
        $region158: #{gpt2_forward.13} parent=142 // pred_region
          %vm406 = vcmask 7168
          %407 = vst.msk [vmem:[#allocation2] sm:$0xff] %vm406, -inf
          %408 = vst.msk [vmem:[#allocation2 + $0x8] sm:$0xff] %vm406, -inf
          %409 = vst.msk [vmem:[#allocation2 + $0x10] sm:$0xff] %vm406, -inf
          %410 = vst.msk [vmem:[#allocation2 + $0x18] sm:$0xff] %vm406, -inf
          %411 = vst.msk [vmem:[#allocation2 + $0x20] sm:$0xff] %vm406, -inf
          %412 = vst.msk [vmem:[#allocation2 + $0x28] sm:$0xff] %vm406, -inf
          %413 = vst.msk [vmem:[#allocation2 + $0x30] sm:$0xff] %vm406, -inf
          %414 = vst.msk [vmem:[#allocation2 + $0x38] sm:$0xff] %vm406, -inf
          %415 = vst.msk [vmem:[#allocation3] sm:$0xff] %vm406, 0.0
          %416 = vst.msk [vmem:[#allocation3 + $0x8] sm:$0xff] %vm406, 0.0
          %417 = vst.msk [vmem:[#allocation3 + $0x10] sm:$0xff] %vm406, 0.0
          %418 = vst.msk [vmem:[#allocation3 + $0x18] sm:$0xff] %vm406, 0.0
          %419 = vst.msk [vmem:[#allocation3 + $0x20] sm:$0xff] %vm406, 0.0
          %420 = vst.msk [vmem:[#allocation3 + $0x28] sm:$0xff] %vm406, 0.0
          %421 = vst.msk [vmem:[#allocation3 + $0x30] sm:$0xff] %vm406, 0.0
          %422 = vst.msk [vmem:[#allocation3 + $0x38] sm:$0xff] %vm406, 0.0
          %vm423 = vcmask 261120
          %424 = vst.msk [vmem:[#allocation4] sm:$0xff] %vm423, 0.0
          %425 = vst.msk [vmem:[#allocation4 + $0x8] sm:$0xff] %vm423, 0.0
          %426 = vst.msk [vmem:[#allocation4 + $0x10] sm:$0xff] %vm423, 0.0
          %427 = vst.msk [vmem:[#allocation4 + $0x18] sm:$0xff] %vm423, 0.0
          %428 = vst.msk [vmem:[#allocation4 + $0x20] sm:$0xff] %vm423, 0.0
          %429 = vst.msk [vmem:[#allocation4 + $0x28] sm:$0xff] %vm423, 0.0
          %430 = vst.msk [vmem:[#allocation4 + $0x30] sm:$0xff] %vm423, 0.0
          %431 = vst.msk [vmem:[#allocation4 + $0x38] sm:$0xff] %vm423, 0.0
        $region159: #{gpt2_forward.13} parent=142 // pred_fallthru
          _
        %s432 = sadd.s32 %s400, 15
        %p433 = scmp.le.s32.totalorder %s401, %s432
        // Predicated region
        $region160: #{gpt2_forward.13} parent=142 // pred_check
          %p434 = pneg %p433
        $region161: #{gpt2_forward.13} parent=142 // pred_check_branch
          %436 = sbr.rel (%p434) target = $region163
        $region162: #{gpt2_forward.13} parent=142 // pred_region
          %v437 = vld [vmem:[%s339] sm:$0xf]
          %v438 = vld [vmem:[%s339 + $0x4] sm:$0xf]
          %v439 = vld [vmem:[%s346] sm:$0xf]
          %v440 = vld [vmem:[%s346 + $0x4] sm:$0xf]
          %v441 = vld [vmem:[%s353] sm:$0xf]
          %v442 = vld [vmem:[%s353 + $0x4] sm:$0xf]
          %v443 = vlaneseq
          %v444 = vshrl.u32 %v443, 7
          %v445 = vadd.s32 %v444, 8
          %v446 = vstv %s400
          %v447 = vadd.s32 %v446, %v444
          %v448 = vadd.s32 %v446, %v445
          %v449 = vlaneseq
          %v450 = vand.u32 %v449, 127
          %v451 = vstv %s401
          %v452 = vadd.s32 %v451, %v450
          %vm453 = vcmp.le.s32.totalorder %v452, %v447
          %vm454 = vcmp.le.s32.totalorder %v452, %v448
          %v457 = vunpack.c.l.b16 %v437
          %v458 = vunpack.c.l.b16 %v438
          %v459 = vpack.c.b16 %v458, %v457
          %v462 = vunpack.c.l.b16 %v439
          %v463 = vunpack.c.l.b16 %v440
          %v464 = vpack.c.b16 %v463, %v462
          %vm465 = vcmask 261120
          %v467 = vsel %vm465, %v459, 0
          %v470 = vsel %vm465, %v464, 0
          %472 = vmatprep.subr.bf16.mxu0 0
          %473 = vmatpush1.bf16.xpose.msra.mxu0 %v470
          %474 = vmatprep.subr.bf16.mxu0 0
          %475 = vmatpush1.bf16.xpose.msra.mxu0 0
          %476 = vmatprep.subr.bf16.mxu0 0
          %477 = vmatpush1.bf16.xpose.msra.mxu0 0
          %478 = vmatprep.subr.bf16.mxu0 0
          %479 = vmatpush1.bf16.xpose.msra.mxu0 0
          %480 = vmatprep.subr.bf16.mxu0 0
          %481 = vmatpush1.bf16.xpose.msra.mxu0 0
          %482 = vmatprep.subr.bf16.mxu0 0
          %483 = vmatpush1.bf16.xpose.msra.mxu0 0
          %484 = vmatprep.subr.bf16.mxu0 0
          %485 = vmatpush1.bf16.xpose.msra.mxu0 0
          %486 = vmatprep.subr.bf16.mxu0 0
          %487 = vmatpush1.bf16.xpose.msra.mxu0 0
          %488 = vmatprep.subr.bf16.mxu0 0
          %489 = vmatpush1.bf16.xpose.msra.mxu0 0
          %490 = vmatprep.subr.bf16.mxu0 0
          %491 = vmatpush1.bf16.xpose.msra.mxu0 0
          %492 = vmatprep.subr.bf16.mxu0 0
          %493 = vmatpush1.bf16.xpose.msra.mxu0 0
          %494 = vmatprep.subr.bf16.mxu0 0
          %495 = vmatpush1.bf16.xpose.msra.mxu0 0
          %496 = vmatprep.subr.bf16.mxu0 0
          %497 = vmatpush1.bf16.xpose.msra.mxu0 0
          %498 = vmatprep.subr.bf16.mxu0 0
          %499 = vmatpush1.bf16.xpose.msra.mxu0 0
          %500 = vmatprep.subr.bf16.mxu0 0
          %501 = vmatpush1.bf16.xpose.msra.mxu0 0
          %502 = vmatprep.subr.bf16.mxu0 0
          %503 = vmatpush1.bf16.xpose.msra.mxu0 0
          %504 = vmatprep.mubr.bf16.mxu0 0
          %505 = vmatmul.mubr.bf16.gmra.mrb[0].mxu0 %v467
          %v506 = vpop.f32.mrb[0].mxu0
          %v507 = vadd.f32 0.0, %v506
          %v508 = vpop.f32.mrb[0].mxu0
          %v509 = vpop.f32.mrb[0].mxu0
          %v510 = vadd.f32 0.0, %v509
          %v511 = vpop.f32.mrb[0].mxu0
          %512 = vdwg.mxu0
          %v513 = vmul.f32 %v507, 0.17677669
          %v514 = vmul.f32 %v510, 0.17677669
          %v515 = vsel %vm453, %v513, -1e+09
          %v516 = vsel %vm454, %v514, -1e+09
          %v517 = vld [vmem:[#allocation2] sm:$0xff]
          %v518 = vld [vmem:[#allocation2 + $0x8] sm:$0xff]
          %vm519 = vcmask 130048
          %v520 = vsel %vm519, %v515, -inf
          %521 = vmax.xlane.f32.xlu0 %v520
          %v522 = vpop.xlane.xlu0 %521
          %v523 = vsel %vm519, %v516, -inf
          %524 = vmax.xlane.f32.xlu0 %v523
          %v525 = vpop.xlane.xlu0 %524
          %v526 = vmax.f32 %v517, %v522
          %v527 = vmax.f32 %v518, %v525
          %v528 = vsub.f32 %v517, %v526
          %v529 = vsub.f32 %v518, %v527
          %v530 = vmul.f32 %v528, 1.442695
          %v531 = vpow.pop %v530
          %v532 = vmul.f32 %v529, 1.442695
          %v533 = vpow.pop %v532
          %535 = vset.pattern.permute.xlu0 0
          %536 = vperm.xlu0 %535, %v526
          %v537 = vpop.permute.xlu0 %536
          %540 = vset.pattern.permute.xlu0 0
          %541 = vperm.xlu0 %540, %v527
          %v542 = vpop.permute.xlu0 %541
          %v544 = vsub.f32 %v515, %v537
          %v545 = vsub.f32 %v516, %v542
          %v546 = vmul.f32 %v544, 1.442695
          %v547 = vpow.pop %v546
          %v548 = vmul.f32 %v545, 1.442695
          %v549 = vpow.pop %v548
          %v550 = vld [vmem:[#allocation3] sm:$0xff]
          %v551 = vld [vmem:[#allocation3 + $0x8] sm:$0xff]
          %v552 = vmul.f32 %v531, %v550
          %v553 = vmul.f32 %v533, %v551
          %v554 = vsel %vm519, %v547, 0.0
          %555 = vadd.xlane.f32.xlu0 %v554
          %v556 = vpop.xlane.xlu0 %555
          %v557 = vsel %vm519, %v549, 0.0
          %558 = vadd.xlane.f32.xlu0 %v557
          %v559 = vpop.xlane.xlu0 %558
          %v560 = vadd.f32 %v552, %v556
          %v561 = vadd.f32 %v553, %v559
          %vm562 = vcmask 7168
          %563 = vst.msk [vmem:[#allocation3] sm:$0xff] %vm562, %v560
          %564 = vst.msk [vmem:[#allocation3 + $0x8] sm:$0xff] %vm562, %v561
          %v565 = vld [vmem:[#allocation4] sm:$0xff]
          %v566 = vld [vmem:[#allocation4 + $0x8] sm:$0xff]
          %568 = vset.pattern.permute.xlu0 0
          %569 = vperm.xlu0 %568, %v531
          %v570 = vpop.permute.xlu0 %569
          %573 = vset.pattern.permute.xlu0 0
          %574 = vperm.xlu0 %573, %v533
          %v575 = vpop.permute.xlu0 %574
          %v577 = vmul.f32 %v570, %v565
          %v578 = vmul.f32 %v575, %v566
          %v579 = vpack.c.bf16 %v549, %v547
          %v582 = vunpack.c.l.b16 %v441
          %v583 = vunpack.c.l.b16 %v442
          %v584 = vpack.c.b16 %v583, %v582
          %v587 = vsel %vm519, %v579, 0
          %589 = vmatprep.subr.bf16.mxu0 0
          %590 = vmatpush1.bf16.msra.mxu0 %v584
          %591 = vmatprep.subr.bf16.mxu0 0
          %592 = vmatpush1.bf16.msra.mxu0 0
          %593 = vmatprep.subr.bf16.mxu0 0
          %594 = vmatpush1.bf16.msra.mxu0 0
          %595 = vmatprep.subr.bf16.mxu0 0
          %596 = vmatpush1.bf16.msra.mxu0 0
          %597 = vmatprep.subr.bf16.mxu0 0
          %598 = vmatpush1.bf16.msra.mxu0 0
          %599 = vmatprep.subr.bf16.mxu0 0
          %600 = vmatpush1.bf16.msra.mxu0 0
          %601 = vmatprep.subr.bf16.mxu0 0
          %602 = vmatpush1.bf16.msra.mxu0 0
          %603 = vmatprep.subr.bf16.mxu0 0
          %604 = vmatpush1.bf16.msra.mxu0 0
          %605 = vmatprep.subr.bf16.mxu0 0
          %606 = vmatpush1.bf16.msra.mxu0 0
          %607 = vmatprep.subr.bf16.mxu0 0
          %608 = vmatpush1.bf16.msra.mxu0 0
          %609 = vmatprep.subr.bf16.mxu0 0
          %610 = vmatpush1.bf16.msra.mxu0 0
          %611 = vmatprep.subr.bf16.mxu0 0
          %612 = vmatpush1.bf16.msra.mxu0 0
          %613 = vmatprep.subr.bf16.mxu0 0
          %614 = vmatpush1.bf16.msra.mxu0 0
          %615 = vmatprep.subr.bf16.mxu0 0
          %616 = vmatpush1.bf16.msra.mxu0 0
          %617 = vmatprep.subr.bf16.mxu0 0
          %618 = vmatpush1.bf16.msra.mxu0 0
          %619 = vmatprep.subr.bf16.mxu0 0
          %620 = vmatpush1.bf16.msra.mxu0 0
          %621 = vmatprep.mubr.bf16.mxu0 0
          %622 = vmatmul.mubr.bf16.gmra.mrb[0].mxu0 %v587
          %v623 = vpop.f32.mrb[0].mxu0
          %v624 = vadd.f32 0.0, %v623
          %v625 = vpop.f32.mrb[0].mxu0
          %v626 = vpop.f32.mrb[0].mxu0
          %v627 = vadd.f32 0.0, %v626
          %v628 = vpop.f32.mrb[0].mxu0
          %629 = vdwg.mxu0
          %v630 = vadd.f32 %v577, %v624
          %v631 = vadd.f32 %v578, %v627
          %632 = vst.msk [vmem:[#allocation4] sm:$0xff] %vm465, %v630
          %633 = vst.msk [vmem:[#allocation4 + $0x8] sm:$0xff] %vm465, %v631
          %634 = vst.msk [vmem:[#allocation2] sm:$0xff] %vm562, %v526
          %635 = vst.msk [vmem:[#allocation2 + $0x8] sm:$0xff] %vm562, %v527
          %636 = vrot.lane.b32.xlu0 %v459, 96
          %v637 = vpop.permute.xlu0 %636
          %638 = vrot.lane.b32.xlu0 %v464, 96
          %v639 = vpop.permute.xlu0 %638
          %v641 = vsel %vm465, %v637, 0
          %v644 = vsel %vm465, %v639, 0
          %646 = vmatprep.subr.bf16.mxu0 0
          %647 = vmatpush1.bf16.xpose.msra.mxu0 %v644
          %648 = vmatprep.subr.bf16.mxu0 0
          %649 = vmatpush1.bf16.xpose.msra.mxu0 0
          %650 = vmatprep.subr.bf16.mxu0 0
          %651 = vmatpush1.bf16.xpose.msra.mxu0 0
          %652 = vmatprep.subr.bf16.mxu0 0
          %653 = vmatpush1.bf16.xpose.msra.mxu0 0
          %654 = vmatprep.subr.bf16.mxu0 0
          %655 = vmatpush1.bf16.xpose.msra.mxu0 0
          %656 = vmatprep.subr.bf16.mxu0 0
          %657 = vmatpush1.bf16.xpose.msra.mxu0 0
          %658 = vmatprep.subr.bf16.mxu0 0
          %659 = vmatpush1.bf16.xpose.msra.mxu0 0
          %660 = vmatprep.subr.bf16.mxu0 0
          %661 = vmatpush1.bf16.xpose.msra.mxu0 0
          %662 = vmatprep.subr.bf16.mxu0 0
          %663 = vmatpush1.bf16.xpose.msra.mxu0 0
          %664 = vmatprep.subr.bf16.mxu0 0
          %665 = vmatpush1.bf16.xpose.msra.mxu0 0
          %666 = vmatprep.subr.bf16.mxu0 0
          %667 = vmatpush1.bf16.xpose.msra.mxu0 0
          %668 = vmatprep.subr.bf16.mxu0 0
          %669 = vmatpush1.bf16.xpose.msra.mxu0 0
          %670 = vmatprep.subr.bf16.mxu0 0
          %671 = vmatpush1.bf16.xpose.msra.mxu0 0
          %672 = vmatprep.subr.bf16.mxu0 0
          %673 = vmatpush1.bf16.xpose.msra.mxu0 0
          %674 = vmatprep.subr.bf16.mxu0 0
          %675 = vmatpush1.bf16.xpose.msra.mxu0 0
          %676 = vmatprep.subr.bf16.mxu0 0
          %677 = vmatpush1.bf16.xpose.msra.mxu0 0
          %678 = vmatprep.mubr.bf16.mxu0 0
          %679 = vmatmul.mubr.bf16.gmra.mrb[0].mxu0 %v641
          %v680 = vpop.f32.mrb[0].mxu0
          %v681 = vadd.f32 0.0, %v680
          %v682 = vpop.f32.mrb[0].mxu0
          %v683 = vpop.f32.mrb[0].mxu0
          %v684 = vadd.f32 0.0, %v683
          %v685 = vpop.f32.mrb[0].mxu0
          %686 = vdwg.mxu0
          %v687 = vmul.f32 %v681, 0.17677669
          %v688 = vmul.f32 %v684, 0.17677669
          %v689 = vsel %vm453, %v687, -1e+09
          %v690 = vsel %vm454, %v688, -1e+09
          %s691 = scalar_lea.vmem [#allocation2], 16
          %v692 = vld [vmem:[%s691] sm:$0xff]
          %v693 = vld [vmem:[%s691 + $0x8] sm:$0xff]
          %v694 = vsel %vm519, %v689, -inf
          %695 = vmax.xlane.f32.xlu0 %v694
          %v696 = vpop.xlane.xlu0 %695
          %v697 = vsel %vm519, %v690, -inf
          %698 = vmax.xlane.f32.xlu0 %v697
          %v699 = vpop.xlane.xlu0 %698
          %v700 = vmax.f32 %v692, %v696
          %v701 = vmax.f32 %v693, %v699
          %v702 = vsub.f32 %v692, %v700
          %v703 = vsub.f32 %v693, %v701
          %v704 = vmul.f32 %v702, 1.442695
          %v705 = vpow.pop %v704
          %v706 = vmul.f32 %v703, 1.442695
          %v707 = vpow.pop %v706
          %709 = vset.pattern.permute.xlu0 0
          %710 = vperm.xlu0 %709, %v700
          %v711 = vpop.permute.xlu0 %710
          %714 = vset.pattern.permute.xlu0 0
          %715 = vperm.xlu0 %714, %v701
          %v716 = vpop.permute.xlu0 %715
          %v718 = vsub.f32 %v689, %v711
          %v719 = vsub.f32 %v690, %v716
          %v720 = vmul.f32 %v718, 1.442695
          %v721 = vpow.pop %v720
          %v722 = vmul.f32 %v719, 1.442695
          %v723 = vpow.pop %v722
          %s724 = scalar_lea.vmem [#allocation3], 16
          %v725 = vld [vmem:[%s724] sm:$0xff]
          %v726 = vld [vmem:[%s724 + $0x8] sm:$0xff]
          %v727 = vmul.f32 %v705, %v725
          %v728 = vmul.f32 %v707, %v726
          %v729 = vsel %vm519, %v721, 0.0
          %730 = vadd.xlane.f32.xlu0 %v729
          %v731 = vpop.xlane.xlu0 %730
          %v732 = vsel %vm519, %v723, 0.0
          %733 = vadd.xlane.f32.xlu0 %v732
          %v734 = vpop.xlane.xlu0 %733
          %v735 = vadd.f32 %v727, %v731
          %v736 = vadd.f32 %v728, %v734
          %737 = vst.msk [vmem:[%s724] sm:$0xff] %vm562, %v735
          %738 = vst.msk [vmem:[%s724 + $0x8] sm:$0xff] %vm562, %v736
          %s739 = scalar_lea.vmem [#allocation4], 16
          %v740 = vld [vmem:[%s739] sm:$0xff]
          %v741 = vld [vmem:[%s739 + $0x8] sm:$0xff]
          %743 = vset.pattern.permute.xlu0 0
          %744 = vperm.xlu0 %743, %v705
          %v745 = vpop.permute.xlu0 %744
          %748 = vset.pattern.permute.xlu0 0
          %749 = vperm.xlu0 %748, %v707
          %v750 = vpop.permute.xlu0 %749
          %v752 = vmul.f32 %v745, %v740
          %v753 = vmul.f32 %v750, %v741
          %v754 = vpack.c.bf16 %v723, %v721
          %755 = vrot.lane.b32.xlu0 %v584, 96
          %v756 = vpop.permute.xlu0 %755
          %v759 = vsel %vm519, %v754, 0
          %761 = vmatprep.subr.bf16.mxu0 0
          %762 = vmatpush1.bf16.msra.mxu0 %v756
          %763 = vmatprep.subr.bf16.mxu0 0
          %764 = vmatpush1.bf16.msra.mxu0 0
          %765 = vmatprep.subr.bf16.mxu0 0
          %766 = vmatpush1.bf16.msra.mxu0 0
          %767 = vmatprep.subr.bf16.mxu0 0
          %768 = vmatpush1.bf16.msra.mxu0 0
          %769 = vmatprep.subr.bf16.mxu0 0
          %770 = vmatpush1.bf16.msra.mxu0 0
          %771 = vmatprep.subr.bf16.mxu0 0
          %772 = vmatpush1.bf16.msra.mxu0 0
          %773 = vmatprep.subr.bf16.mxu0 0
          %774 = vmatpush1.bf16.msra.mxu0 0
          %775 = vmatprep.subr.bf16.mxu0 0
          %776 = vmatpush1.bf16.msra.mxu0 0
          %777 = vmatprep.subr.bf16.mxu0 0
          %778 = vmatpush1.bf16.msra.mxu0 0
          %779 = vmatprep.subr.bf16.mxu0 0
          %780 = vmatpush1.bf16.msra.mxu0 0
          %781 = vmatprep.subr.bf16.mxu0 0
          %782 = vmatpush1.bf16.msra.mxu0 0
          %783 = vmatprep.subr.bf16.mxu0 0
          %784 = vmatpush1.bf16.msra.mxu0 0
          %785 = vmatprep.subr.bf16.mxu0 0
          %786 = vmatpush1.bf16.msra.mxu0 0
          %787 = vmatprep.subr.bf16.mxu0 0
          %788 = vmatpush1.bf16.msra.mxu0 0
          %789 = vmatprep.subr.bf16.mxu0 0
          %790 = vmatpush1.bf16.msra.mxu0 0
          %791 = vmatprep.subr.bf16.mxu0 0
          %792 = vmatpush1.bf16.msra.mxu0 0
          %793 = vmatprep.mubr.bf16.mxu0 0
          %794 = vmatmul.mubr.bf16.gmra.mrb[0].mxu0 %v759
          %v795 = vpop.f32.mrb[0].mxu0
          %v796 = vadd.f32 0.0, %v795
          %v797 = vpop.f32.mrb[0].mxu0
          %v798 = vpop.f32.mrb[0].mxu0
          %v799 = vadd.f32 0.0, %v798
          %v800 = vpop.f32.mrb[0].mxu0
          %801 = vdwg.mxu0
          %v802 = vadd.f32 %v752, %v796
          %v803 = vadd.f32 %v753, %v799
          %804 = vst.msk [vmem:[%s739] sm:$0xff] %vm465, %v802
          %805 = vst.msk [vmem:[%s739 + $0x8] sm:$0xff] %vm465, %v803
          %806 = vst.msk [vmem:[%s691] sm:$0xff] %vm562, %v700
          %807 = vst.msk [vmem:[%s691 + $0x8] sm:$0xff] %vm562, %v701
          %808 = vrot.lane.b32.xlu0 %v459, 64
          %v809 = vpop.permute.xlu0 %808
          %810 = vrot.lane.b32.xlu0 %v464, 64
          %v811 = vpop.permute.xlu0 %810
          %v813 = vsel %vm465, %v809, 0
          %v816 = vsel %vm465, %v811, 0
          %818 = vmatprep.subr.bf16.mxu0 0
          %819 = vmatpush1.bf16.xpose.msra.mxu0 %v816
          %820 = vmatprep.subr.bf16.mxu0 0
          %821 = vmatpush1.bf16.xpose.msra.mxu0 0
          %822 = vmatprep.subr.bf16.mxu0 0
          %823 = vmatpush1.bf16.xpose.msra.mxu0 0
          %824 = vmatprep.subr.bf16.mxu0 0
          %825 = vmatpush1.bf16.xpose.msra.mxu0 0
          %826 = vmatprep.subr.bf16.mxu0 0
          %827 = vmatpush1.bf16.xpose.msra.mxu0 0
          %828 = vmatprep.subr.bf16.mxu0 0
          %829 = vmatpush1.bf16.xpose.msra.mxu0 0
          %830 = vmatprep.subr.bf16.mxu0 0
          %831 = vmatpush1.bf16.xpose.msra.mxu0 0
          %832 = vmatprep.subr.bf16.mxu0 0
          %833 = vmatpush1.bf16.xpose.msra.mxu0 0
          %834 = vmatprep.subr.bf16.mxu0 0
          %835 = vmatpush1.bf16.xpose.msra.mxu0 0
          %836 = vmatprep.subr.bf16.mxu0 0
          %837 = vmatpush1.bf16.xpose.msra.mxu0 0
          %838 = vmatprep.subr.bf16.mxu0 0
          %839 = vmatpush1.bf16.xpose.msra.mxu0 0
          %840 = vmatprep.subr.bf16.mxu0 0
          %841 = vmatpush1.bf16.xpose.msra.mxu0 0
          %842 = vmatprep.subr.bf16.mxu0 0
          %843 = vmatpush1.bf16.xpose.msra.mxu0 0
          %844 = vmatprep.subr.bf16.mxu0 0
          %845 = vmatpush1.bf16.xpose.msra.mxu0 0
          %846 = vmatprep.subr.bf16.mxu0 0
          %847 = vmatpush1.bf16.xpose.msra.mxu0 0
          %848 = vmatprep.subr.bf16.mxu0 0
          %849 = vmatpush1.bf16.xpose.msra.mxu0 0
          %850 = vmatprep.mubr.bf16.mxu0 0
          %851 = vmatmul.mubr.bf16.gmra.mrb[0].mxu0 %v813
          %v852 = vpop.f32.mrb[0].mxu0
          %v853 = vadd.f32 0.0, %v852
          %v854 = vpop.f32.mrb[0].mxu0
          %v855 = vpop.f32.mrb[0].mxu0
          %v856 = vadd.f32 0.0, %v855
          %v857 = vpop.f32.mrb[0].mxu0
          %858 = vdwg.mxu0
          %v859 = vmul.f32 %v853, 0.17677669
          %v860 = vmul.f32 %v856, 0.17677669
          %v861 = vsel %vm453, %v859, -1e+09
          %v862 = vsel %vm454, %v860, -1e+09
          %s863 = scalar_lea.vmem [#allocation2], 32
          %v864 = vld [vmem:[%s863] sm:$0xff]
          %v865 = vld [vmem:[%s863 + $0x8] sm:$0xff]
          %v866 = vsel %vm519, %v861, -inf
          %867 = vmax.xlane.f32.xlu0 %v866
          %v868 = vpop.xlane.xlu0 %867
          %v869 = vsel %vm519, %v862, -inf
          %870 = vmax.xlane.f32.xlu0 %v869
          %v871 = vpop.xlane.xlu0 %870
          %v872 = vmax.f32 %v864, %v868
          %v873 = vmax.f32 %v865, %v871
          %v874 = vsub.f32 %v864, %v872
          %v875 = vsub.f32 %v865, %v873
          %v876 = vmul.f32 %v874, 1.442695
          %v877 = vpow.pop %v876
          %v878 = vmul.f32 %v875, 1.442695
          %v879 = vpow.pop %v878
          %881 = vset.pattern.permute.xlu0 0
          %882 = vperm.xlu0 %881, %v872
          %v883 = vpop.permute.xlu0 %882
          %886 = vset.pattern.permute.xlu0 0
          %887 = vperm.xlu0 %886, %v873
          %v888 = vpop.permute.xlu0 %887
          %v890 = vsub.f32 %v861, %v883
          %v891 = vsub.f32 %v862, %v888
          %v892 = vmul.f32 %v890, 1.442695
          %v893 = vpow.pop %v892
          %v894 = vmul.f32 %v891, 1.442695
          %v895 = vpow.pop %v894
          %s896 = scalar_lea.vmem [#allocation3], 32
          %v897 = vld [vmem:[%s896] sm:$0xff]
          %v898 = vld [vmem:[%s896 + $0x8] sm:$0xff]
          %v899 = vmul.f32 %v877, %v897
          %v900 = vmul.f32 %v879, %v898
          %v901 = vsel %vm519, %v893, 0.0
          %902 = vadd.xlane.f32.xlu0 %v901
          %v903 = vpop.xlane.xlu0 %902
          %v904 = vsel %vm519, %v895, 0.0
          %905 = vadd.xlane.f32.xlu0 %v904
          %v906 = vpop.xlane.xlu0 %905
          %v907 = vadd.f32 %v899, %v903
          %v908 = vadd.f32 %v900, %v906
          %909 = vst.msk [vmem:[%s896] sm:$0xff] %vm562, %v907
          %910 = vst.msk [vmem:[%s896 + $0x8] sm:$0xff] %vm562, %v908
          %s911 = scalar_lea.vmem [#allocation4], 32
          %v912 = vld [vmem:[%s911] sm:$0xff]
          %v913 = vld [vmem:[%s911 + $0x8] sm:$0xff]
          %915 = vset.pattern.permute.xlu0 0
          %916 = vperm.xlu0 %915, %v877
          %v917 = vpop.permute.xlu0 %916
          %920 = vset.pattern.permute.xlu0 0
          %921 = vperm.xlu0 %920, %v879
          %v922 = vpop.permute.xlu0 %921
          %v924 = vmul.f32 %v917, %v912
          %v925 = vmul.f32 %v922, %v913
          %v926 = vpack.c.bf16 %v895, %v893
          %927 = vrot.lane.b32.xlu0 %v584, 64
          %v928 = vpop.permute.xlu0 %927
          %v931 = vsel %vm519, %v926, 0
          %933 = vmatprep.subr.bf16.mxu0 0
          %934 = vmatpush1.bf16.msra.mxu0 %v928
          %935 = vmatprep.subr.bf16.mxu0 0
          %936 = vmatpush1.bf16.msra.mxu0 0
          %937 = vmatprep.subr.bf16.mxu0 0
          %938 = vmatpush1.bf16.msra.mxu0 0
          %939 = vmatprep.subr.bf16.mxu0 0
          %940 = vmatpush1.bf16.msra.mxu0 0
          %941 = vmatprep.subr.bf16.mxu0 0
          %942 = vmatpush1.bf16.msra.mxu0 0
          %943 = vmatprep.subr.bf16.mxu0 0
          %944 = vmatpush1.bf16.msra.mxu0 0
          %945 = vmatprep.subr.bf16.mxu0 0
          %946 = vmatpush1.bf16.msra.mxu0 0
          %947 = vmatprep.subr.bf16.mxu0 0
          %948 = vmatpush1.bf16.msra.mxu0 0
          %949 = vmatprep.subr.bf16.mxu0 0
          %950 = vmatpush1.bf16.msra.mxu0 0
          %951 = vmatprep.subr.bf16.mxu0 0
          %952 = vmatpush1.bf16.msra.mxu0 0
          %953 = vmatprep.subr.bf16.mxu0 0
          %954 = vmatpush1.bf16.msra.mxu0 0
          %955 = vmatprep.subr.bf16.mxu0 0
          %956 = vmatpush1.bf16.msra.mxu0 0
          %957 = vmatprep.subr.bf16.mxu0 0
          %958 = vmatpush1.bf16.msra.mxu0 0
          %959 = vmatprep.subr.bf16.mxu0 0
          %960 = vmatpush1.bf16.msra.mxu0 0
          %961 = vmatprep.subr.bf16.mxu0 0
          %962 = vmatpush1.bf16.msra.mxu0 0
          %963 = vmatprep.subr.bf16.mxu0 0
          %964 = vmatpush1.bf16.msra.mxu0 0
          %965 = vmatprep.mubr.bf16.mxu0 0
          %966 = vmatmul.mubr.bf16.gmra.mrb[0].mxu0 %v931
          %v967 = vpop.f32.mrb[0].mxu0
          %v968 = vadd.f32 0.0, %v967
          %v969 = vpop.f32.mrb[0].mxu0
          %v970 = vpop.f32.mrb[0].mxu0
          %v971 = vadd.f32 0.0, %v970
          %v972 = vpop.f32.mrb[0].mxu0
          %973 = vdwg.mxu0
          %v974 = vadd.f32 %v924, %v968
          %v975 = vadd.f32 %v925, %v971
          %976 = vst.msk [vmem:[%s911] sm:$0xff] %vm465, %v974
          %977 = vst.msk [vmem:[%s911 + $0x8] sm:$0xff] %vm465, %v975
          %978 = vst.msk [vmem:[%s863] sm:$0xff] %vm562, %v872
          %979 = vst.msk [vmem:[%s863 + $0x8] sm:$0xff] %vm562, %v873
          %980 = vrot.lane.b32.xlu0 %v459, 32
          %v981 = vpop.permute.xlu0 %980
          %982 = vrot.lane.b32.xlu0 %v464, 32
          %v983 = vpop.permute.xlu0 %982
          %v985 = vsel %vm465, %v981, 0
          %v988 = vsel %vm465, %v983, 0
          %990 = vmatprep.subr.bf16.mxu0 0
          %991 = vmatpush1.bf16.xpose.msra.mxu0 %v988
          %992 = vmatprep.subr.bf16.mxu0 0
          %993 = vmatpush1.bf16.xpose.msra.mxu0 0
          %994 = vmatprep.subr.bf16.mxu0 0
          %995 = vmatpush1.bf16.xpose.msra.mxu0 0
          %996 = vmatprep.subr.bf16.mxu0 0
          %997 = vmatpush1.bf16.xpose.msra.mxu0 0
          %998 = vmatprep.subr.bf16.mxu0 0
          %999 = vmatpush1.bf16.xpose.msra.mxu0 0
          %1000 = vmatprep.subr.bf16.mxu0 0
          %1001 = vmatpush1.bf16.xpose.msra.mxu0 0
          %1002 = vmatprep.subr.bf16.mxu0 0
          %1003 = vmatpush1.bf16.xpose.msra.mxu0 0
          %1004 = vmatprep.subr.bf16.mxu0 0
          %1005 = vmatpush1.bf16.xpose.msra.mxu0 0
          %1006 = vmatprep.subr.bf16.mxu0 0
          %1007 = vmatpush1.bf16.xpose.msra.mxu0 0
          %1008 = vmatprep.subr.bf16.mxu0 0
          %1009 = vmatpush1.bf16.xpose.msra.mxu0 0
          %1010 = vmatprep.subr.bf16.mxu0 0
          %1011 = vmatpush1.bf16.xpose.msra.mxu0 0
          %1012 = vmatprep.subr.bf16.mxu0 0
          %1013 = vmatpush1.bf16.xpose.msra.mxu0 0
          %1014 = vmatprep.subr.bf16.mxu0 0
          %1015 = vmatpush1.bf16.xpose.msra.mxu0 0
          %1016 = vmatprep.subr.bf16.mxu0 0
          %1017 = vmatpush1.bf16.xpose.msra.mxu0 0
          %1018 = vmatprep.subr.bf16.mxu0 0
          %1019 = vmatpush1.bf16.xpose.msra.mxu0 0
          %1020 = vmatprep.subr.bf16.mxu0 0
          %1021 = vmatpush1.bf16.xpose.msra.mxu0 0
          %1022 = vmatprep.mubr.bf16.mxu0 0
          %1023 = vmatmul.mubr.bf16.gmra.mrb[0].mxu0 %v985
          %v1024 = vpop.f32.mrb[0].mxu0
          %v1025 = vadd.f32 0.0, %v1024
          %v1026 = vpop.f32.mrb[0].mxu0
          %v1027 = vpop.f32.mrb[0].mxu0
          %v1028 = vadd.f32 0.0, %v1027
          %v1029 = vpop.f32.mrb[0].mxu0
          %1030 = vdwg.mxu0
          %v1031 = vmul.f32 %v1025, 0.17677669
          %v1032 = vmul.f32 %v1028, 0.17677669
          %v1033 = vsel %vm453, %v1031, -1e+09
          %v1034 = vsel %vm454, %v1032, -1e+09
          %s1035 = scalar_lea.vmem [#allocation2], 48
          %v1036 = vld [vmem:[%s1035] sm:$0xff]
          %v1037 = vld [vmem:[%s1035 + $0x8] sm:$0xff]
          %v1038 = vsel %vm519, %v1033, -inf
          %1039 = vmax.xlane.f32.xlu0 %v1038
          %v1040 = vpop.xlane.xlu0 %1039
          %v1041 = vsel %vm519, %v1034, -inf
          %1042 = vmax.xlane.f32.xlu0 %v1041
          %v1043 = vpop.xlane.xlu0 %1042
          %v1044 = vmax.f32 %v1036, %v1040
          %v1045 = vmax.f32 %v1037, %v1043
          %v1046 = vsub.f32 %v1036, %v1044
          %v1047 = vsub.f32 %v1037, %v1045
          %v1048 = vmul.f32 %v1046, 1.442695
          %v1049 = vpow.pop %v1048
          %v1050 = vmul.f32 %v1047, 1.442695
          %v1051 = vpow.pop %v1050
          %1053 = vset.pattern.permute.xlu0 0
          %1054 = vperm.xlu0 %1053, %v1044
          %v1055 = vpop.permute.xlu0 %1054
          %1058 = vset.pattern.permute.xlu0 0
          %1059 = vperm.xlu0 %1058, %v1045
          %v1060 = vpop.permute.xlu0 %1059
          %v1062 = vsub.f32 %v1033, %v1055
          %v1063 = vsub.f32 %v1034, %v1060
          %v1064 = vmul.f32 %v1062, 1.442695
          %v1065 = vpow.pop %v1064
          %v1066 = vmul.f32 %v1063, 1.442695
          %v1067 = vpow.pop %v1066
          %s1068 = scalar_lea.vmem [#allocation3], 48
          %v1069 = vld [vmem:[%s1068] sm:$0xff]
          %v1070 = vld [vmem:[%s1068 + $0x8] sm:$0xff]
          %v1071 = vmul.f32 %v1049, %v1069
          %v1072 = vmul.f32 %v1051, %v1070
          %v1073 = vsel %vm519, %v1065, 0.0
          %1074 = vadd.xlane.f32.xlu0 %v1073
          %v1075 = vpop.xlane.xlu0 %1074
          %v1076 = vsel %vm519, %v1067, 0.0
          %1077 = vadd.xlane.f32.xlu0 %v1076
          %v1078 = vpop.xlane.xlu0 %1077
          %v1079 = vadd.f32 %v1071, %v1075
          %v1080 = vadd.f32 %v1072, %v1078
          %1081 = vst.msk [vmem:[%s1068] sm:$0xff] %vm562, %v1079
          %1082 = vst.msk [vmem:[%s1068 + $0x8] sm:$0xff] %vm562, %v1080
          %s1083 = scalar_lea.vmem [#allocation4], 48
          %v1084 = vld [vmem:[%s1083] sm:$0xff]
          %v1085 = vld [vmem:[%s1083 + $0x8] sm:$0xff]
          %1087 = vset.pattern.permute.xlu0 0
          %1088 = vperm.xlu0 %1087, %v1049
          %v1089 = vpop.permute.xlu0 %1088
          %1092 = vset.pattern.permute.xlu0 0
          %1093 = vperm.xlu0 %1092, %v1051
          %v1094 = vpop.permute.xlu0 %1093
          %v1096 = vmul.f32 %v1089, %v1084
          %v1097 = vmul.f32 %v1094, %v1085
          %v1098 = vpack.c.bf16 %v1067, %v1065
          %1099 = vrot.lane.b32.xlu0 %v584, 32
          %v1100 = vpop.permute.xlu0 %1099
          %v1103 = vsel %vm519, %v1098, 0
          %1105 = vmatprep.subr.bf16.mxu0 0
          %1106 = vmatpush1.bf16.msra.mxu0 %v1100
          %1107 = vmatprep.subr.bf16.mxu0 0
          %1108 = vmatpush1.bf16.msra.mxu0 0
          %1109 = vmatprep.subr.bf16.mxu0 0
          %1110 = vmatpush1.bf16.msra.mxu0 0
          %1111 = vmatprep.subr.bf16.mxu0 0
          %1112 = vmatpush1.bf16.msra.mxu0 0
          %1113 = vmatprep.subr.bf16.mxu0 0
          %1114 = vmatpush1.bf16.msra.mxu0 0
          %1115 = vmatprep.subr.bf16.mxu0 0
          %1116 = vmatpush1.bf16.msra.mxu0 0
          %1117 = vmatprep.subr.bf16.mxu0 0
          %1118 = vmatpush1.bf16.msra.mxu0 0
          %1119 = vmatprep.subr.bf16.mxu0 0
          %1120 = vmatpush1.bf16.msra.mxu0 0
          %1121 = vmatprep.subr.bf16.mxu0 0
          %1122 = vmatpush1.bf16.msra.mxu0 0
          %1123 = vmatprep.subr.bf16.mxu0 0
          %1124 = vmatpush1.bf16.msra.mxu0 0
          %1125 = vmatprep.subr.bf16.mxu0 0
          %1126 = vmatpush1.bf16.msra.mxu0 0
          %1127 = vmatprep.subr.bf16.mxu0 0
          %1128 = vmatpush1.bf16.msra.mxu0 0
          %1129 = vmatprep.subr.bf16.mxu0 0
          %1130 = vmatpush1.bf16.msra.mxu0 0
          %1131 = vmatprep.subr.bf16.mxu0 0
          %1132 = vmatpush1.bf16.msra.mxu0 0
          %1133 = vmatprep.subr.bf16.mxu0 0
          %1134 = vmatpush1.bf16.msra.mxu0 0
          %1135 = vmatprep.subr.bf16.mxu0 0
          %1136 = vmatpush1.bf16.msra.mxu0 0
          %1137 = vmatprep.mubr.bf16.mxu0 0
          %1138 = vmatmul.mubr.bf16.gmra.mrb[0].mxu0 %v1103
          %v1139 = vpop.f32.mrb[0].mxu0
          %v1140 = vadd.f32 0.0, %v1139
          %v1141 = vpop.f32.mrb[0].mxu0
          %v1142 = vpop.f32.mrb[0].mxu0
          %v1143 = vadd.f32 0.0, %v1142
          %v1144 = vpop.f32.mrb[0].mxu0
          %1145 = vdwg.mxu0
          %v1146 = vadd.f32 %v1096, %v1140
          %v1147 = vadd.f32 %v1097, %v1143
          %1148 = vst.msk [vmem:[%s1083] sm:$0xff] %vm465, %v1146
          %1149 = vst.msk [vmem:[%s1083 + $0x8] sm:$0xff] %vm465, %v1147
          %1150 = vst.msk [vmem:[%s1035] sm:$0xff] %vm562, %v1044
          %1151 = vst.msk [vmem:[%s1035 + $0x8] sm:$0xff] %vm562, %v1045
        $region163: #{gpt2_forward.13} parent=142 // pred_fallthru
          _
        // Predicated region
        $region164: #{gpt2_forward.13} parent=142 // pred_check
          %p1152 = pneg %p402
        $region165: #{gpt2_forward.13} parent=142 // pred_check_branch
          %1154 = sbr.rel (%p1152) target = $region167
        $region166: #{gpt2_forward.13} parent=142 // pred_region
          %v1155 = vld [vmem:[#allocation3] sm:$0xff]
          %v1156 = vld [vmem:[#allocation3 + $0x8] sm:$0xff]
          %v1157 = vrcp.pop %v1155
          %v1158 = vrcp.pop %v1156
          %v1159 = vld [vmem:[#allocation4] sm:$0xff]
          %v1160 = vld [vmem:[#allocation4 + $0x8] sm:$0xff]
          %1162 = vset.pattern.permute.xlu0 0
          %1163 = vperm.xlu0 %1162, %v1157
          %v1164 = vpop.permute.xlu0 %1163
          %1167 = vset.pattern.permute.xlu0 0
          %1168 = vperm.xlu0 %1167, %v1158
          %v1169 = vpop.permute.xlu0 %1168
          %v1171 = vmul.f32 %v1159, %v1164
          %v1172 = vmul.f32 %v1160, %v1169
          %v1173 = vpack.c.bf16 %v1172, %v1171
          %v1175 = vunpack.c.l.b16 %v1173
          %v1176 = vunpack.c.h.b16 %v1173
          %v1177 = vpack.c.b16 %v1175, %v1175
          %v1178 = vpack.c.b16 %v1176, %v1176
          %vm1181 = vcmask 257024
          %1182 = vst.msk [vmem:[%s397] sm:$0xf] %vm1181, %v1177
          %1183 = vst.msk [vmem:[%s397 + $0x4] sm:$0xf] %vm1181, %v1178
          %s1184 = scalar_lea.vmem [#allocation3], 16
          %v1185 = vld [vmem:[%s1184] sm:$0xff]
          %v1186 = vld [vmem:[%s1184 + $0x8] sm:$0xff]
          %v1187 = vrcp.pop %v1185
          %v1188 = vrcp.pop %v1186
          %s1189 = scalar_lea.vmem [#allocation4], 16
          %v1190 = vld [vmem:[%s1189] sm:$0xff]
          %v1191 = vld [vmem:[%s1189 + $0x8] sm:$0xff]
          %1193 = vset.pattern.permute.xlu0 0
          %1194 = vperm.xlu0 %1193, %v1187
          %v1195 = vpop.permute.xlu0 %1194
          %1198 = vset.pattern.permute.xlu0 0
          %1199 = vperm.xlu0 %1198, %v1188
          %v1200 = vpop.permute.xlu0 %1199
          %v1202 = vmul.f32 %v1190, %v1195
          %v1203 = vmul.f32 %v1191, %v1200
          %v1204 = vpack.c.bf16 %v1203, %v1202
          %v1206 = vunpack.c.l.b16 %v1204
          %v1207 = vunpack.c.h.b16 %v1204
          %v1208 = vpack.c.b16 %v1206, %v1206
          %v1209 = vpack.c.b16 %v1207, %v1207
          %1210 = vrot.lane.b32.xlu0 %v1208, 32
          %v1211 = vpop.permute.xlu0 %1210
          %1212 = vrot.lane.b32.xlu0 %v1209, 32
          %v1213 = vpop.permute.xlu0 %1212
          %vm1216 = vcmask 519424
          %1217 = vst.msk [vmem:[%s397] sm:$0xf] %vm1216, %v1211
          %1218 = vst.msk [vmem:[%s397 + $0x4] sm:$0xf] %vm1216, %v1213
          %s1219 = scalar_lea.vmem [#allocation3], 32
          %v1220 = vld [vmem:[%s1219] sm:$0xff]
          %v1221 = vld [vmem:[%s1219 + $0x8] sm:$0xff]
          %v1222 = vrcp.pop %v1220
          %v1223 = vrcp.pop %v1221
          %s1224 = scalar_lea.vmem [#allocation4], 32
          %v1225 = vld [vmem:[%s1224] sm:$0xff]
          %v1226 = vld [vmem:[%s1224 + $0x8] sm:$0xff]
          %1228 = vset.pattern.permute.xlu0 0
          %1229 = vperm.xlu0 %1228, %v1222
          %v1230 = vpop.permute.xlu0 %1229
          %1233 = vset.pattern.permute.xlu0 0
          %1234 = vperm.xlu0 %1233, %v1223
          %v1235 = vpop.permute.xlu0 %1234
          %v1237 = vmul.f32 %v1225, %v1230
          %v1238 = vmul.f32 %v1226, %v1235
          %v1239 = vpack.c.bf16 %v1238, %v1237
          %v1241 = vunpack.c.l.b16 %v1239
          %v1242 = vunpack.c.h.b16 %v1239
          %v1243 = vpack.c.b16 %v1241, %v1241
          %v1244 = vpack.c.b16 %v1242, %v1242
          %1245 = vrot.lane.b32.xlu0 %v1243, 64
          %v1246 = vpop.permute.xlu0 %1245
          %1247 = vrot.lane.b32.xlu0 %v1244, 64
          %v1248 = vpop.permute.xlu0 %1247
          %vm1251 = vcmask 781824
          %1252 = vst.msk [vmem:[%s397] sm:$0xf] %vm1251, %v1246
          %1253 = vst.msk [vmem:[%s397 + $0x4] sm:$0xf] %vm1251, %v1248
          %s1254 = scalar_lea.vmem [#allocation3], 48
          %v1255 = vld [vmem:[%s1254] sm:$0xff]
          %v1256 = vld [vmem:[%s1254 + $0x8] sm:$0xff]
          %v1257 = vrcp.pop %v1255
          %v1258 = vrcp.pop %v1256
          %s1259 = scalar_lea.vmem [#allocation4], 48
          %v1260 = vld [vmem:[%s1259] sm:$0xff]
          %v1261 = vld [vmem:[%s1259 + $0x8] sm:$0xff]
          %1263 = vset.pattern.permute.xlu0 0
          %1264 = vperm.xlu0 %1263, %v1257
          %v1265 = vpop.permute.xlu0 %1264
          %1268 = vset.pattern.permute.xlu0 0
          %1269 = vperm.xlu0 %1268, %v1258
          %v1270 = vpop.permute.xlu0 %1269
          %v1272 = vmul.f32 %v1260, %v1265
          %v1273 = vmul.f32 %v1261, %v1270
          %v1274 = vpack.c.bf16 %v1273, %v1272
          %v1276 = vunpack.c.l.b16 %v1274
          %v1277 = vunpack.c.h.b16 %v1274
          %v1278 = vpack.c.b16 %v1276, %v1276
          %v1279 = vpack.c.b16 %v1277, %v1277
          %1280 = vrot.lane.b32.xlu0 %v1278, 96
          %v1281 = vpop.permute.xlu0 %1280
          %1282 = vrot.lane.b32.xlu0 %v1279, 96
          %v1283 = vpop.permute.xlu0 %1282
          %vm1286 = vcmask 1044224
          %1287 = vst.msk [vmem:[%s397] sm:$0xf] %vm1286, %v1281
          %1288 = vst.msk [vmem:[%s397 + $0x4] sm:$0xf] %vm1286, %v1283
        $region167: #{gpt2_forward.13} parent=142 // pred_fallthru
          _
        %s1289 = smul.u32 2, %s20
        %p1290 = scmp.lt.s32.totalorder %s19, 1
        %s1291 = scalar_select %p1290, %s19, 1
        %p1292 = scmp.lt.s32.totalorder %s1289, 1
        %s1293 = scalar_select %p1292, %s1289, 1
        %s1294 = smul.addr %s1291, 2
        %s1295 = sadd.s32 %s1293, %s1294
        %s1296 = smul.addr %s1295, 4
        %s1297 = scalar_lea.vmem %s3, %s1296
        // Predicated region
        $region168: #{gpt2_forward.13} parent=142 // pred_check
          %p1298 = pneg %p137
        $region169: #{gpt2_forward.13} parent=142 // pred_check_branch
          %1300 = sbr.rel (%p1298) target = $region171
        $region170: #{gpt2_forward.13} parent=142 // pred_region
          %s1301 = smul.u32 2, %s20
        $region171: #{gpt2_forward.13} parent=142 // pred_fallthru
          _
      $region143: #{gpt2_forward.13} parent=5 // pred_fallthru
        _
      %p1302 = scmp.le.s32.totalorder 2, %s9
      // Predicated region
      $region172: #{gpt2_forward.13} parent=5 // pred_check
        %p1303 = pneg %p1302
      $region173: #{gpt2_forward.13} parent=5 // pred_check_branch
        %1305 = sbr.rel (%p1303) target = $region175
      $region174: #{gpt2_forward.13} parent=5 // pred_region
        %s1306 = ssub.s32 %s9, 2
        // Predicated region
        $region176: #{gpt2_forward.13} parent=174 // pred_check
          %p1307 = pneg %p143
        $region177: #{gpt2_forward.13} parent=174 // pred_check_branch
          %1309 = sbr.rel (%p1307) target = $region179
        $region178: #{gpt2_forward.13} parent=174 // pred_region
          %s1310 = smul.u32 2, %s23
          %p1311 = scmp.lt.s32.totalorder %s22, 1
          %s1312 = scalar_select %p1311, %s22, 1
          %p1313 = scmp.lt.s32.totalorder %s1310, 1
          %s1314 = scalar_select %p1313, %s1310, 1
          %s1315 = smul.addr %s1312, 2
          %s1316 = sadd.s32 %s1314, %s1315
          %s1317 = smul.addr %s1316, 4
          %s1318 = scalar_lea.vmem %s3, %s1317
        $region179: #{gpt2_forward.13} parent=174 // pred_fallthru
          _
      $region175: #{gpt2_forward.13} parent=5 // pred_fallthru
        _
    $region6: #{gpt2_forward.13} parent=1 // loop_footer
      %s13 = sadd.s32 1, %s9
    $region7: #{gpt2_forward.13} parent=1 // loop_footer_branch
      %8 = sbr.rel target = $region3
    $region8: #{gpt2_forward.13} parent=1 // loop_exit
      _

// kernel: gpt2_forward.22
$region0: #{gpt2_forward.22}
  #allocation0 [shape = 'u32[]', space=smem, size = 0x4, offset = 0x4, fixed_abs, tag = 'smem constant byte address 0x4 - core index']
  #allocation1 [shape = 'u32[144,128]{1,0:T(1,128)}', space=vmem, size = 0x12000, scoped, tag = 'internal scratch']
  %s0 = inlined_call_operand.vmem [shape: bf16[32,128], index: 0, kind: input, shape index: {}]
  %s1 = inlined_call_operand.vmem [shape: f32[1,128], index: 1, kind: input, shape index: {}]
  %s2 = inlined_call_operand.vmem [shape: f32[1,128], index: 2, kind: input, shape index: {}]
  %s3 = inlined_call_operand.vmem [shape: bf16[32,128], index: 3, kind: output, shape index: {}]
  %s4 = sld [smem:[#allocation0]]
  $region22: #{gpt2_forward.22} parent=0
    _
  %s6 = ssub.s32 1, %s4
  %s7 = scalar_select 0, %s6, %s4
  // Predicated region
  $region2: #{gpt2_forward.22} parent=0 // pred_check
    _
  $region3: #{gpt2_forward.22} parent=0 // pred_check_branch
    %9 = sbr.rel (0) target = $region5
  $region4: #{gpt2_forward.22} parent=0 // pred_region
    _
  $region5: #{gpt2_forward.22} parent=0 // pred_fallthru
    _
  // Predicated region
  $region6: #{gpt2_forward.22} parent=0 // pred_check
    _
  $region7: #{gpt2_forward.22} parent=0 // pred_check_branch
    %11 = sbr.rel (0) target = $region9
  $region8: #{gpt2_forward.22} parent=0 // pred_region
    _
  $region9: #{gpt2_forward.22} parent=0 // pred_fallthru
    _
  // Predicated region
  $region10: #{gpt2_forward.22} parent=0 // pred_check
    _
  $region11: #{gpt2_forward.22} parent=0 // pred_check_branch
    %13 = sbr.rel (0) target = $region13
  $region12: #{gpt2_forward.22} parent=0 // pred_region
    _
  $region13: #{gpt2_forward.22} parent=0 // pred_fallthru
    _
  %v14 = vld [vmem:[%s0] sm:$0xf]
  %v15 = vld [vmem:[%s0 + $0x4] sm:$0xf]
  %v16 = vld [vmem:[%s0 + $0x8] sm:$0xf]
  %v17 = vld [vmem:[%s0 + $0xc] sm:$0xf]
  %v18 = vunpack.c.l.bf16 %v14
  %v19 = vunpack.c.l.bf16 %v15
  %v20 = vunpack.c.l.bf16 %v16
  %v21 = vunpack.c.l.bf16 %v17
  %22 = vadd.xlane.f32.xlu0 %v18
  %v23 = vpop.xlane.xlu0 %22
  %24 = vadd.xlane.f32.xlu0 %v19
  %v25 = vpop.xlane.xlu0 %24
  %26 = vadd.xlane.f32.xlu0 %v20
  %v27 = vpop.xlane.xlu0 %26
  %28 = vadd.xlane.f32.xlu0 %v21
  %v29 = vpop.xlane.xlu0 %28
  %v30 = vrcp.pop 128.0
  %v31 = vmul.f32 %v23, %v30
  %v32 = vmul.f32 %v25, %v30
  %v33 = vmul.f32 %v27, %v30
  %v34 = vmul.f32 %v29, %v30
  %v35 = vsub.f32 %v18, %v31
  %v36 = vsub.f32 %v19, %v32
  %v37 = vsub.f32 %v20, %v33
  %v38 = vsub.f32 %v21, %v34
  %v39 = vmul.f32 %v35, %v35
  %v40 = vmul.f32 %v36, %v36
  %v41 = vmul.f32 %v37, %v37
  %v42 = vmul.f32 %v38, %v38
  %43 = vadd.xlane.f32.xlu0 %v39
  %v44 = vpop.xlane.xlu0 %43
  %45 = vadd.xlane.f32.xlu0 %v40
  %v46 = vpop.xlane.xlu0 %45
  %47 = vadd.xlane.f32.xlu0 %v41
  %v48 = vpop.xlane.xlu0 %47
  %49 = vadd.xlane.f32.xlu0 %v42
  %v50 = vpop.xlane.xlu0 %49
  %v51 = vmul.f32 %v44, %v30
  %v52 = vmul.f32 %v46, %v30
  %v53 = vmul.f32 %v48, %v30
  %v54 = vmul.f32 %v50, %v30
  %v55 = vadd.f32 %v51, 1e-05
  %v56 = vadd.f32 %v52, 1e-05
  %v57 = vadd.f32 %v53, 1e-05
  %v58 = vadd.f32 %v54, 1e-05
  %v59 = vrsqrt.pop %v55
  %v60 = vrsqrt.pop %v56
  %v61 = vrsqrt.pop %v57
  %v62 = vrsqrt.pop %v58
  %v63 = vmul.f32 %v35, %v59
  %v64 = vmul.f32 %v36, %v60
  %v65 = vmul.f32 %v37, %v61
  %v66 = vmul.f32 %v38, %v62
  %v67 = vld [vmem:[%s1] sm:$0x1]
  %v69 = vlaneseq
  %v70 = vshrl.u32 %v69, 7
  %v71 = vsub.s32 0, %v70
  %v72 = vrot.slane %v67, %v71
  %v74 = vmul.f32 %v63, %v72
  %v75 = vmul.f32 %v64, %v72
  %v76 = vmul.f32 %v65, %v72
  %v77 = vmul.f32 %v66, %v72
  %v78 = vld [vmem:[%s2] sm:$0x1]
  %v80 = vlaneseq
  %v81 = vshrl.u32 %v80, 7
  %v82 = vsub.s32 0, %v81
  %v83 = vrot.slane %v78, %v82
  %v85 = vadd.f32 %v74, %v83
  %v86 = vadd.f32 %v75, %v83
  %v87 = vadd.f32 %v76, %v83
  %v88 = vadd.f32 %v77, %v83
  %v89 = vpack.c.bf16 %v86, %v85
  %v90 = vpack.c.bf16 %v88, %v87
  %v93 = vunpack.c.l.b16 %v89
  %v94 = vunpack.c.h.b16 %v89
  %v95 = vunpack.c.l.b16 %v90
  %v96 = vunpack.c.h.b16 %v90
  %v97 = vpack.c.b16 %v93, %v93
  %v98 = vpack.c.b16 %v94, %v94
  %v99 = vpack.c.b16 %v95, %v95
  %v100 = vpack.c.b16 %v96, %v96
  %105 = vst [vmem:[%s3] sm:$0xf] %v97
  %106 = vst [vmem:[%s3 + $0x4] sm:$0xf] %v98
  %107 = vst [vmem:[%s3 + $0x8] sm:$0xf] %v99
  %108 = vst [vmem:[%s3 + $0xc] sm:$0xf] %v100
  // Predicated region
  $region14: #{gpt2_forward.22} parent=0 // pred_check
    _
  $region15: #{gpt2_forward.22} parent=0 // pred_check_branch
    %110 = sbr.rel (0) target = $region17
  $region16: #{gpt2_forward.22} parent=0 // pred_region
    _
  $region17: #{gpt2_forward.22} parent=0 // pred_fallthru
    _
  // Predicated region
  $region18: #{gpt2_forward.22} parent=0 // pred_check
    _
  $region19: #{gpt2_forward.22} parent=0 // pred_check_branch
    %112 = sbr.rel (0) target = $region21
  $region20: #{gpt2_forward.22} parent=0 // pred_region
    _
  $region21: #{gpt2_forward.22} parent=0 // pred_fallthru
    _

// kernel: gpt2_forward.23
$region0: #{gpt2_forward.23}
  #allocation0 [shape = 'u32[]', space=smem, size = 0x4, offset = 0x4, fixed_abs, tag = 'smem constant byte address 0x4 - core index']
  #allocation1 [shape = 'u32[144,128]{1,0:T(1,128)}', space=vmem, size = 0x12000, scoped, tag = 'internal scratch']
  #allocation2 [shape = 'f32[32,256]{1,0:T(8,128)}', space=vmem, size = 0x8000, scoped, tag = 'scratch operand']
  %s0 = inlined_call_operand.vmem [shape: bf16[32,128], index: 0, kind: input, shape index: {}]
  %s1 = inlined_call_operand.vmem [shape: bf16[128,256], index: 1, kind: input, shape index: {}]
  %s2 = inlined_call_operand.hbm [shape: f32[32,256], index: 2, kind: output, shape index: {}]
  %s3 = sld [smem:[#allocation0]]
  $region26: #{gpt2_forward.23} parent=0
    _
  %s5 = ssub.s32 1, %s3
  %s6 = scalar_select 0, %s5, %s3
  $region1: #{gpt2_forward.23} parent=0
    #allocation3 [shape = 'u8[32768]{0}', space=vmem, size = 0x8000, scoped, tag = 'output window, operand 0, single buffered']
    #allocation4 [shape = 's32[1]{0}', space=sflag, size = 0x4, scoped, tag = 'scoped memory for gpt2_forward.23']
    %7 = vsyncpa [#allocation4], 0
    // Predicated region
    $region2: #{gpt2_forward.23} parent=1 // pred_check
      _
    $region3: #{gpt2_forward.23} parent=1 // pred_check_branch
      %9 = sbr.rel (0) target = $region5
    $region4: #{gpt2_forward.23} parent=1 // pred_region
      _
    $region5: #{gpt2_forward.23} parent=1 // pred_fallthru
      _
    // Predicated region
    $region6: #{gpt2_forward.23} parent=1 // pred_check
      _
    $region7: #{gpt2_forward.23} parent=1 // pred_check_branch
      %11 = sbr.rel (0) target = $region9
    $region8: #{gpt2_forward.23} parent=1 // pred_region
      _
    $region9: #{gpt2_forward.23} parent=1 // pred_fallthru
      _
    %p13 = scmp.eq.s32.totalorder 0, 0
    // Predicated region
    $region10: #{gpt2_forward.23} parent=1 // pred_check
      %p14 = pneg %p13
    $region11: #{gpt2_forward.23} parent=1 // pred_check_branch
      %16 = sbr.rel (%p14) target = $region13
    $region12: #{gpt2_forward.23} parent=1 // pred_region
      %17 = vst [vmem:[#allocation2] sm:$0xff] 0.0
      %18 = vst [vmem:[#allocation2 + $0x8] sm:$0xff] 0.0
      %19 = vst [vmem:[#allocation2 + $0x10] sm:$0xff] 0.0
      %20 = vst [vmem:[#allocation2 + $0x18] sm:$0xff] 0.0
      %21 = vst [vmem:[#allocation2 + $0x20] sm:$0xff] 0.0
      %22 = vst [vmem:[#allocation2 + $0x28] sm:$0xff] 0.0
      %23 = vst [vmem:[#allocation2 + $0x30] sm:$0xff] 0.0
      %24 = vst [vmem:[#allocation2 + $0x38] sm:$0xff] 0.0
    $region13: #{gpt2_forward.23} parent=1 // pred_fallthru
      _
    %v25 = vld [vmem:[#allocation2] sm:$0xff]
    %v26 = vld [vmem:[#allocation2 + $0x8] sm:$0xff]
    %v27 = vld [vmem:[#allocation2 + $0x10] sm:$0xff]
    %v28 = vld [vmem:[#allocation2 + $0x18] sm:$0xff]
    %v29 = vld [vmem:[#allocation2 + $0x20] sm:$0xff]
    %v30 = vld [vmem:[#allocation2 + $0x28] sm:$0xff]
    %v31 = vld [vmem:[#allocation2 + $0x30] sm:$0xff]
    %v32 = vld [vmem:[#allocation2 + $0x38] sm:$0xff]
    %v33 = vld [vmem:[%s0] sm:$0xf]
    %v34 = vld [vmem:[%s0 + $0x4] sm:$0xf]
    %v35 = vld [vmem:[%s0 + $0x8] sm:$0xf]
    %v36 = vld [vmem:[%s0 + $0xc] sm:$0xf]
    %v37 = vld [vmem:[%s1] sm:$0xff]
    %v38 = vld [vmem:[%s1 + $0x8] sm:$0xff]
    %v39 = vld [vmem:[%s1 + $0x10] sm:$0xff]
    %v40 = vld [vmem:[%s1 + $0x18] sm:$0xff]
    %v41 = vld [vmem:[%s1 + $0x20] sm:$0xff]
    %v42 = vld [vmem:[%s1 + $0x28] sm:$0xff]
    %v43 = vld [vmem:[%s1 + $0x30] sm:$0xff]
    %v44 = vld [vmem:[%s1 + $0x38] sm:$0xff]
    %v45 = vld [vmem:[%s1 + $0x40] sm:$0xff]
    %v46 = vld [vmem:[%s1 + $0x48] sm:$0xff]
    %v47 = vld [vmem:[%s1 + $0x50] sm:$0xff]
    %v48 = vld [vmem:[%s1 + $0x58] sm:$0xff]
    %v49 = vld [vmem:[%s1 + $0x60] sm:$0xff]
    %v50 = vld [vmem:[%s1 + $0x68] sm:$0xff]
    %v51 = vld [vmem:[%s1 + $0x70] sm:$0xff]
    %v52 = vld [vmem:[%s1 + $0x78] sm:$0xff]
    %v57 = vunpack.c.l.b16 %v33
    %v58 = vunpack.c.l.b16 %v34
    %v59 = vunpack.c.l.b16 %v35
    %v60 = vunpack.c.l.b16 %v36
    %v61 = vpack.c.b16 %v58, %v57
    %v62 = vpack.c.b16 %v60, %v59
    %v81 = vunpack.c.l.b16 %v37
    %v82 = vunpack.c.h.b16 %v37
    %v83 = vunpack.c.l.b16 %v38
    %v84 = vunpack.c.h.b16 %v38
    %v85 = vunpack.c.l.b16 %v39
    %v86 = vunpack.c.h.b16 %v39
    %v87 = vunpack.c.l.b16 %v40
    %v88 = vunpack.c.h.b16 %v40
    %v89 = vunpack.c.l.b16 %v41
    %v90 = vunpack.c.h.b16 %v41
    %v91 = vunpack.c.l.b16 %v42
    %v92 = vunpack.c.h.b16 %v42
    %v93 = vunpack.c.l.b16 %v43
    %v94 = vunpack.c.h.b16 %v43
    %v95 = vunpack.c.l.b16 %v44
    %v96 = vunpack.c.h.b16 %v44
    %v97 = vunpack.c.l.b16 %v45
    %v98 = vunpack.c.h.b16 %v45
    %v99 = vunpack.c.l.b16 %v46
    %v100 = vunpack.c.h.b16 %v46
    %v101 = vunpack.c.l.b16 %v47
    %v102 = vunpack.c.h.b16 %v47
    %v103 = vunpack.c.l.b16 %v48
    %v104 = vunpack.c.h.b16 %v48
    %v105 = vunpack.c.l.b16 %v49
    %v106 = vunpack.c.h.b16 %v49
    %v107 = vunpack.c.l.b16 %v50
    %v108 = vunpack.c.h.b16 %v50
    %v109 = vunpack.c.l.b16 %v51
    %v110 = vunpack.c.h.b16 %v51
    %v111 = vunpack.c.l.b16 %v52
    %v112 = vunpack.c.h.b16 %v52
    %v113 = vpack.c.b16 %v83, %v81
    %v114 = vpack.c.b16 %v84, %v82
    %v115 = vpack.c.b16 %v87, %v85
    %v116 = vpack.c.b16 %v88, %v86
    %v117 = vpack.c.b16 %v91, %v89
    %v118 = vpack.c.b16 %v92, %v90
    %v119 = vpack.c.b16 %v95, %v93
    %v120 = vpack.c.b16 %v96, %v94
    %v121 = vpack.c.b16 %v99, %v97
    %v122 = vpack.c.b16 %v100, %v98
    %v123 = vpack.c.b16 %v103, %v101
    %v124 = vpack.c.b16 %v104, %v102
    %v125 = vpack.c.b16 %v107, %v105
    %v126 = vpack.c.b16 %v108, %v106
    %v127 = vpack.c.b16 %v111, %v109
    %v128 = vpack.c.b16 %v112, %v110
    %145 = vmatprep.subr.bf16.mxu0 %v114
    %146 = vmatpush1.bf16.msra.mxu0 %v113
    %147 = vmatprep.subr.bf16.mxu0 %v116
    %148 = vmatpush1.bf16.msra.mxu0 %v115
    %149 = vmatprep.subr.bf16.mxu0 %v118
    %150 = vmatpush1.bf16.msra.mxu0 %v117
    %151 = vmatprep.subr.bf16.mxu0 %v120
    %152 = vmatpush1.bf16.msra.mxu0 %v119
    %153 = vmatprep.subr.bf16.mxu0 %v122
    %154 = vmatpush1.bf16.msra.mxu0 %v121
    %155 = vmatprep.subr.bf16.mxu0 %v124
    %156 = vmatpush1.bf16.msra.mxu0 %v123
    %157 = vmatprep.subr.bf16.mxu0 %v126
    %158 = vmatpush1.bf16.msra.mxu0 %v125
    %159 = vmatprep.subr.bf16.mxu0 %v128
    %160 = vmatpush1.bf16.msra.mxu0 %v127
    %161 = vmatprep.subr.bf16.mxu0 0
    %162 = vmatpush1.bf16.msra.mxu0 0
    %163 = vmatprep.subr.bf16.mxu0 0
    %164 = vmatpush1.bf16.msra.mxu0 0
    %165 = vmatprep.subr.bf16.mxu0 0
    %166 = vmatpush1.bf16.msra.mxu0 0
    %167 = vmatprep.subr.bf16.mxu0 0
    %168 = vmatpush1.bf16.msra.mxu0 0
    %169 = vmatprep.subr.bf16.mxu0 0
    %170 = vmatpush1.bf16.msra.mxu0 0
    %171 = vmatprep.subr.bf16.mxu0 0
    %172 = vmatpush1.bf16.msra.mxu0 0
    %173 = vmatprep.subr.bf16.mxu0 0
    %174 = vmatpush1.bf16.msra.mxu0 0
    %175 = vmatprep.subr.bf16.mxu0 0
    %176 = vmatpush1.bf16.msra.mxu0 0
    %177 = vmatprep.mubr.bf16.mxu0 0
    %178 = vmatmul.mubr.bf16.gmra.mrb[0].mxu0 %v61
    %v179 = vpop.f32.mrb[0].mxu0
    %v180 = vadd.f32 0.0, %v179
    %v181 = vpop.f32.mrb[0].mxu0
    %v182 = vadd.f32 0.0, %v181
    %v183 = vpop.f32.mrb[0].mxu0
    %v184 = vadd.f32 0.0, %v183
    %v185 = vpop.f32.mrb[0].mxu0
    %v186 = vadd.f32 0.0, %v185
    %187 = vmatprep.mubr.bf16.mxu0 0
    %188 = vmatmul.mubr.bf16.gmra.mrb[0].mxu0 %v62
    %v189 = vpop.f32.mrb[0].mxu0
    %v190 = vadd.f32 0.0, %v189
    %v191 = vpop.f32.mrb[0].mxu0
    %v192 = vadd.f32 0.0, %v191
    %v193 = vpop.f32.mrb[0].mxu0
    %v194 = vadd.f32 0.0, %v193
    %v195 = vpop.f32.mrb[0].mxu0
    %v196 = vadd.f32 0.0, %v195
    %197 = vdwg.mxu0
    %v198 = vadd.f32 %v25, %v180
    %v199 = vadd.f32 %v26, %v182
    %v200 = vadd.f32 %v27, %v184
    %v201 = vadd.f32 %v28, %v186
    %v202 = vadd.f32 %v29, %v190
    %v203 = vadd.f32 %v30, %v192
    %v204 = vadd.f32 %v31, %v194
    %v205 = vadd.f32 %v32, %v196
    %206 = vst [vmem:[#allocation2] sm:$0xff] %v198
    %207 = vst [vmem:[#allocation2 + $0x8] sm:$0xff] %v199
    %208 = vst [vmem:[#allocation2 + $0x10] sm:$0xff] %v200
    %209 = vst [vmem:[#allocation2 + $0x18] sm:$0xff] %v201
    %210 = vst [vmem:[#allocation2 + $0x20] sm:$0xff] %v202
    %211 = vst [vmem:[#allocation2 + $0x28] sm:$0xff] %v203
    %212 = vst [vmem:[#allocation2 + $0x30] sm:$0xff] %v204
    %213 = vst [vmem:[#allocation2 + $0x38] sm:$0xff] %v205
    // Predicated region
    $region14: #{gpt2_forward.23} parent=1 // pred_check
      %p214 = pneg %p13
    $region15: #{gpt2_forward.23} parent=1 // pred_check_branch
      %216 = sbr.rel (%p214) target = $region17
    $region16: #{gpt2_forward.23} parent=1 // pred_region
      %v217 = vld [vmem:[#allocation2] sm:$0xff]
      %v218 = vld [vmem:[#allocation2 + $0x8] sm:$0xff]
      %v219 = vld [vmem:[#allocation2 + $0x10] sm:$0xff]
      %v220 = vld [vmem:[#allocation2 + $0x18] sm:$0xff]
      %v221 = vld [vmem:[#allocation2 + $0x20] sm:$0xff]
      %v222 = vld [vmem:[#allocation2 + $0x28] sm:$0xff]
      %v223 = vld [vmem:[#allocation2 + $0x30] sm:$0xff]
      %v224 = vld [vmem:[#allocation2 + $0x38] sm:$0xff]
      %225 = vst [vmem:[#allocation3] sm:$0xff] %v217
      %226 = vst [vmem:[#allocation3 + $0x8] sm:$0xff] %v218
      %227 = vst [vmem:[#allocation3 + $0x10] sm:$0xff] %v219
      %228 = vst [vmem:[#allocation3 + $0x18] sm:$0xff] %v220
      %229 = vst [vmem:[#allocation3 + $0x20] sm:$0xff] %v221
      %230 = vst [vmem:[#allocation3 + $0x28] sm:$0xff] %v222
      %231 = vst [vmem:[#allocation3 + $0x30] sm:$0xff] %v223
      %232 = vst [vmem:[#allocation3 + $0x38] sm:$0xff] %v224
    $region17: #{gpt2_forward.23} parent=1 // pred_fallthru
      _
    // Predicated region
    $region18: #{gpt2_forward.23} parent=1 // pred_check
      _
    $region19: #{gpt2_forward.23} parent=1 // pred_check_branch
      %234 = sbr.rel (0) target = $region21
    $region20: #{gpt2_forward.23} parent=1 // pred_region
      %s236 = ssub.s32 1024, 1024
      %237 = vsyncadd [#allocation4], %s236
      %s238 = sshll.u32 [#allocation3], 4
      %s239 = int_to_ptr.vmem [resolvable:$true] %s238
      %244 = dma.vmem_to_hbm [thread:$0]  %s239, 1024, %s2, [#allocation4], 256, 256, 16
    $region21: #{gpt2_forward.23} parent=1 // pred_fallthru
      _
    // Predicated region
    $region22: #{gpt2_forward.23} parent=1 // pred_check
      _
    $region23: #{gpt2_forward.23} parent=1 // pred_check_branch
      %246 = sbr.rel (0) target = $region25
    $region24: #{gpt2_forward.23} parent=1 // pred_region
      %247 = dma.done [#allocation4], 1024
    $region25: #{gpt2_forward.23} parent=1 // pred_fallthru
      _
    %248 = vsyncpa [#allocation4], 1

// kernel: gpt2_forward.16
$region0: #{gpt2_forward.16}
  #allocation0 [shape = 'u32[]', space=smem, size = 0x4, offset = 0x4, fixed_abs, tag = 'smem constant byte address 0x4 - core index']
  #allocation1 [shape = 'u32[144,128]{1,0:T(1,128)}', space=vmem, size = 0x12000, scoped, tag = 'internal scratch']
  #allocation2 [shape = 'f32[32,128]{1,0:T(8,128)}', space=vmem, size = 0x4000, scoped, tag = 'scratch operand']
  %s0 = inlined_call_operand.vmem [shape: bf16[32,256], index: 0, kind: input, shape index: {}]
  %s1 = inlined_call_operand.vmem [shape: bf16[256,128], index: 1, kind: input, shape index: {}]
  %s2 = inlined_call_operand.vmem [shape: f32[1,128], index: 2, kind: input, shape index: {}]
  %s3 = inlined_call_operand.vmem [shape: bf16[32,128], index: 3, kind: input, shape index: {}]
  %s4 = inlined_call_operand.vmem [shape: f32[1,128], index: 4, kind: input, shape index: {}]
  %s5 = inlined_call_operand.vmem [shape: f32[1,128], index: 5, kind: input, shape index: {}]
  %s6 = inlined_call_operand.vmem [shape: bf16[32,128], index: 6, kind: output, shape index: {}]
  %s7 = sld [smem:[#allocation0]]
  $region42: #{gpt2_forward.16} parent=0
    _
  %s9 = ssub.s32 1, %s7
  %s10 = scalar_select 0, %s9, %s7
  // Predicated region
  $region2: #{gpt2_forward.16} parent=0 // pred_check
    _
  $region3: #{gpt2_forward.16} parent=0 // pred_check_branch
    %12 = sbr.rel (0) target = $region5
  $region4: #{gpt2_forward.16} parent=0 // pred_region
    _
  $region5: #{gpt2_forward.16} parent=0 // pred_fallthru
    _
  // Predicated region
  $region6: #{gpt2_forward.16} parent=0 // pred_check
    _
  $region7: #{gpt2_forward.16} parent=0 // pred_check_branch
    %14 = sbr.rel (0) target = $region9
  $region8: #{gpt2_forward.16} parent=0 // pred_region
    _
  $region9: #{gpt2_forward.16} parent=0 // pred_fallthru
    _
  // Predicated region
  $region10: #{gpt2_forward.16} parent=0 // pred_check
    _
  $region11: #{gpt2_forward.16} parent=0 // pred_check_branch
    %16 = sbr.rel (0) target = $region13
  $region12: #{gpt2_forward.16} parent=0 // pred_region
    _
  $region13: #{gpt2_forward.16} parent=0 // pred_fallthru
    _
  // Predicated region
  $region14: #{gpt2_forward.16} parent=0 // pred_check
    _
  $region15: #{gpt2_forward.16} parent=0 // pred_check_branch
    %18 = sbr.rel (0) target = $region17
  $region16: #{gpt2_forward.16} parent=0 // pred_region
    _
  $region17: #{gpt2_forward.16} parent=0 // pred_fallthru
    _
  // Predicated region
  $region18: #{gpt2_forward.16} parent=0 // pred_check
    _
  $region19: #{gpt2_forward.16} parent=0 // pred_check_branch
    %20 = sbr.rel (0) target = $region21
  $region20: #{gpt2_forward.16} parent=0 // pred_region
    _
  $region21: #{gpt2_forward.16} parent=0 // pred_fallthru
    _
  // Predicated region
  $region22: #{gpt2_forward.16} parent=0 // pred_check
    _
  $region23: #{gpt2_forward.16} parent=0 // pred_check_branch
    %22 = sbr.rel (0) target = $region25
  $region24: #{gpt2_forward.16} parent=0 // pred_region
    _
  $region25: #{gpt2_forward.16} parent=0 // pred_fallthru
    _
  %p24 = scmp.eq.s32.totalorder 0, 0
  // Predicated region
  $region26: #{gpt2_forward.16} parent=0 // pred_check
    %p25 = pneg %p24
  $region27: #{gpt2_forward.16} parent=0 // pred_check_branch
    %27 = sbr.rel (%p25) target = $region29
  $region28: #{gpt2_forward.16} parent=0 // pred_region
    %28 = vst [vmem:[#allocation2] sm:$0xff] 0.0
    %29 = vst [vmem:[#allocation2 + $0x8] sm:$0xff] 0.0
    %30 = vst [vmem:[#allocation2 + $0x10] sm:$0xff] 0.0
    %31 = vst [vmem:[#allocation2 + $0x18] sm:$0xff] 0.0
  $region29: #{gpt2_forward.16} parent=0 // pred_fallthru
    _
  %v32 = vld [vmem:[#allocation2] sm:$0xff]
  %v33 = vld [vmem:[#allocation2 + $0x8] sm:$0xff]
  %v34 = vld [vmem:[#allocation2 + $0x10] sm:$0xff]
  %v35 = vld [vmem:[#allocation2 + $0x18] sm:$0xff]
  %v36 = vld [vmem:[%s0] sm:$0xff]
  %v37 = vld [vmem:[%s0 + $0x8] sm:$0xff]
  %v38 = vld [vmem:[%s0 + $0x10] sm:$0xff]
  %v39 = vld [vmem:[%s0 + $0x18] sm:$0xff]
  %v40 = vld [vmem:[%s1] sm:$0xf]
  %v41 = vld [vmem:[%s1 + $0x4] sm:$0xf]
  %v42 = vld [vmem:[%s1 + $0x8] sm:$0xf]
  %v43 = vld [vmem:[%s1 + $0xc] sm:$0xf]
  %v44 = vld [vmem:[%s1 + $0x10] sm:$0xf]
  %v45 = vld [vmem:[%s1 + $0x14] sm:$0xf]
  %v46 = vld [vmem:[%s1 + $0x18] sm:$0xf]
  %v47 = vld [vmem:[%s1 + $0x1c] sm:$0xf]
  %v48 = vld [vmem:[%s1 + $0x20] sm:$0xf]
  %v49 = vld [vmem:[%s1 + $0x24] sm:$0xf]
  %v50 = vld [vmem:[%s1 + $0x28] sm:$0xf]
  %v51 = vld [vmem:[%s1 + $0x2c] sm:$0xf]
  %v52 = vld [vmem:[%s1 + $0x30] sm:$0xf]
  %v53 = vld [vmem:[%s1 + $0x34] sm:$0xf]
  %v54 = vld [vmem:[%s1 + $0x38] sm:$0xf]
  %v55 = vld [vmem:[%s1 + $0x3c] sm:$0xf]
  %v56 = vld [vmem:[%s1 + $0x40] sm:$0xf]
  %v57 = vld [vmem:[%s1 + $0x44] sm:$0xf]
  %v58 = vld [vmem:[%s1 + $0x48] sm:$0xf]
  %v59 = vld [vmem:[%s1 + $0x4c] sm:$0xf]
  %v60 = vld [vmem:[%s1 + $0x50] sm:$0xf]
  %v61 = vld [vmem:[%s1 + $0x54] sm:$0xf]
  %v62 = vld [vmem:[%s1 + $0x58] sm:$0xf]
  %v63 = vld [vmem:[%s1 + $0x5c] sm:$0xf]
  %v64 = vld [vmem:[%s1 + $0x60] sm:$0xf]
  %v65 = vld [vmem:[%s1 + $0x64] sm:$0xf]
  %v66 = vld [vmem:[%s1 + $0x68] sm:$0xf]
  %v67 = vld [vmem:[%s1 + $0x6c] sm:$0xf]
  %v68 = vld [vmem:[%s1 + $0x70] sm:$0xf]
  %v69 = vld [vmem:[%s1 + $0x74] sm:$0xf]
  %v70 = vld [vmem:[%s1 + $0x78] sm:$0xf]
  %v71 = vld [vmem:[%s1 + $0x7c] sm:$0xf]
  %v76 = vunpack.c.l.b16 %v36
  %v77 = vunpack.c.h.b16 %v36
  %v78 = vunpack.c.l.b16 %v37
  %v79 = vunpack.c.h.b16 %v37
  %v80 = vunpack.c.l.b16 %v38
  %v81 = vunpack.c.h.b16 %v38
  %v82 = vunpack.c.l.b16 %v39
  %v83 = vunpack.c.h.b16 %v39
  %v84 = vpack.c.b16 %v78, %v76
  %v85 = vpack.c.b16 %v79, %v77
  %v86 = vpack.c.b16 %v82, %v80
  %v87 = vpack.c.b16 %v83, %v81
  %v124 = vunpack.c.l.b16 %v40
  %v125 = vunpack.c.l.b16 %v41
  %v126 = vunpack.c.l.b16 %v42
  %v127 = vunpack.c.l.b16 %v43
  %v128 = vunpack.c.l.b16 %v44
  %v129 = vunpack.c.l.b16 %v45
  %v130 = vunpack.c.l.b16 %v46
  %v131 = vunpack.c.l.b16 %v47
  %v132 = vunpack.c.l.b16 %v48
  %v133 = vunpack.c.l.b16 %v49
  %v134 = vunpack.c.l.b16 %v50
  %v135 = vunpack.c.l.b16 %v51
  %v136 = vunpack.c.l.b16 %v52
  %v137 = vunpack.c.l.b16 %v53
  %v138 = vunpack.c.l.b16 %v54
  %v139 = vunpack.c.l.b16 %v55
  %v140 = vunpack.c.l.b16 %v56
  %v141 = vunpack.c.l.b16 %v57
  %v142 = vunpack.c.l.b16 %v58
  %v143 = vunpack.c.l.b16 %v59
  %v144 = vunpack.c.l.b16 %v60
  %v145 = vunpack.c.l.b16 %v61
  %v146 = vunpack.c.l.b16 %v62
  %v147 = vunpack.c.l.b16 %v63
  %v148 = vunpack.c.l.b16 %v64
  %v149 = vunpack.c.l.b16 %v65
  %v150 = vunpack.c.l.b16 %v66
  %v151 = vunpack.c.l.b16 %v67
  %v152 = vunpack.c.l.b16 %v68
  %v153 = vunpack.c.l.b16 %v69
  %v154 = vunpack.c.l.b16 %v70
  %v155 = vunpack.c.l.b16 %v71
  %v156 = vpack.c.b16 %v125, %v124
  %v157 = vpack.c.b16 %v127, %v126
  %v158 = vpack.c.b16 %v129, %v128
  %v159 = vpack.c.b16 %v131, %v130
  %v160 = vpack.c.b16 %v133, %v132
  %v161 = vpack.c.b16 %v135, %v134
  %v162 = vpack.c.b16 %v137, %v136
  %v163 = vpack.c.b16 %v139, %v138
  %v164 = vpack.c.b16 %v141, %v140
  %v165 = vpack.c.b16 %v143, %v142
  %v166 = vpack.c.b16 %v145, %v144
  %v167 = vpack.c.b16 %v147, %v146
  %v168 = vpack.c.b16 %v149, %v148
  %v169 = vpack.c.b16 %v151, %v150
  %v170 = vpack.c.b16 %v153, %v152
  %v171 = vpack.c.b16 %v155, %v154
  %188 = vmatprep.subr.bf16.mxu0 0
  %189 = vmatpush1.bf16.msra.mxu0 %v156
  %190 = vmatprep.subr.bf16.mxu0 0
  %191 = vmatpush1.bf16.msra.mxu0 %v157
  %192 = vmatprep.subr.bf16.mxu0 0
  %193 = vmatpush1.bf16.msra.mxu0 %v158
  %194 = vmatprep.subr.bf16.mxu0 0
  %195 = vmatpush1.bf16.msra.mxu0 %v159
  %196 = vmatprep.subr.bf16.mxu0 0
  %197 = vmatpush1.bf16.msra.mxu0 %v160
  %198 = vmatprep.subr.bf16.mxu0 0
  %199 = vmatpush1.bf16.msra.mxu0 %v161
  %200 = vmatprep.subr.bf16.mxu0 0
  %201 = vmatpush1.bf16.msra.mxu0 %v162
  %202 = vmatprep.subr.bf16.mxu0 0
  %203 = vmatpush1.bf16.msra.mxu0 %v163
  %204 = vmatprep.subr.bf16.mxu0 0
  %205 = vmatpush1.bf16.msra.mxu0 %v164
  %206 = vmatprep.subr.bf16.mxu0 0
  %207 = vmatpush1.bf16.msra.mxu0 %v165
  %208 = vmatprep.subr.bf16.mxu0 0
  %209 = vmatpush1.bf16.msra.mxu0 %v166
  %210 = vmatprep.subr.bf16.mxu0 0
  %211 = vmatpush1.bf16.msra.mxu0 %v167
  %212 = vmatprep.subr.bf16.mxu0 0
  %213 = vmatpush1.bf16.msra.mxu0 %v168
  %214 = vmatprep.subr.bf16.mxu0 0
  %215 = vmatpush1.bf16.msra.mxu0 %v169
  %216 = vmatprep.subr.bf16.mxu0 0
  %217 = vmatpush1.bf16.msra.mxu0 %v170
  %218 = vmatprep.subr.bf16.mxu0 0
  %219 = vmatpush1.bf16.msra.mxu0 %v171
  %220 = vmatprep.mubr.bf16.mxu0 %v85
  %221 = vmatmul.mubr.bf16.gmra.mrb[0].mxu0 %v84
  %v222 = vpop.f32.mrb[0].mxu0
  %v223 = vadd.f32 0.0, %v222
  %v224 = vpop.f32.mrb[0].mxu0
  %v225 = vpop.f32.mrb[0].mxu0
  %v226 = vadd.f32 0.0, %v225
  %v227 = vpop.f32.mrb[0].mxu0
  %228 = vmatprep.mubr.bf16.mxu0 %v87
  %229 = vmatmul.mubr.bf16.gmra.mrb[0].mxu0 %v86
  %v230 = vpop.f32.mrb[0].mxu0
  %v231 = vadd.f32 0.0, %v230
  %v232 = vpop.f32.mrb[0].mxu0
  %v233 = vpop.f32.mrb[0].mxu0
  %v234 = vadd.f32 0.0, %v233
  %v235 = vpop.f32.mrb[0].mxu0
  %236 = vdwg.mxu0
  %v237 = vadd.f32 %v32, %v223
  %v238 = vadd.f32 %v33, %v226
  %v239 = vadd.f32 %v34, %v231
  %v240 = vadd.f32 %v35, %v234
  %241 = vst [vmem:[#allocation2] sm:$0xff] %v237
  %242 = vst [vmem:[#allocation2 + $0x8] sm:$0xff] %v238
  %243 = vst [vmem:[#allocation2 + $0x10] sm:$0xff] %v239
  %244 = vst [vmem:[#allocation2 + $0x18] sm:$0xff] %v240
  // Predicated region
  $region30: #{gpt2_forward.16} parent=0 // pred_check
    %p245 = pneg %p24
  $region31: #{gpt2_forward.16} parent=0 // pred_check_branch
    %247 = sbr.rel (%p245) target = $region33
  $region32: #{gpt2_forward.16} parent=0 // pred_region
    %v248 = vld [vmem:[#allocation2] sm:$0xff]
    %v249 = vld [vmem:[#allocation2 + $0x8] sm:$0xff]
    %v250 = vld [vmem:[#allocation2 + $0x10] sm:$0xff]
    %v251 = vld [vmem:[#allocation2 + $0x18] sm:$0xff]
    %v252 = vld [vmem:[%s2] sm:$0x1]
    %v254 = vlaneseq
    %v255 = vshrl.u32 %v254, 7
    %v256 = vsub.s32 0, %v255
    %v257 = vrot.slane %v252, %v256
    %v259 = vadd.f32 %v248, %v257
    %v260 = vadd.f32 %v249, %v257
    %v261 = vadd.f32 %v250, %v257
    %v262 = vadd.f32 %v251, %v257
    %v263 = vld [vmem:[%s3] sm:$0xf]
    %v264 = vld [vmem:[%s3 + $0x4] sm:$0xf]
    %v265 = vld [vmem:[%s3 + $0x8] sm:$0xf]
    %v266 = vld [vmem:[%s3 + $0xc] sm:$0xf]
    %v267 = vunpack.c.l.bf16 %v263
    %v268 = vunpack.c.l.bf16 %v264
    %v269 = vunpack.c.l.bf16 %v265
    %v270 = vunpack.c.l.bf16 %v266
    %v271 = vadd.f32 %v267, %v259
    %v272 = vadd.f32 %v268, %v260
    %v273 = vadd.f32 %v269, %v261
    %v274 = vadd.f32 %v270, %v262
    %275 = vadd.xlane.f32.xlu0 %v271
    %v276 = vpop.xlane.xlu0 %275
    %277 = vadd.xlane.f32.xlu0 %v272
    %v278 = vpop.xlane.xlu0 %277
    %279 = vadd.xlane.f32.xlu0 %v273
    %v280 = vpop.xlane.xlu0 %279
    %281 = vadd.xlane.f32.xlu0 %v274
    %v282 = vpop.xlane.xlu0 %281
    %v283 = vrcp.pop 128.0
    %v284 = vmul.f32 %v276, %v283
    %v285 = vmul.f32 %v278, %v283
    %v286 = vmul.f32 %v280, %v283
    %v287 = vmul.f32 %v282, %v283
    %v288 = vsub.f32 %v271, %v284
    %v289 = vsub.f32 %v272, %v285
    %v290 = vsub.f32 %v273, %v286
    %v291 = vsub.f32 %v274, %v287
    %v292 = vmul.f32 %v288, %v288
    %v293 = vmul.f32 %v289, %v289
    %v294 = vmul.f32 %v290, %v290
    %v295 = vmul.f32 %v291, %v291
    %296 = vadd.xlane.f32.xlu0 %v292
    %v297 = vpop.xlane.xlu0 %296
    %298 = vadd.xlane.f32.xlu0 %v293
    %v299 = vpop.xlane.xlu0 %298
    %300 = vadd.xlane.f32.xlu0 %v294
    %v301 = vpop.xlane.xlu0 %300
    %302 = vadd.xlane.f32.xlu0 %v295
    %v303 = vpop.xlane.xlu0 %302
    %v304 = vmul.f32 %v297, %v283
    %v305 = vmul.f32 %v299, %v283
    %v306 = vmul.f32 %v301, %v283
    %v307 = vmul.f32 %v303, %v283
    %v308 = vadd.f32 %v304, 1e-05
    %v309 = vadd.f32 %v305, 1e-05
    %v310 = vadd.f32 %v306, 1e-05
    %v311 = vadd.f32 %v307, 1e-05
    %v312 = vrsqrt.pop %v308
    %v313 = vrsqrt.pop %v309
    %v314 = vrsqrt.pop %v310
    %v315 = vrsqrt.pop %v311
    %v316 = vmul.f32 %v288, %v312
    %v317 = vmul.f32 %v289, %v313
    %v318 = vmul.f32 %v290, %v314
    %v319 = vmul.f32 %v291, %v315
    %v320 = vld [vmem:[%s4] sm:$0x1]
    %v322 = vlaneseq
    %v323 = vshrl.u32 %v322, 7
    %v324 = vsub.s32 0, %v323
    %v325 = vrot.slane %v320, %v324
    %v327 = vmul.f32 %v316, %v325
    %v328 = vmul.f32 %v317, %v325
    %v329 = vmul.f32 %v318, %v325
    %v330 = vmul.f32 %v319, %v325
    %v331 = vld [vmem:[%s5] sm:$0x1]
    %v333 = vlaneseq
    %v334 = vshrl.u32 %v333, 7
    %v335 = vsub.s32 0, %v334
    %v336 = vrot.slane %v331, %v335
    %v338 = vadd.f32 %v327, %v336
    %v339 = vadd.f32 %v328, %v336
    %v340 = vadd.f32 %v329, %v336
    %v341 = vadd.f32 %v330, %v336
    %v342 = vpack.c.bf16 %v339, %v338
    %v343 = vpack.c.bf16 %v341, %v340
    %v346 = vunpack.c.l.b16 %v342
    %v347 = vunpack.c.h.b16 %v342
    %v348 = vunpack.c.l.b16 %v343
    %v349 = vunpack.c.h.b16 %v343
    %v350 = vpack.c.b16 %v346, %v346
    %v351 = vpack.c.b16 %v347, %v347
    %v352 = vpack.c.b16 %v348, %v348
    %v353 = vpack.c.b16 %v349, %v349
    %358 = vst [vmem:[%s6] sm:$0xf] %v350
    %359 = vst [vmem:[%s6 + $0x4] sm:$0xf] %v351
    %360 = vst [vmem:[%s6 + $0x8] sm:$0xf] %v352
    %361 = vst [vmem:[%s6 + $0xc] sm:$0xf] %v353
  $region33: #{gpt2_forward.16} parent=0 // pred_fallthru
    _
  // Predicated region
  $region34: #{gpt2_forward.16} parent=0 // pred_check
    _
  $region35: #{gpt2_forward.16} parent=0 // pred_check_branch
    %363 = sbr.rel (0) target = $region37
  $region36: #{gpt2_forward.16} parent=0 // pred_region
    _
  $region37: #{gpt2_forward.16} parent=0 // pred_fallthru
    _
  // Predicated region
  $region38: #{gpt2_forward.16} parent=0 // pred_check
    _
  $region39: #{gpt2_forward.16} parent=0 // pred_check_branch
    %365 = sbr.rel (0) target = $region41
  $region40: #{gpt2_forward.16} parent=0 // pred_region
    _
  $region41: #{gpt2_forward.16} parent=0 // pred_fallthru
    _

</llo_original>
